<compile_context>
chip_gen: v7x
topology: tpu7x:2x2x1
jax: 0.10.0
libtpu: 0.0.40
codegen_flags: <defaults>
</compile_context>

<pallas_src>
import functools

import numpy as np
import jax
import jax.numpy as jnp
from jax.experimental import pallas as pl
from jax.experimental.pallas import tpu as pltpu

# norse.LICell default parameters (LIParameters()) with dt = 1e-3.
# TODO(synk): LI update ordering follows norse's li_feed_forward_step with the
# current jump applied before the voltage update; older norse versions order
# the updates slightly differently.
TAU_SYN_INV = 200.0   # 1 / tau_syn = 1 / 5e-3
TAU_MEM_INV = 100.0   # 1 / tau_mem = 1 / 1e-2
V_LEAK = 0.0          # head-space state init/update below assumes V_LEAK == 0
DT = 1e-3

_ALPHA = DT * TAU_MEM_INV            # membrane integration gain
_SYN_DECAY = 1.0 - DT * TAU_SYN_INV  # synaptic-current decay
_HIGH = jax.lax.Precision.HIGHEST


def _decoder_kernel(x_ref, wbig_ref, mask_ref, bbig_ref, bhead_ref, out_ref,
                    v_state, i_state, *, k, h, w, t_block, out_pad):
    hw = h * w
    p = k // 2

    # Reset the LI state at the first time block of each batch element
    # (s1 = None in the reference; with V_LEAK == 0 the head-space init is 0).
    @pl.when(pl.program_id(1) == 0)
    def _():
        v_state[...] = jnp.zeros_like(v_state)
        i_state[...] = jnp.zeros_like(i_state)

    # ---- im2col RHS for the whole time block -------------------------------
    # x_ref is [t_block, C, hw].  For conv tap (ky, kx) the shifted window of
    # timestep t is a circular roll of the flat h*w axis by dy*w+dx; positions
    # whose source falls outside the image (W wrap of the roll, and the H
    # halo) are zeroed by the precomputed mask row -> no wrapper pad pass and
    # no per-step iota/mod/compare.  Rolls go to the XLU, off the ld/st path.
    xt = [x_ref[t] for t in range(t_block)]             # each [C, hw], loaded once
    pieces = []
    for ky in range(k):
        for kx in range(k):
            tap = ky * k + kx
            dy, dx = ky - p, kx - p
            shift = dy * w + dx
            center = (dy == 0 and dx == 0)
            m = None if center else mask_ref[tap:tap + 1, :]      # [1, hw]
            for t in range(t_block):
                piece = xt[t]
                if shift != 0:
                    # want piece'[f] = piece[(f + shift) mod hw]
                    piece = pltpu.roll(piece, (-shift) % hw, 1)
                if m is not None:
                    piece = piece * m
                pieces.append(piece)
    rhs = jnp.concatenate(pieces, axis=0)   # [k*k*t_block*C, hw], rows (tap,t,c)

    # ---- ONE wide matmul: conv + fused 1x1 heads for every timestep --------
    # wbig is block-diagonal over timesteps and already contains
    # W_head @ W_im2col, so the result rows are (t, head_channel).
    zfull = jnp.dot(wbig_ref[...], rhs, precision=_HIGH,
                    preferred_element_type=jnp.float32)
    zfull = zfull + bbig_ref[...]           # [t_block*out_pad, hw]

    # ---- sequential LI recurrence in (padded) head space --------------------
    # Static Python loop (t_block is small & static); state carried in vregs
    # within the block, read/written to VMEM scratch once per grid step.
    v = v_state[...]
    i = i_state[...]
    b_head = bhead_ref[...]
    for t in range(t_block):
        z_t = zfull[t * out_pad:(t + 1) * out_pad, :]   # sublane-aligned slice
        i_jump = i + z_t
        v = v * (1.0 - _ALPHA) + _ALPHA * (i_jump + V_LEAK)
        i = i_jump * _SYN_DECAY
        out_ref[t] = (v + b_head).astype(out_ref.dtype)  # dense (16, hw) store
    v_state[...] = v
    i_state[...] = i


def detector_direct_decoder(x, params, kernel_size, *, time_block=4):
    """x: [T, B, Cin, H, W] -> (boxes [T,B,box_out,H,W], classes [T,B,cls_out,H,W])."""
    wconv, bconv, wbox, bbox, wcls, bcls = params
    T, B, C, H, W = x.shape
    k = kernel_size
    assert k % 2 == 1, "Kernel size must be odd"
    p = k // 2
    HW = H * W
    box_out = wbox.shape[1]
    cls_out = wcls.shape[1]
    out_total = box_out + cls_out
    OP = ((out_total + 7) // 8) * 8        # pad head channels for aligned tiles

    Tb = min(time_block, T)
    T_pad = pl.cdiv(T, Tb) * Tb
    num_tb = T_pad // Tb

    # Free reshape only (no pad pass, no transpose); pad the time axis with
    # zero timesteps only if T % Tb != 0 (harmless for the LI state, sliced off).
    x4 = x.reshape(T, B, C, HW)
    if T_pad != T:
        x4 = jnp.pad(x4, ((0, T_pad - T), (0, 0), (0, 0), (0, 0)))

    # --- static weight prep (once, outside the time loop) --------------------
    # im2col conv weight [C, k*k*C] with column order (ky, kx, ci).
    w_im2col = jnp.transpose(wconv, (3, 0, 1, 2)).reshape(C, k * k * C)
    # Fuse the 1x1 heads into the conv (conv -> LI -> heads are all linear).
    w_head = jnp.concatenate([wbox, wcls], axis=1).T                  # [out, C]
    w_fused = jnp.einsum('oc,ck->ok', w_head, w_im2col, precision=_HIGH)
    b_fused = jnp.einsum('oc,c->o', w_head, bconv, precision=_HIGH)
    b_head = jnp.concatenate([bbox, bcls])

    # Zero-pad head channels out_total -> OP (padded rows stay exactly zero).
    w_fused_p = jnp.zeros((OP, k * k * C), jnp.float32).at[:out_total].set(w_fused)
    b_fused_p = jnp.zeros((OP,), jnp.float32).at[:out_total].set(b_fused)
    b_head_p = jnp.zeros((OP, 1), jnp.float32).at[:out_total, 0].set(b_head)

    # Block-diagonal (over timesteps) fused weight so the whole time block is
    # one matmul: W_big[(t,o), (tap,t',c)] = w_fused_p[o, tap*C+c] * (t == t').
    # TODO(synk): W_big grows as Tb^2*k^2*C*OP and the in-kernel rhs as
    # k^2*Tb*C*HW*4 B — re-budget Tb / tile HW (or fall back to per-tap matmul
    # accumulation) for production shapes on v7x's 64 MiB VMEM.
    w_fused_3 = w_fused_p.reshape(OP, k * k, C)
    w_big = jnp.einsum('oKc,tu->toKuc', w_fused_3,
                       jnp.eye(Tb, dtype=jnp.float32)
                       ).reshape(Tb * OP, k * k * Tb * C)
    b_big = jnp.tile(b_fused_p, Tb).reshape(Tb * OP, 1)

    # Precomputed "same"-conv boundary masks, one row per tap (handles both the
    # W wrap of the flat roll and the H halo); tiny resident VMEM input.
    fy, fx = np.arange(HW) // W, np.arange(HW) % W
    mask_rows = []
    for ky in range(k):
        for kx in range(k):
            dy, dx = ky - p, kx - p
            mask_rows.append((fy + dy >= 0) & (fy + dy < H) &
                             (fx + dx >= 0) & (fx + dx < W))
    masks = jnp.asarray(np.stack(mask_rows).astype(np.float32))       # [k*k, HW]

    # TODO(synk): optionally cast x4 / w_big to bf16 to halve input DMA bytes;
    # kept f32 here to comfortably hold the reference tolerance.
    kern = functools.partial(_decoder_kernel, k=k, h=H, w=W,
                             t_block=Tb, out_pad=OP)

    grid_spec = pltpu.PrefetchScalarGridSpec(
        num_scalar_prefetch=0,
        # batch: independent ("parallel", feeds v7x's two TensorCores);
        # time blocks: stateful recurrence ("arbitrary", must stay innermost).
        grid=(B, num_tb),
        in_specs=[
            pl.BlockSpec((Tb, None, C, HW), lambda b, t: (t, b, 0, 0)),
            pl.BlockSpec((Tb * OP, k * k * Tb * C), lambda b, t: (0, 0)),
            pl.BlockSpec((k * k, HW), lambda b, t: (0, 0)),
            pl.BlockSpec((Tb * OP, 1), lambda b, t: (0, 0)),
            pl.BlockSpec((OP, 1), lambda b, t: (0, 0)),
        ],
        out_specs=pl.BlockSpec((Tb, None, OP, HW), lambda b, t: (t, b, 0, 0)),
        scratch_shapes=[
            pltpu.VMEM((OP, HW), jnp.float32),   # v (head-space membrane)
            pltpu.VMEM((OP, HW), jnp.float32),   # i (head-space synaptic current)
        ],
    )

    out = pl.pallas_call(
        kern,
        out_shape=jax.ShapeDtypeStruct((T_pad, B, OP, HW), jnp.float32),
        grid_spec=grid_spec,
        compiler_params=pltpu.CompilerParams(
            dimension_semantics=("parallel", "arbitrary")),
    )(x4, w_big, masks, b_big, b_head_p)

    # Drop time / channel padding, free reshape, split heads.
    out = out[:T, :, :out_total].reshape(T, B, out_total, H, W)
    return out[:, :, :box_out], out[:, :, box_out:]


def _reference(x, params, kernel_size):
    """Pure-JAX reference matching the PyTorch forward semantics."""
    wconv, bconv, wbox, bbox, wcls, bcls = params
    T, B, C, H, W = x.shape
    p = kernel_size // 2
    w_oihw = jnp.transpose(wconv, (3, 2, 0, 1))
    v = jnp.full((B, C, H, W), V_LEAK, jnp.float32)
    i = jnp.zeros((B, C, H, W), jnp.float32)
    boxes, classes = [], []
    for t in range(T):
        z = jax.lax.conv_general_dilated(
            x[t], w_oihw, window_strides=(1, 1), padding=((p, p), (p, p)),
            dimension_numbers=('NCHW', 'OIHW', 'NCHW'), precision=_HIGH)
        z = z + bconv.reshape(1, C, 1, 1)
        i_jump = i + z
        v = v + DT * TAU_MEM_INV * ((V_LEAK - v) + i_jump)
        i = i_jump - DT * TAU_SYN_INV * i_jump
        boxes.append(jnp.einsum('bchw,cd->bdhw', v, wbox, precision=_HIGH)
                     + bbox.reshape(1, -1, 1, 1))
        classes.append(jnp.einsum('bchw,cd->bdhw', v, wcls, precision=_HIGH)
                       + bcls.reshape(1, -1, 1, 1))
    return jnp.stack(boxes), jnp.stack(classes)


if __name__ == "__main__":
    T, B, Cin, H, W = 8, 2, 8, 16, 16
    box_out, cls_out, ksz = 4, 6, 3

    key = jax.random.PRNGKey(0)
    ks = jax.random.split(key, 7)
    x = jax.random.normal(ks[0], (T, B, Cin, H, W), jnp.float32)
    # Deterministic synthetic parameters (module's __init__ only defines shapes).
    wconv = 0.1 * jax.random.normal(ks[1], (ksz, ksz, Cin, Cin), jnp.float32)
    bconv = 0.1 * jax.random.normal(ks[2], (Cin,), jnp.float32)
    wbox = 0.1 * jax.random.normal(ks[3], (Cin, box_out), jnp.float32)
    bbox = 0.1 * jax.random.normal(ks[4], (box_out,), jnp.float32)
    wcls = 0.1 * jax.random.normal(ks[5], (Cin, cls_out), jnp.float32)
    bcls = 0.1 * jax.random.normal(ks[6], (cls_out,), jnp.float32)
    params = (wconv, bconv, wbox, bbox, wcls, bcls)

    boxes, classes = detector_direct_decoder(x, params, ksz)
    jax.block_until_ready((boxes, classes))

    ref_boxes, ref_classes = _reference(x, params, ksz)
    assert boxes.shape == (T, B, box_out, H, W)
    assert classes.shape == (T, B, cls_out, H, W)
    assert jnp.allclose(boxes, ref_boxes, atol=2e-4, rtol=2e-4), \
        float(jnp.max(jnp.abs(boxes - ref_boxes)))
    assert jnp.allclose(classes, ref_classes, atol=2e-4, rtol=2e-4), \
        float(jnp.max(jnp.abs(classes - ref_classes)))

    print("KERNEL_OK")
</pallas_src>

<mosaic_0001>
module attributes {stable_mosaic.version = 11 : i64} {
  func.func @_decoder_kernel(%arg0: i32, %arg1: i32, %arg2: memref<4x1x8x256xf32, #tpu.memory_space<vmem>>, %arg3: memref<64x288xf32, #tpu.memory_space<vmem>>, %arg4: memref<9x256xf32, #tpu.memory_space<vmem>>, %arg5: memref<64x1xf32, #tpu.memory_space<vmem>>, %arg6: memref<16x1xf32, #tpu.memory_space<vmem>>, %arg7: memref<4x1x16x256xf32, #tpu.memory_space<vmem>>, %arg8: memref<16x256xf32, #tpu.memory_space<vmem>>, %arg9: memref<16x256xf32, #tpu.memory_space<vmem>>) attributes {dimension_semantics = [#tpu.dimension_semantics<parallel>, #tpu.dimension_semantics<arbitrary>], iteration_bounds = array<i64: 2, 2>, scalar_prefetch = 0 : i64, scratch_operands = 2 : i64, tpu.core_type = #tpu.core_type<tc>, window_params = [{transform_indices = @transform_0, window_bounds = array<i64: 4, 1, 8, 256>}, {pipeline_mode = #tpu.pipeline_mode<synchronous>, transform_indices = @transform_1, window_bounds = array<i64: 64, 288>}, {pipeline_mode = #tpu.pipeline_mode<synchronous>, transform_indices = @transform_2, window_bounds = array<i64: 9, 256>}, {pipeline_mode = #tpu.pipeline_mode<synchronous>, transform_indices = @transform_3, window_bounds = array<i64: 64, 1>}, {pipeline_mode = #tpu.pipeline_mode<synchronous>, transform_indices = @transform_4, window_bounds = array<i64: 16, 1>}, {transform_indices = @transform_5, window_bounds = array<i64: 4, 1, 16, 256>}]} {
    %c0_i32 = arith.constant 0 : i32
    %0 = arith.cmpi eq, %arg1, %c0_i32 : i32
    %1 = arith.extui %0 : i1 to i32
    %c0_i32_0 = arith.constant 0 : i32
    %2 = arith.cmpi ne, %1, %c0_i32_0 : i32
    scf.if %2 {
      %cst_95 = arith.constant 0.000000e+00 : f32
      %193 = vector.broadcast %cst_95 : f32 to vector<16x256xf32>
      %c0_96 = arith.constant 0 : index
      %c0_97 = arith.constant 0 : index
      %194 = vector.load %arg8[%c0_96, %c0_97] : memref<16x256xf32, #tpu.memory_space<vmem>>, vector<16x256xf32>
      tpu.vector_store %arg8[%c0_96, %c0_97], %193 {strides = array<i32>} : memref<16x256xf32, #tpu.memory_space<vmem>>, vector<16x256xf32>,
      %cst_98 = arith.constant 0.000000e+00 : f32
      %195 = vector.broadcast %cst_98 : f32 to vector<16x256xf32>
      %c0_99 = arith.constant 0 : index
      %c0_100 = arith.constant 0 : index
      %196 = vector.load %arg9[%c0_99, %c0_100] : memref<16x256xf32, #tpu.memory_space<vmem>>, vector<16x256xf32>
      tpu.vector_store %arg9[%c0_99, %c0_100], %195 {strides = array<i32>} : memref<16x256xf32, #tpu.memory_space<vmem>>, vector<16x256xf32>,
    } else {
    }
    %c0 = arith.constant 0 : index
    %c0_1 = arith.constant 0 : index
    %c0_2 = arith.constant 0 : index
    %c0_3 = arith.constant 0 : index
    %3 = vector.load %arg2[%c0, %c0_1, %c0_2, %c0_3] : memref<4x1x8x256xf32, #tpu.memory_space<vmem>>, vector<1x1x8x256xf32>
    %4 = vector.shape_cast %3 : vector<1x1x8x256xf32> to vector<8x256xf32>
    %c1 = arith.constant 1 : index
    %c0_4 = arith.constant 0 : index
    %c0_5 = arith.constant 0 : index
    %c0_6 = arith.constant 0 : index
    %5 = vector.load %arg2[%c1, %c0_4, %c0_5, %c0_6] : memref<4x1x8x256xf32, #tpu.memory_space<vmem>>, vector<1x1x8x256xf32>
    %6 = vector.shape_cast %5 : vector<1x1x8x256xf32> to vector<8x256xf32>
    %c2 = arith.constant 2 : index
    %c0_7 = arith.constant 0 : index
    %c0_8 = arith.constant 0 : index
    %c0_9 = arith.constant 0 : index
    %7 = vector.load %arg2[%c2, %c0_7, %c0_8, %c0_9] : memref<4x1x8x256xf32, #tpu.memory_space<vmem>>, vector<1x1x8x256xf32>
    %8 = vector.shape_cast %7 : vector<1x1x8x256xf32> to vector<8x256xf32>
    %c3 = arith.constant 3 : index
    %c0_10 = arith.constant 0 : index
    %c0_11 = arith.constant 0 : index
    %c0_12 = arith.constant 0 : index
    %9 = vector.load %arg2[%c3, %c0_10, %c0_11, %c0_12] : memref<4x1x8x256xf32, #tpu.memory_space<vmem>>, vector<1x1x8x256xf32>
    %10 = vector.shape_cast %9 : vector<1x1x8x256xf32> to vector<8x256xf32>
    %c0_13 = arith.constant 0 : index
    %c0_14 = arith.constant 0 : index
    %11 = vector.load %arg4[%c0_13, %c0_14] : memref<9x256xf32, #tpu.memory_space<vmem>>, vector<1x256xf32>
    %c17_i32 = arith.constant 17 : i32
    %12 = tpu.dynamic_rotate %4 by %c17_i32 dim 1 : vector<8x256xf32>, i32 -> vector<8x256xf32>
    %13 = vector.broadcast %11 : vector<1x256xf32> to vector<8x256xf32>
    %14 = arith.mulf %12, %13 : vector<8x256xf32>
    %c17_i32_15 = arith.constant 17 : i32
    %15 = tpu.dynamic_rotate %6 by %c17_i32_15 dim 1 : vector<8x256xf32>, i32 -> vector<8x256xf32>
    %16 = vector.broadcast %11 : vector<1x256xf32> to vector<8x256xf32>
    %17 = arith.mulf %15, %16 : vector<8x256xf32>
    %c17_i32_16 = arith.constant 17 : i32
    %18 = tpu.dynamic_rotate %8 by %c17_i32_16 dim 1 : vector<8x256xf32>, i32 -> vector<8x256xf32>
    %19 = vector.broadcast %11 : vector<1x256xf32> to vector<8x256xf32>
    %20 = arith.mulf %18, %19 : vector<8x256xf32>
    %c17_i32_17 = arith.constant 17 : i32
    %21 = tpu.dynamic_rotate %10 by %c17_i32_17 dim 1 : vector<8x256xf32>, i32 -> vector<8x256xf32>
    %22 = vector.broadcast %11 : vector<1x256xf32> to vector<8x256xf32>
    %23 = arith.mulf %21, %22 : vector<8x256xf32>
    %c1_18 = arith.constant 1 : index
    %c0_19 = arith.constant 0 : index
    %24 = vector.load %arg4[%c1_18, %c0_19] : memref<9x256xf32, #tpu.memory_space<vmem>>, vector<1x256xf32>
    %c16_i32 = arith.constant 16 : i32
    %25 = tpu.dynamic_rotate %4 by %c16_i32 dim 1 : vector<8x256xf32>, i32 -> vector<8x256xf32>
    %26 = vector.broadcast %24 : vector<1x256xf32> to vector<8x256xf32>
    %27 = arith.mulf %25, %26 : vector<8x256xf32>
    %c16_i32_20 = arith.constant 16 : i32
    %28 = tpu.dynamic_rotate %6 by %c16_i32_20 dim 1 : vector<8x256xf32>, i32 -> vector<8x256xf32>
    %29 = vector.broadcast %24 : vector<1x256xf32> to vector<8x256xf32>
    %30 = arith.mulf %28, %29 : vector<8x256xf32>
    %c16_i32_21 = arith.constant 16 : i32
    %31 = tpu.dynamic_rotate %8 by %c16_i32_21 dim 1 : vector<8x256xf32>, i32 -> vector<8x256xf32>
    %32 = vector.broadcast %24 : vector<1x256xf32> to vector<8x256xf32>
    %33 = arith.mulf %31, %32 : vector<8x256xf32>
    %c16_i32_22 = arith.constant 16 : i32
    %34 = tpu.dynamic_rotate %10 by %c16_i32_22 dim 1 : vector<8x256xf32>, i32 -> vector<8x256xf32>
    %35 = vector.broadcast %24 : vector<1x256xf32> to vector<8x256xf32>
    %36 = arith.mulf %34, %35 : vector<8x256xf32>
    %c2_23 = arith.constant 2 : index
    %c0_24 = arith.constant 0 : index
    %37 = vector.load %arg4[%c2_23, %c0_24] : memref<9x256xf32, #tpu.memory_space<vmem>>, vector<1x256xf32>
    %c15_i32 = arith.constant 15 : i32
    %38 = tpu.dynamic_rotate %4 by %c15_i32 dim 1 : vector<8x256xf32>, i32 -> vector<8x256xf32>
    %39 = vector.broadcast %37 : vector<1x256xf32> to vector<8x256xf32>
    %40 = arith.mulf %38, %39 : vector<8x256xf32>
    %c15_i32_25 = arith.constant 15 : i32
    %41 = tpu.dynamic_rotate %6 by %c15_i32_25 dim 1 : vector<8x256xf32>, i32 -> vector<8x256xf32>
    %42 = vector.broadcast %37 : vector<1x256xf32> to vector<8x256xf32>
    %43 = arith.mulf %41, %42 : vector<8x256xf32>
    %c15_i32_26 = arith.constant 15 : i32
    %44 = tpu.dynamic_rotate %8 by %c15_i32_26 dim 1 : vector<8x256xf32>, i32 -> vector<8x256xf32>
    %45 = vector.broadcast %37 : vector<1x256xf32> to vector<8x256xf32>
    %46 = arith.mulf %44, %45 : vector<8x256xf32>
    %c15_i32_27 = arith.constant 15 : i32
    %47 = tpu.dynamic_rotate %10 by %c15_i32_27 dim 1 : vector<8x256xf32>, i32 -> vector<8x256xf32>
    %48 = vector.broadcast %37 : vector<1x256xf32> to vector<8x256xf32>
    %49 = arith.mulf %47, %48 : vector<8x256xf32>
    %c3_28 = arith.constant 3 : index
    %c0_29 = arith.constant 0 : index
    %50 = vector.load %arg4[%c3_28, %c0_29] : memref<9x256xf32, #tpu.memory_space<vmem>>, vector<1x256xf32>
    %c1_i32 = arith.constant 1 : i32
    %51 = tpu.dynamic_rotate %4 by %c1_i32 dim 1 : vector<8x256xf32>, i32 -> vector<8x256xf32>
    %52 = vector.broadcast %50 : vector<1x256xf32> to vector<8x256xf32>
    %53 = arith.mulf %51, %52 : vector<8x256xf32>
    %c1_i32_30 = arith.constant 1 : i32
    %54 = tpu.dynamic_rotate %6 by %c1_i32_30 dim 1 : vector<8x256xf32>, i32 -> vector<8x256xf32>
    %55 = vector.broadcast %50 : vector<1x256xf32> to vector<8x256xf32>
    %56 = arith.mulf %54, %55 : vector<8x256xf32>
    %c1_i32_31 = arith.constant 1 : i32
    %57 = tpu.dynamic_rotate %8 by %c1_i32_31 dim 1 : vector<8x256xf32>, i32 -> vector<8x256xf32>
    %58 = vector.broadcast %50 : vector<1x256xf32> to vector<8x256xf32>
    %59 = arith.mulf %57, %58 : vector<8x256xf32>
    %c1_i32_32 = arith.constant 1 : i32
    %60 = tpu.dynamic_rotate %10 by %c1_i32_32 dim 1 : vector<8x256xf32>, i32 -> vector<8x256xf32>
    %61 = vector.broadcast %50 : vector<1x256xf32> to vector<8x256xf32>
    %62 = arith.mulf %60, %61 : vector<8x256xf32>
    %c5 = arith.constant 5 : index
    %c0_33 = arith.constant 0 : index
    %63 = vector.load %arg4[%c5, %c0_33] : memref<9x256xf32, #tpu.memory_space<vmem>>, vector<1x256xf32>
    %c255_i32 = arith.constant 255 : i32
    %64 = tpu.dynamic_rotate %4 by %c255_i32 dim 1 : vector<8x256xf32>, i32 -> vector<8x256xf32>
    %65 = vector.broadcast %63 : vector<1x256xf32> to vector<8x256xf32>
    %66 = arith.mulf %64, %65 : vector<8x256xf32>
    %c255_i32_34 = arith.constant 255 : i32
    %67 = tpu.dynamic_rotate %6 by %c255_i32_34 dim 1 : vector<8x256xf32>, i32 -> vector<8x256xf32>
    %68 = vector.broadcast %63 : vector<1x256xf32> to vector<8x256xf32>
    %69 = arith.mulf %67, %68 : vector<8x256xf32>
    %c255_i32_35 = arith.constant 255 : i32
    %70 = tpu.dynamic_rotate %8 by %c255_i32_35 dim 1 : vector<8x256xf32>, i32 -> vector<8x256xf32>
    %71 = vector.broadcast %63 : vector<1x256xf32> to vector<8x256xf32>
    %72 = arith.mulf %70, %71 : vector<8x256xf32>
    %c255_i32_36 = arith.constant 255 : i32
    %73 = tpu.dynamic_rotate %10 by %c255_i32_36 dim 1 : vector<8x256xf32>, i32 -> vector<8x256xf32>
    %74 = vector.broadcast %63 : vector<1x256xf32> to vector<8x256xf32>
    %75 = arith.mulf %73, %74 : vector<8x256xf32>
    %c6 = arith.constant 6 : index
    %c0_37 = arith.constant 0 : index
    %76 = vector.load %arg4[%c6, %c0_37] : memref<9x256xf32, #tpu.memory_space<vmem>>, vector<1x256xf32>
    %c241_i32 = arith.constant 241 : i32
    %77 = tpu.dynamic_rotate %4 by %c241_i32 dim 1 : vector<8x256xf32>, i32 -> vector<8x256xf32>
    %78 = vector.broadcast %76 : vector<1x256xf32> to vector<8x256xf32>
    %79 = arith.mulf %77, %78 : vector<8x256xf32>
    %c241_i32_38 = arith.constant 241 : i32
    %80 = tpu.dynamic_rotate %6 by %c241_i32_38 dim 1 : vector<8x256xf32>, i32 -> vector<8x256xf32>
    %81 = vector.broadcast %76 : vector<1x256xf32> to vector<8x256xf32>
    %82 = arith.mulf %80, %81 : vector<8x256xf32>
    %c241_i32_39 = arith.constant 241 : i32
    %83 = tpu.dynamic_rotate %8 by %c241_i32_39 dim 1 : vector<8x256xf32>, i32 -> vector<8x256xf32>
    %84 = vector.broadcast %76 : vector<1x256xf32> to vector<8x256xf32>
    %85 = arith.mulf %83, %84 : vector<8x256xf32>
    %c241_i32_40 = arith.constant 241 : i32
    %86 = tpu.dynamic_rotate %10 by %c241_i32_40 dim 1 : vector<8x256xf32>, i32 -> vector<8x256xf32>
    %87 = vector.broadcast %76 : vector<1x256xf32> to vector<8x256xf32>
    %88 = arith.mulf %86, %87 : vector<8x256xf32>
    %c7 = arith.constant 7 : index
    %c0_41 = arith.constant 0 : index
    %89 = vector.load %arg4[%c7, %c0_41] : memref<9x256xf32, #tpu.memory_space<vmem>>, vector<1x256xf32>
    %c240_i32 = arith.constant 240 : i32
    %90 = tpu.dynamic_rotate %4 by %c240_i32 dim 1 : vector<8x256xf32>, i32 -> vector<8x256xf32>
    %91 = vector.broadcast %89 : vector<1x256xf32> to vector<8x256xf32>
    %92 = arith.mulf %90, %91 : vector<8x256xf32>
    %c240_i32_42 = arith.constant 240 : i32
    %93 = tpu.dynamic_rotate %6 by %c240_i32_42 dim 1 : vector<8x256xf32>, i32 -> vector<8x256xf32>
    %94 = vector.broadcast %89 : vector<1x256xf32> to vector<8x256xf32>
    %95 = arith.mulf %93, %94 : vector<8x256xf32>
    %c240_i32_43 = arith.constant 240 : i32
    %96 = tpu.dynamic_rotate %8 by %c240_i32_43 dim 1 : vector<8x256xf32>, i32 -> vector<8x256xf32>
    %97 = vector.broadcast %89 : vector<1x256xf32> to vector<8x256xf32>
    %98 = arith.mulf %96, %97 : vector<8x256xf32>
    %c240_i32_44 = arith.constant 240 : i32
    %99 = tpu.dynamic_rotate %10 by %c240_i32_44 dim 1 : vector<8x256xf32>, i32 -> vector<8x256xf32>
    %100 = vector.broadcast %89 : vector<1x256xf32> to vector<8x256xf32>
    %101 = arith.mulf %99, %100 : vector<8x256xf32>
    %c8 = arith.constant 8 : index
    %c0_45 = arith.constant 0 : index
    %102 = vector.load %arg4[%c8, %c0_45] : memref<9x256xf32, #tpu.memory_space<vmem>>, vector<1x256xf32>
    %c239_i32 = arith.constant 239 : i32
    %103 = tpu.dynamic_rotate %4 by %c239_i32 dim 1 : vector<8x256xf32>, i32 -> vector<8x256xf32>
    %104 = vector.broadcast %102 : vector<1x256xf32> to vector<8x256xf32>
    %105 = arith.mulf %103, %104 : vector<8x256xf32>
    %c239_i32_46 = arith.constant 239 : i32
    %106 = tpu.dynamic_rotate %6 by %c239_i32_46 dim 1 : vector<8x256xf32>, i32 -> vector<8x256xf32>
    %107 = vector.broadcast %102 : vector<1x256xf32> to vector<8x256xf32>
    %108 = arith.mulf %106, %107 : vector<8x256xf32>
    %c239_i32_47 = arith.constant 239 : i32
    %109 = tpu.dynamic_rotate %8 by %c239_i32_47 dim 1 : vector<8x256xf32>, i32 -> vector<8x256xf32>
    %110 = vector.broadcast %102 : vector<1x256xf32> to vector<8x256xf32>
    %111 = arith.mulf %109, %110 : vector<8x256xf32>
    %c239_i32_48 = arith.constant 239 : i32
    %112 = tpu.dynamic_rotate %10 by %c239_i32_48 dim 1 : vector<8x256xf32>, i32 -> vector<8x256xf32>
    %113 = vector.broadcast %102 : vector<1x256xf32> to vector<8x256xf32>
    %114 = arith.mulf %112, %113 : vector<8x256xf32>
    %115 = tpu.concatenate %14, %17, %20, %23, %27, %30, %33, %36, %40, %43, %46, %49, %53, %56, %59, %62 in 0 : vector<8x256xf32>, vector<8x256xf32>, vector<8x256xf32>, vector<8x256xf32>, vector<8x256xf32>, vector<8x256xf32>, vector<8x256xf32>, vector<8x256xf32>, vector<8x256xf32>, vector<8x256xf32>, vector<8x256xf32>, vector<8x256xf32>, vector<8x256xf32>, vector<8x256xf32>, vector<8x256xf32>, vector<8x256xf32> -> vector<128x256xf32>
    %116 = tpu.concatenate %4, %6, %8, %10, %66, %69, %72, %75, %79, %82, %85, %88, %92, %95, %98, %101 in 0 : vector<8x256xf32>, vector<8x256xf32>, vector<8x256xf32>, vector<8x256xf32>, vector<8x256xf32>, vector<8x256xf32>, vector<8x256xf32>, vector<8x256xf32>, vector<8x256xf32>, vector<8x256xf32>, vector<8x256xf32>, vector<8x256xf32>, vector<8x256xf32>, vector<8x256xf32>, vector<8x256xf32>, vector<8x256xf32> -> vector<128x256xf32>
    %117 = tpu.concatenate %105, %108, %111, %114 in 0 : vector<8x256xf32>, vector<8x256xf32>, vector<8x256xf32>, vector<8x256xf32> -> vector<32x256xf32>
    %118 = tpu.concatenate %115, %116, %117 in 0 : vector<128x256xf32>, vector<128x256xf32>, vector<32x256xf32> -> vector<288x256xf32>
    %c0_49 = arith.constant 0 : index
    %c0_50 = arith.constant 0 : index
    %119 = vector.load %arg3[%c0_49, %c0_50] : memref<64x288xf32, #tpu.memory_space<vmem>>, vector<64x288xf32>
    %cst = arith.constant dense<0.000000e+00> : vector<64x256xf32>
    %120 = tpu.matmul %119, %118, %cst {dimension_numbers = #tpu.dot_dimension_numbers<[1], [0], [0], [1], [0, 0, 1, 1], [], []>, precision = #tpu.contract_precision<fp32>} : vector<64x288xf32>, vector<288x256xf32>, vector<64x256xf32> -> vector<64x256xf32>
    %c0_51 = arith.constant 0 : index
    %c0_52 = arith.constant 0 : index
    %121 = vector.load %arg5[%c0_51, %c0_52] : memref<64x1xf32, #tpu.memory_space<vmem>>, vector<64x1xf32>
    %122 = vector.broadcast %121 : vector<64x1xf32> to vector<64x256xf32>
    %123 = arith.addf %120, %122 : vector<64x256xf32>
    %c0_53 = arith.constant 0 : index
    %c0_54 = arith.constant 0 : index
    %124 = vector.load %arg8[%c0_53, %c0_54] : memref<16x256xf32, #tpu.memory_space<vmem>>, vector<16x256xf32>
    %c0_55 = arith.constant 0 : index
    %c0_56 = arith.constant 0 : index
    %125 = vector.load %arg9[%c0_55, %c0_56] : memref<16x256xf32, #tpu.memory_space<vmem>>, vector<16x256xf32>
    %c0_57 = arith.constant 0 : index
    %c0_58 = arith.constant 0 : index
    %126 = vector.load %arg6[%c0_57, %c0_58] : memref<16x1xf32, #tpu.memory_space<vmem>>, vector<16x1xf32>
    %127 = vector.extract_strided_slice %123 {offsets = [0, 0], sizes = [16, 256], strides = [1, 1]} : vector<64x256xf32> to vector<16x256xf32>
    %128 = arith.addf %125, %127 : vector<16x256xf32>
    %cst_59 = arith.constant 0.899999976 : f32
    %129 = vector.broadcast %cst_59 : f32 to vector<16x256xf32>
    %130 = arith.mulf %124, %129 : vector<16x256xf32>
    %cst_60 = arith.constant 0.000000e+00 : f32
    %131 = vector.broadcast %cst_60 : f32 to vector<16x256xf32>
    %132 = arith.addf %128, %131 : vector<16x256xf32>
    %cst_61 = arith.constant 1.000000e-01 : f32
    %133 = vector.broadcast %cst_61 : f32 to vector<16x256xf32>
    %134 = arith.mulf %133, %132 : vector<16x256xf32>
    %135 = arith.addf %130, %134 : vector<16x256xf32>
    %cst_62 = arith.constant 8.000000e-01 : f32
    %136 = vector.broadcast %cst_62 : f32 to vector<16x256xf32>
    %137 = arith.mulf %128, %136 : vector<16x256xf32>
    %138 = vector.broadcast %126 : vector<16x1xf32> to vector<16x256xf32>
    %139 = arith.addf %135, %138 : vector<16x256xf32>
    %c0_63 = arith.constant 0 : index
    %c0_64 = arith.constant 0 : index
    %c0_65 = arith.constant 0 : index
    %c0_66 = arith.constant 0 : index
    %140 = vector.load %arg7[%c0_63, %c0_64, %c0_65, %c0_66] : memref<4x1x16x256xf32, #tpu.memory_space<vmem>>, vector<1x1x16x256xf32>
    %141 = vector.shape_cast %140 : vector<1x1x16x256xf32> to vector<16x256xf32>
    %142 = vector.shape_cast %139 : vector<16x256xf32> to vector<1x1x16x256xf32>
    tpu.vector_store %arg7[%c0_63, %c0_64, %c0_65, %c0_66], %142 {strides = array<i32>} : memref<4x1x16x256xf32, #tpu.memory_space<vmem>>, vector<1x1x16x256xf32>,
    %143 = vector.extract_strided_slice %123 {offsets = [16, 0], sizes = [16, 256], strides = [1, 1]} : vector<64x256xf32> to vector<16x256xf32>
    %144 = arith.addf %137, %143 : vector<16x256xf32>
    %cst_67 = arith.constant 0.899999976 : f32
    %145 = vector.broadcast %cst_67 : f32 to vector<16x256xf32>
    %146 = arith.mulf %135, %145 : vector<16x256xf32>
    %cst_68 = arith.constant 0.000000e+00 : f32
    %147 = vector.broadcast %cst_68 : f32 to vector<16x256xf32>
    %148 = arith.addf %144, %147 : vector<16x256xf32>
    %cst_69 = arith.constant 1.000000e-01 : f32
    %149 = vector.broadcast %cst_69 : f32 to vector<16x256xf32>
    %150 = arith.mulf %149, %148 : vector<16x256xf32>
    %151 = arith.addf %146, %150 : vector<16x256xf32>
    %cst_70 = arith.constant 8.000000e-01 : f32
    %152 = vector.broadcast %cst_70 : f32 to vector<16x256xf32>
    %153 = arith.mulf %144, %152 : vector<16x256xf32>
    %154 = vector.broadcast %126 : vector<16x1xf32> to vector<16x256xf32>
    %155 = arith.addf %151, %154 : vector<16x256xf32>
    %c1_71 = arith.constant 1 : index
    %c0_72 = arith.constant 0 : index
    %c0_73 = arith.constant 0 : index
    %c0_74 = arith.constant 0 : index
    %156 = vector.load %arg7[%c1_71, %c0_72, %c0_73, %c0_74] : memref<4x1x16x256xf32, #tpu.memory_space<vmem>>, vector<1x1x16x256xf32>
    %157 = vector.shape_cast %156 : vector<1x1x16x256xf32> to vector<16x256xf32>
    %158 = vector.shape_cast %155 : vector<16x256xf32> to vector<1x1x16x256xf32>
    tpu.vector_store %arg7[%c1_71, %c0_72, %c0_73, %c0_74], %158 {strides = array<i32>} : memref<4x1x16x256xf32, #tpu.memory_space<vmem>>, vector<1x1x16x256xf32>,
    %159 = vector.extract_strided_slice %123 {offsets = [32, 0], sizes = [16, 256], strides = [1, 1]} : vector<64x256xf32> to vector<16x256xf32>
    %160 = arith.addf %153, %159 : vector<16x256xf32>
    %cst_75 = arith.constant 0.899999976 : f32
    %161 = vector.broadcast %cst_75 : f32 to vector<16x256xf32>
    %162 = arith.mulf %151, %161 : vector<16x256xf32>
    %cst_76 = arith.constant 0.000000e+00 : f32
    %163 = vector.broadcast %cst_76 : f32 to vector<16x256xf32>
    %164 = arith.addf %160, %163 : vector<16x256xf32>
    %cst_77 = arith.constant 1.000000e-01 : f32
    %165 = vector.broadcast %cst_77 : f32 to vector<16x256xf32>
    %166 = arith.mulf %165, %164 : vector<16x256xf32>
    %167 = arith.addf %162, %166 : vector<16x256xf32>
    %cst_78 = arith.constant 8.000000e-01 : f32
    %168 = vector.broadcast %cst_78 : f32 to vector<16x256xf32>
    %169 = arith.mulf %160, %168 : vector<16x256xf32>
    %170 = vector.broadcast %126 : vector<16x1xf32> to vector<16x256xf32>
    %171 = arith.addf %167, %170 : vector<16x256xf32>
    %c2_79 = arith.constant 2 : index
    %c0_80 = arith.constant 0 : index
    %c0_81 = arith.constant 0 : index
    %c0_82 = arith.constant 0 : index
    %172 = vector.load %arg7[%c2_79, %c0_80, %c0_81, %c0_82] : memref<4x1x16x256xf32, #tpu.memory_space<vmem>>, vector<1x1x16x256xf32>
    %173 = vector.shape_cast %172 : vector<1x1x16x256xf32> to vector<16x256xf32>
    %174 = vector.shape_cast %171 : vector<16x256xf32> to vector<1x1x16x256xf32>
    tpu.vector_store %arg7[%c2_79, %c0_80, %c0_81, %c0_82], %174 {strides = array<i32>} : memref<4x1x16x256xf32, #tpu.memory_space<vmem>>, vector<1x1x16x256xf32>,
    %175 = vector.extract_strided_slice %123 {offsets = [48, 0], sizes = [16, 256], strides = [1, 1]} : vector<64x256xf32> to vector<16x256xf32>
    %176 = arith.addf %169, %175 : vector<16x256xf32>
    %cst_83 = arith.constant 0.899999976 : f32
    %177 = vector.broadcast %cst_83 : f32 to vector<16x256xf32>
    %178 = arith.mulf %167, %177 : vector<16x256xf32>
    %cst_84 = arith.constant 0.000000e+00 : f32
    %179 = vector.broadcast %cst_84 : f32 to vector<16x256xf32>
    %180 = arith.addf %176, %179 : vector<16x256xf32>
    %cst_85 = arith.constant 1.000000e-01 : f32
    %181 = vector.broadcast %cst_85 : f32 to vector<16x256xf32>
    %182 = arith.mulf %181, %180 : vector<16x256xf32>
    %183 = arith.addf %178, %182 : vector<16x256xf32>
    %cst_86 = arith.constant 8.000000e-01 : f32
    %184 = vector.broadcast %cst_86 : f32 to vector<16x256xf32>
    %185 = arith.mulf %176, %184 : vector<16x256xf32>
    %186 = vector.broadcast %126 : vector<16x1xf32> to vector<16x256xf32>
    %187 = arith.addf %183, %186 : vector<16x256xf32>
    %c3_87 = arith.constant 3 : index
    %c0_88 = arith.constant 0 : index
    %c0_89 = arith.constant 0 : index
    %c0_90 = arith.constant 0 : index
    %188 = vector.load %arg7[%c3_87, %c0_88, %c0_89, %c0_90] : memref<4x1x16x256xf32, #tpu.memory_space<vmem>>, vector<1x1x16x256xf32>
    %189 = vector.shape_cast %188 : vector<1x1x16x256xf32> to vector<16x256xf32>
    %190 = vector.shape_cast %187 : vector<16x256xf32> to vector<1x1x16x256xf32>
    tpu.vector_store %arg7[%c3_87, %c0_88, %c0_89, %c0_90], %190 {strides = array<i32>} : memref<4x1x16x256xf32, #tpu.memory_space<vmem>>, vector<1x1x16x256xf32>,
    %c0_91 = arith.constant 0 : index
    %c0_92 = arith.constant 0 : index
    %191 = vector.load %arg8[%c0_91, %c0_92] : memref<16x256xf32, #tpu.memory_space<vmem>>, vector<16x256xf32>
    tpu.vector_store %arg8[%c0_91, %c0_92], %183 {strides = array<i32>} : memref<16x256xf32, #tpu.memory_space<vmem>>, vector<16x256xf32>,
    %c0_93 = arith.constant 0 : index
    %c0_94 = arith.constant 0 : index
    %192 = vector.load %arg9[%c0_93, %c0_94] : memref<16x256xf32, #tpu.memory_space<vmem>>, vector<16x256xf32>
    tpu.vector_store %arg9[%c0_93, %c0_94], %185 {strides = array<i32>} : memref<16x256xf32, #tpu.memory_space<vmem>>, vector<16x256xf32>,
    return
  }
  func.func @transform_0(%arg0: i32, %arg1: i32) -> (i32, i32, i32, i32) {
    %c0_i32 = arith.constant 0 : i32
    %c0_i32_0 = arith.constant 0 : i32
    %c0_i32_1 = arith.constant 0 : i32
    return %arg1, %arg0, %c0_i32, %c0_i32_0 : i32, i32, i32, i32
  }
  func.func @transform_1(%arg0: i32, %arg1: i32) -> (i32, i32) {
    %c0_i32 = arith.constant 0 : i32
    %c0_i32_0 = arith.constant 0 : i32
    %c0_i32_1 = arith.constant 0 : i32
    return %c0_i32, %c0_i32_0 : i32, i32
  }
  func.func @transform_2(%arg0: i32, %arg1: i32) -> (i32, i32) {
    %c0_i32 = arith.constant 0 : i32
    %c0_i32_0 = arith.constant 0 : i32
    %c0_i32_1 = arith.constant 0 : i32
    return %c0_i32, %c0_i32_0 : i32, i32
  }
  func.func @transform_3(%arg0: i32, %arg1: i32) -> (i32, i32) {
    %c0_i32 = arith.constant 0 : i32
    %c0_i32_0 = arith.constant 0 : i32
    %c0_i32_1 = arith.constant 0 : i32
    return %c0_i32, %c0_i32_0 : i32, i32
  }
  func.func @transform_4(%arg0: i32, %arg1: i32) -> (i32, i32) {
    %c0_i32 = arith.constant 0 : i32
    %c0_i32_0 = arith.constant 0 : i32
    %c0_i32_1 = arith.constant 0 : i32
    return %c0_i32, %c0_i32_0 : i32, i32
  }
  func.func @transform_5(%arg0: i32, %arg1: i32) -> (i32, i32, i32, i32) {
    %c0_i32 = arith.constant 0 : i32
    %c0_i32_0 = arith.constant 0 : i32
    %c0_i32_1 = arith.constant 0 : i32
    return %arg1, %arg0, %c0_i32, %c0_i32_0 : i32, i32, i32, i32
  }
}

</mosaic_0001>

<llo_original>
// kernel: tpu_custom_call.1
$region0: #{tpu_custom_call.1}
  #allocation0 [shape = 'u32[]', space=smem, size = 0x4, offset = 0x4, fixed_abs, tag = 'smem constant byte address 0x4 - core index']
  #allocation1 [shape = 'u32[144,128]{1,0:T(1,128)}', space=vmem, size = 0x12000, scoped, tag = 'internal scratch']
  #allocation2 [shape = 'f32[16,256]{1,0:T(8,128)}', space=vmem, size = 0x4000, scoped, tag = 'scratch operand']
  #allocation3 [shape = 'f32[16,256]{1,0:T(8,128)}', space=vmem, size = 0x4000, scoped, tag = 'scratch operand']
  #allocation10 [shape = 's32[]', space=sflag, size = 0x4, offset = 0, fixed_abs, tag = 'sflag constant byte address 0x0 - dummy sync flag']
  %s0 = inlined_call_operand.hbm [shape: f32[8,2,8,256], index: 0, kind: input, shape index: {}]
  %s1 = inlined_call_operand.hbm [shape: f32[64,288], index: 1, kind: input, shape index: {}]
  %s2 = inlined_call_operand.vmem [shape: f32[9,256], index: 2, kind: input, shape index: {}]
  %s3 = inlined_call_operand.vmem [shape: f32[64,1], index: 3, kind: input, shape index: {}]
  %s4 = inlined_call_operand.vmem [shape: f32[16,1], index: 4, kind: input, shape index: {}]
  %s5 = inlined_call_operand.hbm [shape: f32[8,2,16,256], index: 5, kind: output, shape index: {}]
  %s6 = sld [smem:[#allocation0]]
  $region65: #{tpu_custom_call.1} parent=0
    _
  %s8 = ssub.s32 1, %s6
  %s9 = scalar_select 0, %s8, %s6
  $region1: #{tpu_custom_call.1} parent=0
    #allocation4 [shape = 'u8[65536]{0}', space=vmem, size = 0x10000, scoped, tag = 'input window, operand 0']
    #allocation5 [shape = 's32[2]{0}', space=sflag, size = 0x8, scoped, tag = 'scoped memory for tpu_custom_call.1']
    #allocation6 [shape = 's32[2]{0}', space=sflag, size = 0x8, scoped, tag = 'scoped memory for tpu_custom_call.1']
    #allocation7 [shape = 'u8[98304]{0}', space=vmem, size = 0x18000, scoped, tag = 'input window, operand 1, single buffered']
    #allocation8 [shape = 's32[1]{0}', space=sflag, size = 0x4, scoped, tag = 'scoped memory for tpu_custom_call.1']
    #allocation9 [shape = 'u8[131072]{0}', space=vmem, size = 0x20000, scoped, tag = 'output window, operand 0']
    %10 = vsyncpa [#allocation5], 0
    %s11 = scalar_lea.sflag [#allocation5], 1
    %12 = vsyncpa %s11, 0
    %13 = vsyncpa [#allocation8], 0
    %14 = vsyncpa [#allocation6], 0
    %s15 = scalar_lea.sflag [#allocation6], 1
    %16 = vsyncpa %s15, 0
    loop: start=0, step=1, limit=6
    $region2: #{tpu_custom_call.1} parent=1 // loop_pre_header
      _
    $region3: #{tpu_custom_call.1} parent=1 // loop_header
      %s18 = sphi 0, %s22
      %p19 = scmp.ge.s32.totalorder %s18, 6
      %s25 = sphi 0, %s37
      %s26 = sphi 0, %s33
      %s27 = sphi 0, %s25
      %s28 = sphi 0, %s26
      %s29 = sphi 0, %s27
      %s30 = sphi 0, %s28
      %s42 = sphi 0, %s44
      %s45 = sphi 0, %s42
      %s46 = sphi 0, %s45
      %s62 = sphi 0, %s46
      %s66 = sphi 0, %s66
      %s68 = sphi 0, %s66
      %s69 = sphi 0, %s68
      %s83 = sphi 0, %s69
      %s87 = sphi 0, %s87
      %s89 = sphi 0, %s87
      %s90 = sphi 0, %s89
      %s104 = sphi 0, %s90
      %s108 = sphi 0, %s108
      %s110 = sphi 0, %s108
      %s111 = sphi 0, %s110
      %s125 = sphi 0, %s111
      %s129 = sphi 0, %s129
      %s131 = sphi 0, %s129
      %s132 = sphi 0, %s131
      %s146 = sphi 0, %s132
      %s154 = sphi 0, %s156
      %s157 = sphi 0, %s154
      %s158 = sphi 0, %s157
      %s174 = sphi 0, %s158
    $region4: #{tpu_custom_call.1} parent=1 // loop_header_branch
      %21 = sbr.rel (%p19) target = $region8
    $region5: #{tpu_custom_call.1} parent=1 // loop_body
      %s23 = ssub.s32 %s18, 1
      %s24 = ssub.s32 %s18, 2
      %s31 = sadd.s32 1, %s26
      %p32 = scmp.ge.s32.totalorder %s31, 2
      %s33 = scalar_select %p32, 0, %s31
      %s34 = sadd.s32 1, %s25
      %s35 = scalar_select %p32, %s34, %s25
      %p36 = scmp.ge.s32.totalorder %s35, 2
      %s37 = scalar_select %p36, 0, %s35
      %s38 = ssub.s32 %s26, %s33
      %s39 = ssub.s32 %s25, %s37
      %s40 = sor.u32 %s38, %s39
      %p41 = scmp.eq.s32.totalorder %s40, 0
      %s43 = sadd.s32 %s42, 1
      %s44 = scalar_select %p41, %s42, %s43
      %p47 = pneg %p41
      %p48 = scmp.eq.s32.totalorder %s18, 3
      %p49 = por %p47, %p48
      %p50 = scmp.ne.s32.totalorder %s42, %s45
      %p51 = scmp.eq.s32.totalorder %s18, 0
      %p52 = por %p50, %p51
      %p53 = scmp.ne.s32.totalorder %s42, %s45
      %p54 = scmp.eq.s32.totalorder %s23, 3
      %p55 = por %p53, %p54
      %p56 = scmp.ne.s32.totalorder %s45, %s46
      %p57 = scmp.eq.s32.totalorder %s23, 0
      %p58 = por %p56, %p57
      %p59 = scmp.ne.s32.totalorder %s45, %s46
      %p60 = scmp.eq.s32.totalorder %s24, 3
      %p61 = por %p59, %p60
      %p63 = scmp.ne.s32.totalorder %s46, %s62
      %p64 = scmp.eq.s32.totalorder %s24, 0
      %p65 = por %p63, %p64
      %s67 = sadd.s32 %s66, 1
      %p70 = scmp.eq.s32.totalorder %s18, 3
      %p71 = scmp.ne.s32.totalorder %s66, %s68
      %p72 = scmp.eq.s32.totalorder %s18, 0
      %p73 = por %p71, %p72
      %p74 = scmp.ne.s32.totalorder %s66, %s68
      %p75 = scmp.eq.s32.totalorder %s23, 3
      %p76 = por %p74, %p75
      %p77 = scmp.ne.s32.totalorder %s68, %s69
      %p78 = scmp.eq.s32.totalorder %s23, 0
      %p79 = por %p77, %p78
      %p80 = scmp.ne.s32.totalorder %s68, %s69
      %p81 = scmp.eq.s32.totalorder %s24, 3
      %p82 = por %p80, %p81
      %p84 = scmp.ne.s32.totalorder %s69, %s83
      %p85 = scmp.eq.s32.totalorder %s24, 0
      %p86 = por %p84, %p85
      %s88 = sadd.s32 %s87, 1
      %p91 = scmp.eq.s32.totalorder %s18, 3
      %p92 = scmp.ne.s32.totalorder %s87, %s89
      %p93 = scmp.eq.s32.totalorder %s18, 0
      %p94 = por %p92, %p93
      %p95 = scmp.ne.s32.totalorder %s87, %s89
      %p96 = scmp.eq.s32.totalorder %s23, 3
      %p97 = por %p95, %p96
      %p98 = scmp.ne.s32.totalorder %s89, %s90
      %p99 = scmp.eq.s32.totalorder %s23, 0
      %p100 = por %p98, %p99
      %p101 = scmp.ne.s32.totalorder %s89, %s90
      %p102 = scmp.eq.s32.totalorder %s24, 3
      %p103 = por %p101, %p102
      %p105 = scmp.ne.s32.totalorder %s90, %s104
      %p106 = scmp.eq.s32.totalorder %s24, 0
      %p107 = por %p105, %p106
      %s109 = sadd.s32 %s108, 1
      %p112 = scmp.eq.s32.totalorder %s18, 3
      %p113 = scmp.ne.s32.totalorder %s108, %s110
      %p114 = scmp.eq.s32.totalorder %s18, 0
      %p115 = por %p113, %p114
      %p116 = scmp.ne.s32.totalorder %s108, %s110
      %p117 = scmp.eq.s32.totalorder %s23, 3
      %p118 = por %p116, %p117
      %p119 = scmp.ne.s32.totalorder %s110, %s111
      %p120 = scmp.eq.s32.totalorder %s23, 0
      %p121 = por %p119, %p120
      %p122 = scmp.ne.s32.totalorder %s110, %s111
      %p123 = scmp.eq.s32.totalorder %s24, 3
      %p124 = por %p122, %p123
      %p126 = scmp.ne.s32.totalorder %s111, %s125
      %p127 = scmp.eq.s32.totalorder %s24, 0
      %p128 = por %p126, %p127
      %s130 = sadd.s32 %s129, 1
      %p133 = scmp.eq.s32.totalorder %s18, 3
      %p134 = scmp.ne.s32.totalorder %s129, %s131
      %p135 = scmp.eq.s32.totalorder %s18, 0
      %p136 = por %p134, %p135
      %p137 = scmp.ne.s32.totalorder %s129, %s131
      %p138 = scmp.eq.s32.totalorder %s23, 3
      %p139 = por %p137, %p138
      %p140 = scmp.ne.s32.totalorder %s131, %s132
      %p141 = scmp.eq.s32.totalorder %s23, 0
      %p142 = por %p140, %p141
      %p143 = scmp.ne.s32.totalorder %s131, %s132
      %p144 = scmp.eq.s32.totalorder %s24, 3
      %p145 = por %p143, %p144
      %p147 = scmp.ne.s32.totalorder %s132, %s146
      %p148 = scmp.eq.s32.totalorder %s24, 0
      %p149 = por %p147, %p148
      %s150 = ssub.s32 %s26, %s33
      %s151 = ssub.s32 %s25, %s37
      %s152 = sor.u32 %s150, %s151
      %p153 = scmp.eq.s32.totalorder %s152, 0
      %s155 = sadd.s32 %s154, 1
      %s156 = scalar_select %p153, %s154, %s155
      %p159 = pneg %p153
      %p160 = scmp.eq.s32.totalorder %s18, 3
      %p161 = por %p159, %p160
      %p162 = scmp.ne.s32.totalorder %s154, %s157
      %p163 = scmp.eq.s32.totalorder %s18, 0
      %p164 = por %p162, %p163
      %p165 = scmp.ne.s32.totalorder %s154, %s157
      %p166 = scmp.eq.s32.totalorder %s23, 3
      %p167 = por %p165, %p166
      %p168 = scmp.ne.s32.totalorder %s157, %s158
      %p169 = scmp.eq.s32.totalorder %s23, 0
      %p170 = por %p168, %p169
      %p171 = scmp.ne.s32.totalorder %s157, %s158
      %p172 = scmp.eq.s32.totalorder %s24, 3
      %p173 = por %p171, %p172
      %p175 = scmp.ne.s32.totalorder %s158, %s174
      %p176 = scmp.eq.s32.totalorder %s24, 0
      %p177 = por %p175, %p176
      %p178 = scmp.le.s32.totalorder 1, %s18
      %p179 = scmp.lt.s32.totalorder %s18, 5
      %p180 = pnand %p178, %p179
      %p181 = pneg %p180
      // Predicated region
      $region9: #{tpu_custom_call.1} parent=5 // pred_check
        _
      $region10: #{tpu_custom_call.1} parent=5 // pred_check_branch
        %183 = sbr.rel (%p180) target = $region12
      $region11: #{tpu_custom_call.1} parent=5 // pred_region
        %s184 = ssub.s32 %s18, 1
        // Predicated region
        $region13: #{tpu_custom_call.1} parent=11 // pred_check
          %p185 = pneg %p79
        $region14: #{tpu_custom_call.1} parent=11 // pred_check_branch
          %187 = sbr.rel (%p185) target = $region16
        $region15: #{tpu_custom_call.1} parent=11 // pred_region
          %s189 = ssub.s32 3072, 3072
          %190 = vsyncadd [#allocation8], %s189
          %s191 = sshll.u32 [#allocation7], 4
          %s192 = int_to_ptr.vmem [resolvable:$true] %s191
          %197 = dma.hbm_to_vmem [thread:$0]  %s1, 3072, %s192, [#allocation8], 384, 384, 24
        $region16: #{tpu_custom_call.1} parent=11 // pred_fallthru
          _
        // Predicated region
        $region17: #{tpu_custom_call.1} parent=11 // pred_check
          %p198 = pneg %p100
        $region18: #{tpu_custom_call.1} parent=11 // pred_check_branch
          %200 = sbr.rel (%p198) target = $region20
        $region19: #{tpu_custom_call.1} parent=11 // pred_region
          _
        $region20: #{tpu_custom_call.1} parent=11 // pred_fallthru
          _
        // Predicated region
        $region21: #{tpu_custom_call.1} parent=11 // pred_check
          %p201 = pneg %p121
        $region22: #{tpu_custom_call.1} parent=11 // pred_check_branch
          %203 = sbr.rel (%p201) target = $region24
        $region23: #{tpu_custom_call.1} parent=11 // pred_region
          _
        $region24: #{tpu_custom_call.1} parent=11 // pred_fallthru
          _
        // Predicated region
        $region25: #{tpu_custom_call.1} parent=11 // pred_check
          %p204 = pneg %p142
        $region26: #{tpu_custom_call.1} parent=11 // pred_check_branch
          %206 = sbr.rel (%p204) target = $region28
        $region27: #{tpu_custom_call.1} parent=11 // pred_region
          _
        $region28: #{tpu_custom_call.1} parent=11 // pred_fallthru
          _
      $region12: #{tpu_custom_call.1} parent=5 // pred_fallthru
        _
      %p207 = scmp.lt.s32.totalorder %s18, 4
      // Predicated region
      $region29: #{tpu_custom_call.1} parent=5 // pred_check
        %p208 = pneg %p207
      $region30: #{tpu_custom_call.1} parent=5 // pred_check_branch
        %210 = sbr.rel (%p208) target = $region32
      $region31: #{tpu_custom_call.1} parent=5 // pred_region
        // Predicated region
        $region33: #{tpu_custom_call.1} parent=31 // pred_check
          %p211 = pneg %p52
        $region34: #{tpu_custom_call.1} parent=31 // pred_check_branch
          %213 = sbr.rel (%p211) target = $region36
        $region35: #{tpu_custom_call.1} parent=31 // pred_region
          %s214 = sand.u32 %s42, 1
          %s215 = scalar_lea.sflag [#allocation5], %s214
          %s216 = sand.u32 %s42, 1
          %s217 = smul.addr %s216, 64
          %s218 = scalar_lea.vmem [#allocation4], %s217
          %s219 = smul.u32 4, %s26
          %s221 = ssub.s32 1024, 1024
          %222 = vsyncadd %s215, %s221
          %s223 = smul.addr %s25, 2
          %s224 = smul.addr %s219, 4
          %s225 = sadd.s32 %s223, %s224
          %s226 = smul.addr %s225, 128
          %s227 = scalar_lea.hbm %s0, %s226
          %s228 = sshll.u32 %s218, 4
          %s229 = int_to_ptr.vmem [resolvable:$true] %s228
          %234 = dma.hbm_to_vmem [thread:$0]  %s227, 1024, %s229, %s215, 512, 256, 16
        $region36: #{tpu_custom_call.1} parent=31 // pred_fallthru
          _
      $region32: #{tpu_custom_call.1} parent=5 // pred_fallthru
        _
      %p235 = scmp.le.s32.totalorder 1, %s18
      %p236 = scmp.lt.s32.totalorder %s18, 5
      %p237 = pnand %p235, %p236
      %p238 = pneg %p237
      // Predicated region
      $region37: #{tpu_custom_call.1} parent=5 // pred_check
        _
      $region38: #{tpu_custom_call.1} parent=5 // pred_check_branch
        %240 = sbr.rel (%p237) target = $region40
      $region39: #{tpu_custom_call.1} parent=5 // pred_region
        %s241 = ssub.s32 %s18, 1
        %s242 = sand.u32 %s45, 1
        %s243 = scalar_lea.sflag [#allocation5], %s242
        %s244 = sand.u32 %s45, 1
        %s245 = smul.addr %s244, 64
        %s246 = scalar_lea.vmem [#allocation4], %s245
        // Predicated region
        $region41: #{tpu_custom_call.1} parent=39 // pred_check
          %p247 = pneg %p58
        $region42: #{tpu_custom_call.1} parent=39 // pred_check_branch
          %249 = sbr.rel (%p247) target = $region44
        $region43: #{tpu_custom_call.1} parent=39 // pred_region
          %250 = dma.done %s243, 1024
        $region44: #{tpu_custom_call.1} parent=39 // pred_fallthru
          _
        // Predicated region
        $region45: #{tpu_custom_call.1} parent=39 // pred_check
          %p251 = pneg %p79
        $region46: #{tpu_custom_call.1} parent=39 // pred_check_branch
          %253 = sbr.rel (%p251) target = $region48
        $region47: #{tpu_custom_call.1} parent=39 // pred_region
          %254 = dma.done [#allocation8], 3072
        $region48: #{tpu_custom_call.1} parent=39 // pred_fallthru
          _
        %s255 = sand.u32 %s45, 1
        %s256 = scalar_lea.sflag [#allocation5], %s255
        %s257 = sand.u32 %s45, 1
        %s258 = smul.addr %s257, 64
        %s259 = scalar_lea.vmem [#allocation4], %s258
        %p260 = pneg %p58
        %p261 = pneg %p55
        %p262 = pneg %p79
        %p263 = pneg %p76
        %p264 = pneg %p100
        %p265 = pneg %p97
        %p266 = pneg %p121
        %p267 = pneg %p118
        %p268 = pneg %p142
        %p269 = pneg %p139
        %p270 = pneg %p170
        %p271 = pneg %p167
        %s272 = sand.u32 %s157, 1
        %s273 = scalar_lea.sflag [#allocation6], %s272
        %s274 = sand.u32 %s157, 1
        %s275 = smul.addr %s274, 128
        %s276 = scalar_lea.vmem [#allocation9], %s275
        %s277 = smul.u32 4, %s28
        %s278 = smul.u32 4, %s28
        %p279 = scmp.eq.s32.totalorder %s28, 0
        // Predicated region
        $region49: #{tpu_custom_call.1} parent=39 // pred_check
          %p280 = pneg %p279
        $region50: #{tpu_custom_call.1} parent=39 // pred_check_branch
          %282 = sbr.rel (%p280) target = $region52
        $region51: #{tpu_custom_call.1} parent=39 // pred_region
          %283 = vst [vmem:[#allocation2] sm:$0xff] 0.0
          %284 = vst [vmem:[#allocation2 + $0x8] sm:$0xff] 0.0
          %285 = vst [vmem:[#allocation2 + $0x10] sm:$0xff] 0.0
          %286 = vst [vmem:[#allocation2 + $0x18] sm:$0xff] 0.0
          %287 = vst [vmem:[#allocation3] sm:$0xff] 0.0
          %288 = vst [vmem:[#allocation3 + $0x8] sm:$0xff] 0.0
          %289 = vst [vmem:[#allocation3 + $0x10] sm:$0xff] 0.0
          %290 = vst [vmem:[#allocation3 + $0x18] sm:$0xff] 0.0
        $region52: #{tpu_custom_call.1} parent=39 // pred_fallthru
          _
        %v291 = vld [vmem:[%s246] sm:$0xff]
        %v292 = vld [vmem:[%s246 + $0x8] sm:$0xff]
        %s293 = scalar_lea.vmem %s246, 16 [#allocation4]
        %v294 = vld [vmem:[%s293] sm:$0xff]
        %v295 = vld [vmem:[%s293 + $0x8] sm:$0xff]
        %s296 = scalar_lea.vmem %s246, 32 [#allocation4]
        %v297 = vld [vmem:[%s296] sm:$0xff]
        %v298 = vld [vmem:[%s296 + $0x8] sm:$0xff]
        %s299 = scalar_lea.vmem %s246, 48 [#allocation4]
        %v300 = vld [vmem:[%s299] sm:$0xff]
        %v301 = vld [vmem:[%s299 + $0x8] sm:$0xff]
        %v302 = vld [vmem:[%s2] ss:$8 sm:$0x3]
        %303 = vrot.lane.b32.xlu0 %v291, 17
        %v304 = vpop.permute.xlu0 %303
        %305 = vrot.lane.b32.xlu0 %v292, 17
        %v306 = vpop.permute.xlu0 %305
        %v307 = vlaneseq
        %v308 = vand.u32 %v307, 127
        %vm309 = vcmp.lt.s32.totalorder %v308, 17
        %v310 = vsel %vm309, %v304, %v306
        %v311 = vsel %vm309, %v306, %v304
        %v313 = vlaneseq
        %v314 = vshrl.u32 %v313, 7
        %v315 = vsub.s32 0, %v314
        %v316 = vrot.slane %v302, %v315
        %v317 = vlaneseq
        %v318 = vshrl.u32 %v317, 7
        %v319 = vsub.s32 1, %v318
        %v320 = vrot.slane %v302, %v319
        %v323 = vmul.f32 %v311, %v316
        %v324 = vmul.f32 %v310, %v320
        %325 = vrot.lane.b32.xlu0 %v294, 17
        %v326 = vpop.permute.xlu0 %325
        %327 = vrot.lane.b32.xlu0 %v295, 17
        %v328 = vpop.permute.xlu0 %327
        %v329 = vsel %vm309, %v326, %v328
        %v330 = vsel %vm309, %v328, %v326
        %v331 = vmul.f32 %v330, %v316
        %v332 = vmul.f32 %v329, %v320
        %333 = vrot.lane.b32.xlu0 %v297, 17
        %v334 = vpop.permute.xlu0 %333
        %335 = vrot.lane.b32.xlu0 %v298, 17
        %v336 = vpop.permute.xlu0 %335
        %v337 = vsel %vm309, %v334, %v336
        %v338 = vsel %vm309, %v336, %v334
        %v339 = vmul.f32 %v338, %v316
        %v340 = vmul.f32 %v337, %v320
        %341 = vrot.lane.b32.xlu0 %v300, 17
        %v342 = vpop.permute.xlu0 %341
        %343 = vrot.lane.b32.xlu0 %v301, 17
        %v344 = vpop.permute.xlu0 %343
        %v345 = vsel %vm309, %v342, %v344
        %v346 = vsel %vm309, %v344, %v342
        %v347 = vmul.f32 %v346, %v316
        %v348 = vmul.f32 %v345, %v320
        %s349 = scalar_lea.vmem %s2, 1
        %v350 = vld [vmem:[%s349] ss:$8 sm:$0x3]
        %351 = vrot.lane.b32.xlu0 %v291, 16
        %v352 = vpop.permute.xlu0 %351
        %353 = vrot.lane.b32.xlu0 %v292, 16
        %v354 = vpop.permute.xlu0 %353
        %vm355 = vcmp.lt.s32.totalorder %v308, 16
        %v356 = vsel %vm355, %v352, %v354
        %v357 = vsel %vm355, %v354, %v352
        %v359 = vlaneseq
        %v360 = vshrl.u32 %v359, 7
        %v361 = vsub.s32 0, %v360
        %v362 = vrot.slane %v350, %v361
        %v363 = vlaneseq
        %v364 = vshrl.u32 %v363, 7
        %v365 = vsub.s32 1, %v364
        %v366 = vrot.slane %v350, %v365
        %v369 = vmul.f32 %v357, %v362
        %v370 = vmul.f32 %v356, %v366
        %371 = vrot.lane.b32.xlu0 %v294, 16
        %v372 = vpop.permute.xlu0 %371
        %373 = vrot.lane.b32.xlu0 %v295, 16
        %v374 = vpop.permute.xlu0 %373
        %v375 = vsel %vm355, %v372, %v374
        %v376 = vsel %vm355, %v374, %v372
        %v377 = vmul.f32 %v376, %v362
        %v378 = vmul.f32 %v375, %v366
        %379 = vrot.lane.b32.xlu0 %v297, 16
        %v380 = vpop.permute.xlu0 %379
        %381 = vrot.lane.b32.xlu0 %v298, 16
        %v382 = vpop.permute.xlu0 %381
        %v383 = vsel %vm355, %v380, %v382
        %v384 = vsel %vm355, %v382, %v380
        %v385 = vmul.f32 %v384, %v362
        %v386 = vmul.f32 %v383, %v366
        %387 = vrot.lane.b32.xlu0 %v300, 16
        %v388 = vpop.permute.xlu0 %387
        %389 = vrot.lane.b32.xlu0 %v301, 16
        %v390 = vpop.permute.xlu0 %389
        %v391 = vsel %vm355, %v388, %v390
        %v392 = vsel %vm355, %v390, %v388
        %v393 = vmul.f32 %v392, %v362
        %v394 = vmul.f32 %v391, %v366
        %s395 = scalar_lea.vmem %s2, 2
        %v396 = vld [vmem:[%s395] ss:$8 sm:$0x3]
        %397 = vrot.lane.b32.xlu0 %v291, 15
        %v398 = vpop.permute.xlu0 %397
        %399 = vrot.lane.b32.xlu0 %v292, 15
        %v400 = vpop.permute.xlu0 %399
        %vm401 = vcmp.lt.s32.totalorder %v308, 15
        %v402 = vsel %vm401, %v398, %v400
        %v403 = vsel %vm401, %v400, %v398
        %v405 = vlaneseq
        %v406 = vshrl.u32 %v405, 7
        %v407 = vsub.s32 0, %v406
        %v408 = vrot.slane %v396, %v407
        %v409 = vlaneseq
        %v410 = vshrl.u32 %v409, 7
        %v411 = vsub.s32 1, %v410
        %v412 = vrot.slane %v396, %v411
        %v415 = vmul.f32 %v403, %v408
        %v416 = vmul.f32 %v402, %v412
        %417 = vrot.lane.b32.xlu0 %v294, 15
        %v418 = vpop.permute.xlu0 %417
        %419 = vrot.lane.b32.xlu0 %v295, 15
        %v420 = vpop.permute.xlu0 %419
        %v421 = vsel %vm401, %v418, %v420
        %v422 = vsel %vm401, %v420, %v418
        %v423 = vmul.f32 %v422, %v408
        %v424 = vmul.f32 %v421, %v412
        %425 = vrot.lane.b32.xlu0 %v297, 15
        %v426 = vpop.permute.xlu0 %425
        %427 = vrot.lane.b32.xlu0 %v298, 15
        %v428 = vpop.permute.xlu0 %427
        %v429 = vsel %vm401, %v426, %v428
        %v430 = vsel %vm401, %v428, %v426
        %v431 = vmul.f32 %v430, %v408
        %v432 = vmul.f32 %v429, %v412
        %433 = vrot.lane.b32.xlu0 %v300, 15
        %v434 = vpop.permute.xlu0 %433
        %435 = vrot.lane.b32.xlu0 %v301, 15
        %v436 = vpop.permute.xlu0 %435
        %v437 = vsel %vm401, %v434, %v436
        %v438 = vsel %vm401, %v436, %v434
        %v439 = vmul.f32 %v438, %v408
        %v440 = vmul.f32 %v437, %v412
        %s441 = scalar_lea.vmem %s2, 3
        %v442 = vld [vmem:[%s441] ss:$8 sm:$0x3]
        %443 = vrot.lane.b32.xlu0 %v291, 1
        %v444 = vpop.permute.xlu0 %443
        %445 = vrot.lane.b32.xlu0 %v292, 1
        %v446 = vpop.permute.xlu0 %445
        %vm447 = vcmp.lt.s32.totalorder %v308, 1
        %v448 = vsel %vm447, %v444, %v446
        %v449 = vsel %vm447, %v446, %v444
        %v451 = vlaneseq
        %v452 = vshrl.u32 %v451, 7
        %v453 = vsub.s32 0, %v452
        %v454 = vrot.slane %v442, %v453
        %v455 = vlaneseq
        %v456 = vshrl.u32 %v455, 7
        %v457 = vsub.s32 1, %v456
        %v458 = vrot.slane %v442, %v457
        %v461 = vmul.f32 %v449, %v454
        %v462 = vmul.f32 %v448, %v458
        %463 = vrot.lane.b32.xlu0 %v294, 1
        %v464 = vpop.permute.xlu0 %463
        %465 = vrot.lane.b32.xlu0 %v295, 1
        %v466 = vpop.permute.xlu0 %465
        %v467 = vsel %vm447, %v464, %v466
        %v468 = vsel %vm447, %v466, %v464
        %v469 = vmul.f32 %v468, %v454
        %v470 = vmul.f32 %v467, %v458
        %471 = vrot.lane.b32.xlu0 %v297, 1
        %v472 = vpop.permute.xlu0 %471
        %473 = vrot.lane.b32.xlu0 %v298, 1
        %v474 = vpop.permute.xlu0 %473
        %v475 = vsel %vm447, %v472, %v474
        %v476 = vsel %vm447, %v474, %v472
        %v477 = vmul.f32 %v476, %v454
        %v478 = vmul.f32 %v475, %v458
        %479 = vrot.lane.b32.xlu0 %v300, 1
        %v480 = vpop.permute.xlu0 %479
        %481 = vrot.lane.b32.xlu0 %v301, 1
        %v482 = vpop.permute.xlu0 %481
        %v483 = vsel %vm447, %v480, %v482
        %v484 = vsel %vm447, %v482, %v480
        %v485 = vmul.f32 %v484, %v454
        %v486 = vmul.f32 %v483, %v458
        %s487 = scalar_lea.vmem %s2, 5
        %v488 = vld [vmem:[%s487] ss:$8 sm:$0x3]
        %489 = vrot.lane.b32.xlu0 %v291, 127
        %v490 = vpop.permute.xlu0 %489
        %491 = vrot.lane.b32.xlu0 %v292, 127
        %v492 = vpop.permute.xlu0 %491
        %vm493 = vcmp.lt.s32.totalorder %v308, 127
        %v494 = vsel %vm493, %v490, %v492
        %v495 = vsel %vm493, %v492, %v490
        %v497 = vlaneseq
        %v498 = vshrl.u32 %v497, 7
        %v499 = vsub.s32 0, %v498
        %v500 = vrot.slane %v488, %v499
        %v501 = vlaneseq
        %v502 = vshrl.u32 %v501, 7
        %v503 = vsub.s32 1, %v502
        %v504 = vrot.slane %v488, %v503
        %v507 = vmul.f32 %v494, %v500
        %v508 = vmul.f32 %v495, %v504
        %509 = vrot.lane.b32.xlu0 %v294, 127
        %v510 = vpop.permute.xlu0 %509
        %511 = vrot.lane.b32.xlu0 %v295, 127
        %v512 = vpop.permute.xlu0 %511
        %v513 = vsel %vm493, %v510, %v512
        %v514 = vsel %vm493, %v512, %v510
        %v515 = vmul.f32 %v513, %v500
        %v516 = vmul.f32 %v514, %v504
        %517 = vrot.lane.b32.xlu0 %v297, 127
        %v518 = vpop.permute.xlu0 %517
        %519 = vrot.lane.b32.xlu0 %v298, 127
        %v520 = vpop.permute.xlu0 %519
        %v521 = vsel %vm493, %v518, %v520
        %v522 = vsel %vm493, %v520, %v518
        %v523 = vmul.f32 %v521, %v500
        %v524 = vmul.f32 %v522, %v504
        %525 = vrot.lane.b32.xlu0 %v300, 127
        %v526 = vpop.permute.xlu0 %525
        %527 = vrot.lane.b32.xlu0 %v301, 127
        %v528 = vpop.permute.xlu0 %527
        %v529 = vsel %vm493, %v526, %v528
        %v530 = vsel %vm493, %v528, %v526
        %v531 = vmul.f32 %v529, %v500
        %v532 = vmul.f32 %v530, %v504
        %s533 = scalar_lea.vmem %s2, 6
        %v534 = vld [vmem:[%s533] ss:$8 sm:$0x3]
        %535 = vrot.lane.b32.xlu0 %v291, 113
        %v536 = vpop.permute.xlu0 %535
        %537 = vrot.lane.b32.xlu0 %v292, 113
        %v538 = vpop.permute.xlu0 %537
        %vm539 = vcmp.lt.s32.totalorder %v308, 113
        %v540 = vsel %vm539, %v536, %v538
        %v541 = vsel %vm539, %v538, %v536
        %v543 = vlaneseq
        %v544 = vshrl.u32 %v543, 7
        %v545 = vsub.s32 0, %v544
        %v546 = vrot.slane %v534, %v545
        %v547 = vlaneseq
        %v548 = vshrl.u32 %v547, 7
        %v549 = vsub.s32 1, %v548
        %v550 = vrot.slane %v534, %v549
        %v553 = vmul.f32 %v540, %v546
        %v554 = vmul.f32 %v541, %v550
        %555 = vrot.lane.b32.xlu0 %v294, 113
        %v556 = vpop.permute.xlu0 %555
        %557 = vrot.lane.b32.xlu0 %v295, 113
        %v558 = vpop.permute.xlu0 %557
        %v559 = vsel %vm539, %v556, %v558
        %v560 = vsel %vm539, %v558, %v556
        %v561 = vmul.f32 %v559, %v546
        %v562 = vmul.f32 %v560, %v550
        %563 = vrot.lane.b32.xlu0 %v297, 113
        %v564 = vpop.permute.xlu0 %563
        %565 = vrot.lane.b32.xlu0 %v298, 113
        %v566 = vpop.permute.xlu0 %565
        %v567 = vsel %vm539, %v564, %v566
        %v568 = vsel %vm539, %v566, %v564
        %v569 = vmul.f32 %v567, %v546
        %v570 = vmul.f32 %v568, %v550
        %571 = vrot.lane.b32.xlu0 %v300, 113
        %v572 = vpop.permute.xlu0 %571
        %573 = vrot.lane.b32.xlu0 %v301, 113
        %v574 = vpop.permute.xlu0 %573
        %v575 = vsel %vm539, %v572, %v574
        %v576 = vsel %vm539, %v574, %v572
        %v577 = vmul.f32 %v575, %v546
        %v578 = vmul.f32 %v576, %v550
        %s579 = scalar_lea.vmem %s2, 7
        %v580 = vld [vmem:[%s579] ss:$8 sm:$0x3]
        %581 = vrot.lane.b32.xlu0 %v291, 112
        %v582 = vpop.permute.xlu0 %581
        %583 = vrot.lane.b32.xlu0 %v292, 112
        %v584 = vpop.permute.xlu0 %583
        %vm585 = vcmp.lt.s32.totalorder %v308, 112
        %v586 = vsel %vm585, %v582, %v584
        %v587 = vsel %vm585, %v584, %v582
        %v589 = vlaneseq
        %v590 = vshrl.u32 %v589, 7
        %v591 = vsub.s32 0, %v590
        %v592 = vrot.slane %v580, %v591
        %v593 = vlaneseq
        %v594 = vshrl.u32 %v593, 7
        %v595 = vsub.s32 1, %v594
        %v596 = vrot.slane %v580, %v595
        %v599 = vmul.f32 %v586, %v592
        %v600 = vmul.f32 %v587, %v596
        %601 = vrot.lane.b32.xlu0 %v294, 112
        %v602 = vpop.permute.xlu0 %601
        %603 = vrot.lane.b32.xlu0 %v295, 112
        %v604 = vpop.permute.xlu0 %603
        %v605 = vsel %vm585, %v602, %v604
        %v606 = vsel %vm585, %v604, %v602
        %v607 = vmul.f32 %v605, %v592
        %v608 = vmul.f32 %v606, %v596
        %609 = vrot.lane.b32.xlu0 %v297, 112
        %v610 = vpop.permute.xlu0 %609
        %611 = vrot.lane.b32.xlu0 %v298, 112
        %v612 = vpop.permute.xlu0 %611
        %v613 = vsel %vm585, %v610, %v612
        %v614 = vsel %vm585, %v612, %v610
        %v615 = vmul.f32 %v613, %v592
        %v616 = vmul.f32 %v614, %v596
        %617 = vrot.lane.b32.xlu0 %v300, 112
        %v618 = vpop.permute.xlu0 %617
        %619 = vrot.lane.b32.xlu0 %v301, 112
        %v620 = vpop.permute.xlu0 %619
        %v621 = vsel %vm585, %v618, %v620
        %v622 = vsel %vm585, %v620, %v618
        %v623 = vmul.f32 %v621, %v592
        %v624 = vmul.f32 %v622, %v596
        %s625 = scalar_lea.vmem %s2, 16
        %v626 = vld [vmem:[%s625] ss:$8 sm:$0x3]
        %627 = vrot.lane.b32.xlu0 %v291, 111
        %v628 = vpop.permute.xlu0 %627
        %629 = vrot.lane.b32.xlu0 %v292, 111
        %v630 = vpop.permute.xlu0 %629
        %vm631 = vcmp.lt.s32.totalorder %v308, 111
        %v632 = vsel %vm631, %v628, %v630
        %v633 = vsel %vm631, %v630, %v628
        %v635 = vlaneseq
        %v636 = vshrl.u32 %v635, 7
        %v637 = vsub.s32 0, %v636
        %v638 = vrot.slane %v626, %v637
        %v639 = vlaneseq
        %v640 = vshrl.u32 %v639, 7
        %v641 = vsub.s32 1, %v640
        %v642 = vrot.slane %v626, %v641
        %v645 = vmul.f32 %v632, %v638
        %v646 = vmul.f32 %v633, %v642
        %647 = vrot.lane.b32.xlu0 %v294, 111
        %v648 = vpop.permute.xlu0 %647
        %649 = vrot.lane.b32.xlu0 %v295, 111
        %v650 = vpop.permute.xlu0 %649
        %v651 = vsel %vm631, %v648, %v650
        %v652 = vsel %vm631, %v650, %v648
        %v653 = vmul.f32 %v651, %v638
        %v654 = vmul.f32 %v652, %v642
        %655 = vrot.lane.b32.xlu0 %v297, 111
        %v656 = vpop.permute.xlu0 %655
        %657 = vrot.lane.b32.xlu0 %v298, 111
        %v658 = vpop.permute.xlu0 %657
        %v659 = vsel %vm631, %v656, %v658
        %v660 = vsel %vm631, %v658, %v656
        %v661 = vmul.f32 %v659, %v638
        %v662 = vmul.f32 %v660, %v642
        %663 = vrot.lane.b32.xlu0 %v300, 111
        %v664 = vpop.permute.xlu0 %663
        %665 = vrot.lane.b32.xlu0 %v301, 111
        %v666 = vpop.permute.xlu0 %665
        %v667 = vsel %vm631, %v664, %v666
        %v668 = vsel %vm631, %v666, %v664
        %v669 = vmul.f32 %v667, %v638
        %v670 = vmul.f32 %v668, %v642
        %v671 = vld [vmem:[#allocation7] sm:$0xff]
        %v672 = vld [vmem:[#allocation7 + $0x8] sm:$0xff]
        %v673 = vld [vmem:[#allocation7 + $0x10] sm:$0xff]
        %v674 = vld [vmem:[#allocation7 + $0x18] sm:$0xff]
        %v675 = vld [vmem:[#allocation7 + $0x20] sm:$0xff]
        %v676 = vld [vmem:[#allocation7 + $0x28] sm:$0xff]
        %v677 = vld [vmem:[#allocation7 + $0x30] sm:$0xff]
        %v678 = vld [vmem:[#allocation7 + $0x38] sm:$0xff]
        %v679 = vld [vmem:[#allocation7 + $0x40] sm:$0xff]
        %v680 = vld [vmem:[#allocation7 + $0x48] sm:$0xff]
        %v681 = vld [vmem:[#allocation7 + $0x50] sm:$0xff]
        %v682 = vld [vmem:[#allocation7 + $0x58] sm:$0xff]
        %v683 = vld [vmem:[#allocation7 + $0x60] sm:$0xff]
        %v684 = vld [vmem:[#allocation7 + $0x68] sm:$0xff]
        %v685 = vld [vmem:[#allocation7 + $0x70] sm:$0xff]
        %v686 = vld [vmem:[#allocation7 + $0x78] sm:$0xff]
        %v687 = vld [vmem:[#allocation7 + $0x80] sm:$0xff]
        %v688 = vld [vmem:[#allocation7 + $0x88] sm:$0xff]
        %v689 = vld [vmem:[#allocation7 + $0x90] sm:$0xff]
        %v690 = vld [vmem:[#allocation7 + $0x98] sm:$0xff]
        %v691 = vld [vmem:[#allocation7 + $0xa0] sm:$0xff]
        %v692 = vld [vmem:[#allocation7 + $0xa8] sm:$0xff]
        %v693 = vld [vmem:[#allocation7 + $0xb0] sm:$0xff]
        %v694 = vld [vmem:[#allocation7 + $0xb8] sm:$0xff]
        %v695 = vld [vmem:[%s3] sm:$0xff]
        %v696 = vld [vmem:[%s3 + $0x8] sm:$0xff]
        %v697 = vld [vmem:[%s3 + $0x10] sm:$0xff]
        %v698 = vld [vmem:[%s3 + $0x18] sm:$0xff]
        %v699 = vld [vmem:[%s3 + $0x20] sm:$0xff]
        %v700 = vld [vmem:[%s3 + $0x28] sm:$0xff]
        %v701 = vld [vmem:[%s3 + $0x30] sm:$0xff]
        %v702 = vld [vmem:[%s3 + $0x38] sm:$0xff]
        %704 = vset.pattern.permute.xlu0 0
        %705 = vperm.xlu0 %704, %v695
        %v706 = vpop.permute.xlu0 %705
        %709 = vset.pattern.permute.xlu0 0
        %710 = vperm.xlu0 %709, %v696
        %v711 = vpop.permute.xlu0 %710
        %714 = vset.pattern.permute.xlu0 0
        %715 = vperm.xlu0 %714, %v697
        %v716 = vpop.permute.xlu0 %715
        %719 = vset.pattern.permute.xlu0 0
        %720 = vperm.xlu0 %719, %v698
        %v721 = vpop.permute.xlu0 %720
        %724 = vset.pattern.permute.xlu0 0
        %725 = vperm.xlu0 %724, %v699
        %v726 = vpop.permute.xlu0 %725
        %729 = vset.pattern.permute.xlu0 0
        %730 = vperm.xlu0 %729, %v700
        %v731 = vpop.permute.xlu0 %730
        %734 = vset.pattern.permute.xlu0 0
        %735 = vperm.xlu0 %734, %v701
        %v736 = vpop.permute.xlu0 %735
        %739 = vset.pattern.permute.xlu0 0
        %740 = vperm.xlu0 %739, %v702
        %v741 = vpop.permute.xlu0 %740
        %vm743 = vcmask 261120
        %v745 = vsel %vm743, %v673, 0
        %v748 = vsel %vm743, %v676, 0
        %v751 = vsel %vm743, %v679, 0
        %v754 = vsel %vm743, %v682, 0
        %v757 = vsel %vm743, %v685, 0
        %v760 = vsel %vm743, %v688, 0
        %v763 = vsel %vm743, %v691, 0
        %v766 = vsel %vm743, %v694, 0
        %v768 = vand.u32 %v324, 4294901760
        %769 = vmatprep.subr.mxu0 %v768
        %v770 = vand.u32 %v323, 4294901760
        %771 = vmatpush1.msra.mxu0 %v770
        %v772 = vand.u32 %v332, 4294901760
        %773 = vmatprep.subr.mxu0 %v772
        %v774 = vand.u32 %v331, 4294901760
        %775 = vmatpush1.msra.mxu0 %v774
        %v776 = vand.u32 %v340, 4294901760
        %777 = vmatprep.subr.mxu0 %v776
        %v778 = vand.u32 %v339, 4294901760
        %779 = vmatpush1.msra.mxu0 %v778
        %v780 = vand.u32 %v348, 4294901760
        %781 = vmatprep.subr.mxu0 %v780
        %v782 = vand.u32 %v347, 4294901760
        %783 = vmatpush1.msra.mxu0 %v782
        %v784 = vand.u32 %v370, 4294901760
        %785 = vmatprep.subr.mxu0 %v784
        %v786 = vand.u32 %v369, 4294901760
        %787 = vmatpush1.msra.mxu0 %v786
        %v788 = vand.u32 %v378, 4294901760
        %789 = vmatprep.subr.mxu0 %v788
        %v790 = vand.u32 %v377, 4294901760
        %791 = vmatpush1.msra.mxu0 %v790
        %v792 = vand.u32 %v386, 4294901760
        %793 = vmatprep.subr.mxu0 %v792
        %v794 = vand.u32 %v385, 4294901760
        %795 = vmatpush1.msra.mxu0 %v794
        %v796 = vand.u32 %v394, 4294901760
        %797 = vmatprep.subr.mxu0 %v796
        %v798 = vand.u32 %v393, 4294901760
        %799 = vmatpush1.msra.mxu0 %v798
        %v800 = vand.u32 %v416, 4294901760
        %801 = vmatprep.subr.mxu0 %v800
        %v802 = vand.u32 %v415, 4294901760
        %803 = vmatpush1.msra.mxu0 %v802
        %v804 = vand.u32 %v424, 4294901760
        %805 = vmatprep.subr.mxu0 %v804
        %v806 = vand.u32 %v423, 4294901760
        %807 = vmatpush1.msra.mxu0 %v806
        %v808 = vand.u32 %v432, 4294901760
        %809 = vmatprep.subr.mxu0 %v808
        %v810 = vand.u32 %v431, 4294901760
        %811 = vmatpush1.msra.mxu0 %v810
        %v812 = vand.u32 %v440, 4294901760
        %813 = vmatprep.subr.mxu0 %v812
        %v814 = vand.u32 %v439, 4294901760
        %815 = vmatpush1.msra.mxu0 %v814
        %v816 = vand.u32 %v462, 4294901760
        %817 = vmatprep.subr.mxu0 %v816
        %v818 = vand.u32 %v461, 4294901760
        %819 = vmatpush1.msra.mxu0 %v818
        %v820 = vand.u32 %v470, 4294901760
        %821 = vmatprep.subr.mxu0 %v820
        %v822 = vand.u32 %v469, 4294901760
        %823 = vmatpush1.msra.mxu0 %v822
        %v824 = vand.u32 %v478, 4294901760
        %825 = vmatprep.subr.mxu0 %v824
        %v826 = vand.u32 %v477, 4294901760
        %827 = vmatpush1.msra.mxu0 %v826
        %v828 = vand.u32 %v486, 4294901760
        %829 = vmatprep.subr.mxu0 %v828
        %v830 = vand.u32 %v485, 4294901760
        %831 = vmatpush1.msra.mxu0 %v830
        %v832 = vand.u32 %v292, 4294901760
        %833 = vmatprep.subr.mxu0 %v832
        %v834 = vand.u32 %v291, 4294901760
        %835 = vmatpush1.msra.mxu0 %v834
        %v836 = vand.u32 %v295, 4294901760
        %837 = vmatprep.subr.mxu0 %v836
        %v838 = vand.u32 %v294, 4294901760
        %839 = vmatpush1.msra.mxu0 %v838
        %v840 = vand.u32 %v298, 4294901760
        %841 = vmatprep.subr.mxu0 %v840
        %v842 = vand.u32 %v297, 4294901760
        %843 = vmatpush1.msra.mxu0 %v842
        %v844 = vand.u32 %v301, 4294901760
        %845 = vmatprep.subr.mxu0 %v844
        %v846 = vand.u32 %v300, 4294901760
        %847 = vmatpush1.msra.mxu0 %v846
        %v848 = vand.u32 %v508, 4294901760
        %849 = vmatprep.subr.mxu0 %v848
        %v850 = vand.u32 %v507, 4294901760
        %851 = vmatpush1.msra.mxu0 %v850
        %v852 = vand.u32 %v516, 4294901760
        %853 = vmatprep.subr.mxu0 %v852
        %v854 = vand.u32 %v515, 4294901760
        %855 = vmatpush1.msra.mxu0 %v854
        %v856 = vand.u32 %v524, 4294901760
        %857 = vmatprep.subr.mxu0 %v856
        %v858 = vand.u32 %v523, 4294901760
        %859 = vmatpush1.msra.mxu0 %v858
        %v860 = vand.u32 %v532, 4294901760
        %861 = vmatprep.subr.mxu0 %v860
        %v862 = vand.u32 %v531, 4294901760
        %863 = vmatpush1.msra.mxu0 %v862
        %v864 = vand.u32 %v554, 4294901760
        %865 = vmatprep.subr.mxu0 %v864
        %v866 = vand.u32 %v553, 4294901760
        %867 = vmatpush1.msra.mxu0 %v866
        %v868 = vand.u32 %v562, 4294901760
        %869 = vmatprep.subr.mxu0 %v868
        %v870 = vand.u32 %v561, 4294901760
        %871 = vmatpush1.msra.mxu0 %v870
        %v872 = vand.u32 %v570, 4294901760
        %873 = vmatprep.subr.mxu0 %v872
        %v874 = vand.u32 %v569, 4294901760
        %875 = vmatpush1.msra.mxu0 %v874
        %v876 = vand.u32 %v578, 4294901760
        %877 = vmatprep.subr.mxu0 %v876
        %v878 = vand.u32 %v577, 4294901760
        %879 = vmatpush1.msra.mxu0 %v878
        %v880 = vand.u32 %v600, 4294901760
        %881 = vmatprep.subr.mxu0 %v880
        %v882 = vand.u32 %v599, 4294901760
        %883 = vmatpush1.msra.mxu0 %v882
        %v884 = vand.u32 %v608, 4294901760
        %885 = vmatprep.subr.mxu0 %v884
        %v886 = vand.u32 %v607, 4294901760
        %887 = vmatpush1.msra.mxu0 %v886
        %v888 = vand.u32 %v616, 4294901760
        %889 = vmatprep.subr.mxu0 %v888
        %v890 = vand.u32 %v615, 4294901760
        %891 = vmatpush1.msra.mxu0 %v890
        %v892 = vand.u32 %v624, 4294901760
        %893 = vmatprep.subr.mxu0 %v892
        %v894 = vand.u32 %v623, 4294901760
        %895 = vmatpush1.msra.mxu0 %v894
        %v896 = vand.u32 %v672, 4294901760
        %v897 = vsub.f32 %v672, %v896
        %v898 = vand.u32 %v897, 4294901760
        %v899 = vsub.f32 %v897, %v898
        %v900 = vand.u32 %v899, 4294901760
        %901 = vmatprep.mubr.f32.mxu0 %v900
        %v902 = vand.u32 %v671, 4294901760
        %v903 = vsub.f32 %v671, %v902
        %v904 = vand.u32 %v903, 4294901760
        %v905 = vsub.f32 %v903, %v904
        %v906 = vand.u32 %v905, 4294901760
        %907 = vmatmul.mubr.f32.gmra.mrb[0].mxu0 %v906
        %v908 = vpop.f32.mrb[0].mxu0
        %v909 = vadd.f32 %v706, %v908
        %v910 = vpop.f32.mrb[0].mxu0
        %v911 = vadd.f32 %v706, %v910
        %v912 = vand.u32 %v675, 4294901760
        %v913 = vsub.f32 %v675, %v912
        %v914 = vand.u32 %v913, 4294901760
        %v915 = vsub.f32 %v913, %v914
        %v916 = vand.u32 %v915, 4294901760
        %917 = vmatprep.mubr.f32.mxu0 %v916
        %v918 = vand.u32 %v674, 4294901760
        %v919 = vsub.f32 %v674, %v918
        %v920 = vand.u32 %v919, 4294901760
        %v921 = vsub.f32 %v919, %v920
        %v922 = vand.u32 %v921, 4294901760
        %923 = vmatmul.mubr.f32.gmra.mrb[0].mxu0 %v922
        %v924 = vpop.f32.mrb[0].mxu0
        %v925 = vadd.f32 %v711, %v924
        %v926 = vpop.f32.mrb[0].mxu0
        %v927 = vadd.f32 %v711, %v926
        %v928 = vand.u32 %v678, 4294901760
        %v929 = vsub.f32 %v678, %v928
        %v930 = vand.u32 %v929, 4294901760
        %v931 = vsub.f32 %v929, %v930
        %v932 = vand.u32 %v931, 4294901760
        %933 = vmatprep.mubr.f32.mxu0 %v932
        %v934 = vand.u32 %v677, 4294901760
        %v935 = vsub.f32 %v677, %v934
        %v936 = vand.u32 %v935, 4294901760
        %v937 = vsub.f32 %v935, %v936
        %v938 = vand.u32 %v937, 4294901760
        %939 = vmatmul.mubr.f32.gmra.mrb[0].mxu0 %v938
        %v940 = vpop.f32.mrb[0].mxu0
        %v941 = vadd.f32 %v716, %v940
        %v942 = vpop.f32.mrb[0].mxu0
        %v943 = vadd.f32 %v716, %v942
        %v944 = vand.u32 %v681, 4294901760
        %v945 = vsub.f32 %v681, %v944
        %v946 = vand.u32 %v945, 4294901760
        %v947 = vsub.f32 %v945, %v946
        %v948 = vand.u32 %v947, 4294901760
        %949 = vmatprep.mubr.f32.mxu0 %v948
        %v950 = vand.u32 %v680, 4294901760
        %v951 = vsub.f32 %v680, %v950
        %v952 = vand.u32 %v951, 4294901760
        %v953 = vsub.f32 %v951, %v952
        %v954 = vand.u32 %v953, 4294901760
        %955 = vmatmul.mubr.f32.gmra.mrb[0].mxu0 %v954
        %v956 = vpop.f32.mrb[0].mxu0
        %v957 = vadd.f32 %v721, %v956
        %v958 = vpop.f32.mrb[0].mxu0
        %v959 = vadd.f32 %v721, %v958
        %v960 = vand.u32 %v684, 4294901760
        %v961 = vsub.f32 %v684, %v960
        %v962 = vand.u32 %v961, 4294901760
        %v963 = vsub.f32 %v961, %v962
        %v964 = vand.u32 %v963, 4294901760
        %965 = vmatprep.mubr.f32.mxu0 %v964
        %v966 = vand.u32 %v683, 4294901760
        %v967 = vsub.f32 %v683, %v966
        %v968 = vand.u32 %v967, 4294901760
        %v969 = vsub.f32 %v967, %v968
        %v970 = vand.u32 %v969, 4294901760
        %971 = vmatmul.mubr.f32.gmra.mrb[0].mxu0 %v970
        %v972 = vpop.f32.mrb[0].mxu0
        %v973 = vadd.f32 %v726, %v972
        %v974 = vpop.f32.mrb[0].mxu0
        %v975 = vadd.f32 %v726, %v974
        %v976 = vand.u32 %v687, 4294901760
        %v977 = vsub.f32 %v687, %v976
        %v978 = vand.u32 %v977, 4294901760
        %v979 = vsub.f32 %v977, %v978
        %v980 = vand.u32 %v979, 4294901760
        %981 = vmatprep.mubr.f32.mxu0 %v980
        %v982 = vand.u32 %v686, 4294901760
        %v983 = vsub.f32 %v686, %v982
        %v984 = vand.u32 %v983, 4294901760
        %v985 = vsub.f32 %v983, %v984
        %v986 = vand.u32 %v985, 4294901760
        %987 = vmatmul.mubr.f32.gmra.mrb[0].mxu0 %v986
        %v988 = vpop.f32.mrb[0].mxu0
        %v989 = vadd.f32 %v731, %v988
        %v990 = vpop.f32.mrb[0].mxu0
        %v991 = vadd.f32 %v731, %v990
        %v992 = vand.u32 %v690, 4294901760
        %v993 = vsub.f32 %v690, %v992
        %v994 = vand.u32 %v993, 4294901760
        %v995 = vsub.f32 %v993, %v994
        %v996 = vand.u32 %v995, 4294901760
        %997 = vmatprep.mubr.f32.mxu0 %v996
        %v998 = vand.u32 %v689, 4294901760
        %v999 = vsub.f32 %v689, %v998
        %v1000 = vand.u32 %v999, 4294901760
        %v1001 = vsub.f32 %v999, %v1000
        %v1002 = vand.u32 %v1001, 4294901760
        %1003 = vmatmul.mubr.f32.gmra.mrb[0].mxu0 %v1002
        %v1004 = vpop.f32.mrb[0].mxu0
        %v1005 = vadd.f32 %v736, %v1004
        %v1006 = vpop.f32.mrb[0].mxu0
        %v1007 = vadd.f32 %v736, %v1006
        %v1008 = vand.u32 %v693, 4294901760
        %v1009 = vsub.f32 %v693, %v1008
        %v1010 = vand.u32 %v1009, 4294901760
        %v1011 = vsub.f32 %v1009, %v1010
        %v1012 = vand.u32 %v1011, 4294901760
        %1013 = vmatprep.mubr.f32.mxu0 %v1012
        %v1014 = vand.u32 %v692, 4294901760
        %v1015 = vsub.f32 %v692, %v1014
        %v1016 = vand.u32 %v1015, 4294901760
        %v1017 = vsub.f32 %v1015, %v1016
        %v1018 = vand.u32 %v1017, 4294901760
        %1019 = vmatmul.mubr.f32.gmra.mrb[0].mxu0 %v1018
        %v1020 = vpop.f32.mrb[0].mxu0
        %v1021 = vadd.f32 %v741, %v1020
        %v1022 = vpop.f32.mrb[0].mxu0
        %v1023 = vadd.f32 %v741, %v1022
        %1024 = vdwg.mxu0
        %v1025 = vand.u32 %v324, 4294901760
        %v1026 = vsub.f32 %v324, %v1025
        %v1027 = vand.u32 %v1026, 4294901760
        %v1028 = vsub.f32 %v1026, %v1027
        %v1029 = vand.u32 %v1028, 4294901760
        %1030 = vmatprep.subr.mxu0 %v1029
        %v1031 = vand.u32 %v323, 4294901760
        %v1032 = vsub.f32 %v323, %v1031
        %v1033 = vand.u32 %v1032, 4294901760
        %v1034 = vsub.f32 %v1032, %v1033
        %v1035 = vand.u32 %v1034, 4294901760
        %1036 = vmatpush1.msra.mxu0 %v1035
        %v1037 = vand.u32 %v332, 4294901760
        %v1038 = vsub.f32 %v332, %v1037
        %v1039 = vand.u32 %v1038, 4294901760
        %v1040 = vsub.f32 %v1038, %v1039
        %v1041 = vand.u32 %v1040, 4294901760
        %1042 = vmatprep.subr.mxu0 %v1041
        %v1043 = vand.u32 %v331, 4294901760
        %v1044 = vsub.f32 %v331, %v1043
        %v1045 = vand.u32 %v1044, 4294901760
        %v1046 = vsub.f32 %v1044, %v1045
        %v1047 = vand.u32 %v1046, 4294901760
        %1048 = vmatpush1.msra.mxu0 %v1047
        %v1049 = vand.u32 %v340, 4294901760
        %v1050 = vsub.f32 %v340, %v1049
        %v1051 = vand.u32 %v1050, 4294901760
        %v1052 = vsub.f32 %v1050, %v1051
        %v1053 = vand.u32 %v1052, 4294901760
        %1054 = vmatprep.subr.mxu0 %v1053
        %v1055 = vand.u32 %v339, 4294901760
        %v1056 = vsub.f32 %v339, %v1055
        %v1057 = vand.u32 %v1056, 4294901760
        %v1058 = vsub.f32 %v1056, %v1057
        %v1059 = vand.u32 %v1058, 4294901760
        %1060 = vmatpush1.msra.mxu0 %v1059
        %v1061 = vand.u32 %v348, 4294901760
        %v1062 = vsub.f32 %v348, %v1061
        %v1063 = vand.u32 %v1062, 4294901760
        %v1064 = vsub.f32 %v1062, %v1063
        %v1065 = vand.u32 %v1064, 4294901760
        %1066 = vmatprep.subr.mxu0 %v1065
        %v1067 = vand.u32 %v347, 4294901760
        %v1068 = vsub.f32 %v347, %v1067
        %v1069 = vand.u32 %v1068, 4294901760
        %v1070 = vsub.f32 %v1068, %v1069
        %v1071 = vand.u32 %v1070, 4294901760
        %1072 = vmatpush1.msra.mxu0 %v1071
        %v1073 = vand.u32 %v370, 4294901760
        %v1074 = vsub.f32 %v370, %v1073
        %v1075 = vand.u32 %v1074, 4294901760
        %v1076 = vsub.f32 %v1074, %v1075
        %v1077 = vand.u32 %v1076, 4294901760
        %1078 = vmatprep.subr.mxu0 %v1077
        %v1079 = vand.u32 %v369, 4294901760
        %v1080 = vsub.f32 %v369, %v1079
        %v1081 = vand.u32 %v1080, 4294901760
        %v1082 = vsub.f32 %v1080, %v1081
        %v1083 = vand.u32 %v1082, 4294901760
        %1084 = vmatpush1.msra.mxu0 %v1083
        %v1085 = vand.u32 %v378, 4294901760
        %v1086 = vsub.f32 %v378, %v1085
        %v1087 = vand.u32 %v1086, 4294901760
        %v1088 = vsub.f32 %v1086, %v1087
        %v1089 = vand.u32 %v1088, 4294901760
        %1090 = vmatprep.subr.mxu0 %v1089
        %v1091 = vand.u32 %v377, 4294901760
        %v1092 = vsub.f32 %v377, %v1091
        %v1093 = vand.u32 %v1092, 4294901760
        %v1094 = vsub.f32 %v1092, %v1093
        %v1095 = vand.u32 %v1094, 4294901760
        %1096 = vmatpush1.msra.mxu0 %v1095
        %v1097 = vand.u32 %v386, 4294901760
        %v1098 = vsub.f32 %v386, %v1097
        %v1099 = vand.u32 %v1098, 4294901760
        %v1100 = vsub.f32 %v1098, %v1099
        %v1101 = vand.u32 %v1100, 4294901760
        %1102 = vmatprep.subr.mxu0 %v1101
        %v1103 = vand.u32 %v385, 4294901760
        %v1104 = vsub.f32 %v385, %v1103
        %v1105 = vand.u32 %v1104, 4294901760
        %v1106 = vsub.f32 %v1104, %v1105
        %v1107 = vand.u32 %v1106, 4294901760
        %1108 = vmatpush1.msra.mxu0 %v1107
        %v1109 = vand.u32 %v394, 4294901760
        %v1110 = vsub.f32 %v394, %v1109
        %v1111 = vand.u32 %v1110, 4294901760
        %v1112 = vsub.f32 %v1110, %v1111
        %v1113 = vand.u32 %v1112, 4294901760
        %1114 = vmatprep.subr.mxu0 %v1113
        %v1115 = vand.u32 %v393, 4294901760
        %v1116 = vsub.f32 %v393, %v1115
        %v1117 = vand.u32 %v1116, 4294901760
        %v1118 = vsub.f32 %v1116, %v1117
        %v1119 = vand.u32 %v1118, 4294901760
        %1120 = vmatpush1.msra.mxu0 %v1119
        %v1121 = vand.u32 %v416, 4294901760
        %v1122 = vsub.f32 %v416, %v1121
        %v1123 = vand.u32 %v1122, 4294901760
        %v1124 = vsub.f32 %v1122, %v1123
        %v1125 = vand.u32 %v1124, 4294901760
        %1126 = vmatprep.subr.mxu0 %v1125
        %v1127 = vand.u32 %v415, 4294901760
        %v1128 = vsub.f32 %v415, %v1127
        %v1129 = vand.u32 %v1128, 4294901760
        %v1130 = vsub.f32 %v1128, %v1129
        %v1131 = vand.u32 %v1130, 4294901760
        %1132 = vmatpush1.msra.mxu0 %v1131
        %v1133 = vand.u32 %v424, 4294901760
        %v1134 = vsub.f32 %v424, %v1133
        %v1135 = vand.u32 %v1134, 4294901760
        %v1136 = vsub.f32 %v1134, %v1135
        %v1137 = vand.u32 %v1136, 4294901760
        %1138 = vmatprep.subr.mxu0 %v1137
        %v1139 = vand.u32 %v423, 4294901760
        %v1140 = vsub.f32 %v423, %v1139
        %v1141 = vand.u32 %v1140, 4294901760
        %v1142 = vsub.f32 %v1140, %v1141
        %v1143 = vand.u32 %v1142, 4294901760
        %1144 = vmatpush1.msra.mxu0 %v1143
        %v1145 = vand.u32 %v432, 4294901760
        %v1146 = vsub.f32 %v432, %v1145
        %v1147 = vand.u32 %v1146, 4294901760
        %v1148 = vsub.f32 %v1146, %v1147
        %v1149 = vand.u32 %v1148, 4294901760
        %1150 = vmatprep.subr.mxu0 %v1149
        %v1151 = vand.u32 %v431, 4294901760
        %v1152 = vsub.f32 %v431, %v1151
        %v1153 = vand.u32 %v1152, 4294901760
        %v1154 = vsub.f32 %v1152, %v1153
        %v1155 = vand.u32 %v1154, 4294901760
        %1156 = vmatpush1.msra.mxu0 %v1155
        %v1157 = vand.u32 %v440, 4294901760
        %v1158 = vsub.f32 %v440, %v1157
        %v1159 = vand.u32 %v1158, 4294901760
        %v1160 = vsub.f32 %v1158, %v1159
        %v1161 = vand.u32 %v1160, 4294901760
        %1162 = vmatprep.subr.mxu0 %v1161
        %v1163 = vand.u32 %v439, 4294901760
        %v1164 = vsub.f32 %v439, %v1163
        %v1165 = vand.u32 %v1164, 4294901760
        %v1166 = vsub.f32 %v1164, %v1165
        %v1167 = vand.u32 %v1166, 4294901760
        %1168 = vmatpush1.msra.mxu0 %v1167
        %v1169 = vand.u32 %v462, 4294901760
        %v1170 = vsub.f32 %v462, %v1169
        %v1171 = vand.u32 %v1170, 4294901760
        %v1172 = vsub.f32 %v1170, %v1171
        %v1173 = vand.u32 %v1172, 4294901760
        %1174 = vmatprep.subr.mxu0 %v1173
        %v1175 = vand.u32 %v461, 4294901760
        %v1176 = vsub.f32 %v461, %v1175
        %v1177 = vand.u32 %v1176, 4294901760
        %v1178 = vsub.f32 %v1176, %v1177
        %v1179 = vand.u32 %v1178, 4294901760
        %1180 = vmatpush1.msra.mxu0 %v1179
        %v1181 = vand.u32 %v470, 4294901760
        %v1182 = vsub.f32 %v470, %v1181
        %v1183 = vand.u32 %v1182, 4294901760
        %v1184 = vsub.f32 %v1182, %v1183
        %v1185 = vand.u32 %v1184, 4294901760
        %1186 = vmatprep.subr.mxu0 %v1185
        %v1187 = vand.u32 %v469, 4294901760
        %v1188 = vsub.f32 %v469, %v1187
        %v1189 = vand.u32 %v1188, 4294901760
        %v1190 = vsub.f32 %v1188, %v1189
        %v1191 = vand.u32 %v1190, 4294901760
        %1192 = vmatpush1.msra.mxu0 %v1191
        %v1193 = vand.u32 %v478, 4294901760
        %v1194 = vsub.f32 %v478, %v1193
        %v1195 = vand.u32 %v1194, 4294901760
        %v1196 = vsub.f32 %v1194, %v1195
        %v1197 = vand.u32 %v1196, 4294901760
        %1198 = vmatprep.subr.mxu0 %v1197
        %v1199 = vand.u32 %v477, 4294901760
        %v1200 = vsub.f32 %v477, %v1199
        %v1201 = vand.u32 %v1200, 4294901760
        %v1202 = vsub.f32 %v1200, %v1201
        %v1203 = vand.u32 %v1202, 4294901760
        %1204 = vmatpush1.msra.mxu0 %v1203
        %v1205 = vand.u32 %v486, 4294901760
        %v1206 = vsub.f32 %v486, %v1205
        %v1207 = vand.u32 %v1206, 4294901760
        %v1208 = vsub.f32 %v1206, %v1207
        %v1209 = vand.u32 %v1208, 4294901760
        %1210 = vmatprep.subr.mxu0 %v1209
        %v1211 = vand.u32 %v485, 4294901760
        %v1212 = vsub.f32 %v485, %v1211
        %v1213 = vand.u32 %v1212, 4294901760
        %v1214 = vsub.f32 %v1212, %v1213
        %v1215 = vand.u32 %v1214, 4294901760
        %1216 = vmatpush1.msra.mxu0 %v1215
        %v1217 = vand.u32 %v292, 4294901760
        %v1218 = vsub.f32 %v292, %v1217
        %v1219 = vand.u32 %v1218, 4294901760
        %v1220 = vsub.f32 %v1218, %v1219
        %v1221 = vand.u32 %v1220, 4294901760
        %1222 = vmatprep.subr.mxu0 %v1221
        %v1223 = vand.u32 %v291, 4294901760
        %v1224 = vsub.f32 %v291, %v1223
        %v1225 = vand.u32 %v1224, 4294901760
        %v1226 = vsub.f32 %v1224, %v1225
        %v1227 = vand.u32 %v1226, 4294901760
        %1228 = vmatpush1.msra.mxu0 %v1227
        %v1229 = vand.u32 %v295, 4294901760
        %v1230 = vsub.f32 %v295, %v1229
        %v1231 = vand.u32 %v1230, 4294901760
        %v1232 = vsub.f32 %v1230, %v1231
        %v1233 = vand.u32 %v1232, 4294901760
        %1234 = vmatprep.subr.mxu0 %v1233
        %v1235 = vand.u32 %v294, 4294901760
        %v1236 = vsub.f32 %v294, %v1235
        %v1237 = vand.u32 %v1236, 4294901760
        %v1238 = vsub.f32 %v1236, %v1237
        %v1239 = vand.u32 %v1238, 4294901760
        %1240 = vmatpush1.msra.mxu0 %v1239
        %v1241 = vand.u32 %v298, 4294901760
        %v1242 = vsub.f32 %v298, %v1241
        %v1243 = vand.u32 %v1242, 4294901760
        %v1244 = vsub.f32 %v1242, %v1243
        %v1245 = vand.u32 %v1244, 4294901760
        %1246 = vmatprep.subr.mxu0 %v1245
        %v1247 = vand.u32 %v297, 4294901760
        %v1248 = vsub.f32 %v297, %v1247
        %v1249 = vand.u32 %v1248, 4294901760
        %v1250 = vsub.f32 %v1248, %v1249
        %v1251 = vand.u32 %v1250, 4294901760
        %1252 = vmatpush1.msra.mxu0 %v1251
        %v1253 = vand.u32 %v301, 4294901760
        %v1254 = vsub.f32 %v301, %v1253
        %v1255 = vand.u32 %v1254, 4294901760
        %v1256 = vsub.f32 %v1254, %v1255
        %v1257 = vand.u32 %v1256, 4294901760
        %1258 = vmatprep.subr.mxu0 %v1257
        %v1259 = vand.u32 %v300, 4294901760
        %v1260 = vsub.f32 %v300, %v1259
        %v1261 = vand.u32 %v1260, 4294901760
        %v1262 = vsub.f32 %v1260, %v1261
        %v1263 = vand.u32 %v1262, 4294901760
        %1264 = vmatpush1.msra.mxu0 %v1263
        %v1265 = vand.u32 %v508, 4294901760
        %v1266 = vsub.f32 %v508, %v1265
        %v1267 = vand.u32 %v1266, 4294901760
        %v1268 = vsub.f32 %v1266, %v1267
        %v1269 = vand.u32 %v1268, 4294901760
        %1270 = vmatprep.subr.mxu0 %v1269
        %v1271 = vand.u32 %v507, 4294901760
        %v1272 = vsub.f32 %v507, %v1271
        %v1273 = vand.u32 %v1272, 4294901760
        %v1274 = vsub.f32 %v1272, %v1273
        %v1275 = vand.u32 %v1274, 4294901760
        %1276 = vmatpush1.msra.mxu0 %v1275
        %v1277 = vand.u32 %v516, 4294901760
        %v1278 = vsub.f32 %v516, %v1277
        %v1279 = vand.u32 %v1278, 4294901760
        %v1280 = vsub.f32 %v1278, %v1279
        %v1281 = vand.u32 %v1280, 4294901760
        %1282 = vmatprep.subr.mxu0 %v1281
        %v1283 = vand.u32 %v515, 4294901760
        %v1284 = vsub.f32 %v515, %v1283
        %v1285 = vand.u32 %v1284, 4294901760
        %v1286 = vsub.f32 %v1284, %v1285
        %v1287 = vand.u32 %v1286, 4294901760
        %1288 = vmatpush1.msra.mxu0 %v1287
        %v1289 = vand.u32 %v524, 4294901760
        %v1290 = vsub.f32 %v524, %v1289
        %v1291 = vand.u32 %v1290, 4294901760
        %v1292 = vsub.f32 %v1290, %v1291
        %v1293 = vand.u32 %v1292, 4294901760
        %1294 = vmatprep.subr.mxu0 %v1293
        %v1295 = vand.u32 %v523, 4294901760
        %v1296 = vsub.f32 %v523, %v1295
        %v1297 = vand.u32 %v1296, 4294901760
        %v1298 = vsub.f32 %v1296, %v1297
        %v1299 = vand.u32 %v1298, 4294901760
        %1300 = vmatpush1.msra.mxu0 %v1299
        %v1301 = vand.u32 %v532, 4294901760
        %v1302 = vsub.f32 %v532, %v1301
        %v1303 = vand.u32 %v1302, 4294901760
        %v1304 = vsub.f32 %v1302, %v1303
        %v1305 = vand.u32 %v1304, 4294901760
        %1306 = vmatprep.subr.mxu0 %v1305
        %v1307 = vand.u32 %v531, 4294901760
        %v1308 = vsub.f32 %v531, %v1307
        %v1309 = vand.u32 %v1308, 4294901760
        %v1310 = vsub.f32 %v1308, %v1309
        %v1311 = vand.u32 %v1310, 4294901760
        %1312 = vmatpush1.msra.mxu0 %v1311
        %v1313 = vand.u32 %v554, 4294901760
        %v1314 = vsub.f32 %v554, %v1313
        %v1315 = vand.u32 %v1314, 4294901760
        %v1316 = vsub.f32 %v1314, %v1315
        %v1317 = vand.u32 %v1316, 4294901760
        %1318 = vmatprep.subr.mxu0 %v1317
        %v1319 = vand.u32 %v553, 4294901760
        %v1320 = vsub.f32 %v553, %v1319
        %v1321 = vand.u32 %v1320, 4294901760
        %v1322 = vsub.f32 %v1320, %v1321
        %v1323 = vand.u32 %v1322, 4294901760
        %1324 = vmatpush1.msra.mxu0 %v1323
        %v1325 = vand.u32 %v562, 4294901760
        %v1326 = vsub.f32 %v562, %v1325
        %v1327 = vand.u32 %v1326, 4294901760
        %v1328 = vsub.f32 %v1326, %v1327
        %v1329 = vand.u32 %v1328, 4294901760
        %1330 = vmatprep.subr.mxu0 %v1329
        %v1331 = vand.u32 %v561, 4294901760
        %v1332 = vsub.f32 %v561, %v1331
        %v1333 = vand.u32 %v1332, 4294901760
        %v1334 = vsub.f32 %v1332, %v1333
        %v1335 = vand.u32 %v1334, 4294901760
        %1336 = vmatpush1.msra.mxu0 %v1335
        %v1337 = vand.u32 %v570, 4294901760
        %v1338 = vsub.f32 %v570, %v1337
        %v1339 = vand.u32 %v1338, 4294901760
        %v1340 = vsub.f32 %v1338, %v1339
        %v1341 = vand.u32 %v1340, 4294901760
        %1342 = vmatprep.subr.mxu0 %v1341
        %v1343 = vand.u32 %v569, 4294901760
        %v1344 = vsub.f32 %v569, %v1343
        %v1345 = vand.u32 %v1344, 4294901760
        %v1346 = vsub.f32 %v1344, %v1345
        %v1347 = vand.u32 %v1346, 4294901760
        %1348 = vmatpush1.msra.mxu0 %v1347
        %v1349 = vand.u32 %v578, 4294901760
        %v1350 = vsub.f32 %v578, %v1349
        %v1351 = vand.u32 %v1350, 4294901760
        %v1352 = vsub.f32 %v1350, %v1351
        %v1353 = vand.u32 %v1352, 4294901760
        %1354 = vmatprep.subr.mxu0 %v1353
        %v1355 = vand.u32 %v577, 4294901760
        %v1356 = vsub.f32 %v577, %v1355
        %v1357 = vand.u32 %v1356, 4294901760
        %v1358 = vsub.f32 %v1356, %v1357
        %v1359 = vand.u32 %v1358, 4294901760
        %1360 = vmatpush1.msra.mxu0 %v1359
        %v1361 = vand.u32 %v600, 4294901760
        %v1362 = vsub.f32 %v600, %v1361
        %v1363 = vand.u32 %v1362, 4294901760
        %v1364 = vsub.f32 %v1362, %v1363
        %v1365 = vand.u32 %v1364, 4294901760
        %1366 = vmatprep.subr.mxu0 %v1365
        %v1367 = vand.u32 %v599, 4294901760
        %v1368 = vsub.f32 %v599, %v1367
        %v1369 = vand.u32 %v1368, 4294901760
        %v1370 = vsub.f32 %v1368, %v1369
        %v1371 = vand.u32 %v1370, 4294901760
        %1372 = vmatpush1.msra.mxu0 %v1371
        %v1373 = vand.u32 %v608, 4294901760
        %v1374 = vsub.f32 %v608, %v1373
        %v1375 = vand.u32 %v1374, 4294901760
        %v1376 = vsub.f32 %v1374, %v1375
        %v1377 = vand.u32 %v1376, 4294901760
        %1378 = vmatprep.subr.mxu0 %v1377
        %v1379 = vand.u32 %v607, 4294901760
        %v1380 = vsub.f32 %v607, %v1379
        %v1381 = vand.u32 %v1380, 4294901760
        %v1382 = vsub.f32 %v1380, %v1381
        %v1383 = vand.u32 %v1382, 4294901760
        %1384 = vmatpush1.msra.mxu0 %v1383
        %v1385 = vand.u32 %v616, 4294901760
        %v1386 = vsub.f32 %v616, %v1385
        %v1387 = vand.u32 %v1386, 4294901760
        %v1388 = vsub.f32 %v1386, %v1387
        %v1389 = vand.u32 %v1388, 4294901760
        %1390 = vmatprep.subr.mxu0 %v1389
        %v1391 = vand.u32 %v615, 4294901760
        %v1392 = vsub.f32 %v615, %v1391
        %v1393 = vand.u32 %v1392, 4294901760
        %v1394 = vsub.f32 %v1392, %v1393
        %v1395 = vand.u32 %v1394, 4294901760
        %1396 = vmatpush1.msra.mxu0 %v1395
        %v1397 = vand.u32 %v624, 4294901760
        %v1398 = vsub.f32 %v624, %v1397
        %v1399 = vand.u32 %v1398, 4294901760
        %v1400 = vsub.f32 %v1398, %v1399
        %v1401 = vand.u32 %v1400, 4294901760
        %1402 = vmatprep.subr.mxu0 %v1401
        %v1403 = vand.u32 %v623, 4294901760
        %v1404 = vsub.f32 %v623, %v1403
        %v1405 = vand.u32 %v1404, 4294901760
        %v1406 = vsub.f32 %v1404, %v1405
        %v1407 = vand.u32 %v1406, 4294901760
        %1408 = vmatpush1.msra.mxu0 %v1407
        %v1409 = vand.u32 %v672, 4294901760
        %1410 = vmatprep.mubr.f32.mxu0 %v1409
        %v1411 = vand.u32 %v671, 4294901760
        %1412 = vmatmul.mubr.f32.gmra.mrb[0].mxu0 %v1411
        %v1413 = vpop.f32.mrb[0].mxu0
        %v1414 = vadd.f32 %v909, %v1413
        %v1415 = vpop.f32.mrb[0].mxu0
        %v1416 = vadd.f32 %v911, %v1415
        %v1417 = vand.u32 %v675, 4294901760
        %1418 = vmatprep.mubr.f32.mxu0 %v1417
        %v1419 = vand.u32 %v674, 4294901760
        %1420 = vmatmul.mubr.f32.gmra.mrb[0].mxu0 %v1419
        %v1421 = vpop.f32.mrb[0].mxu0
        %v1422 = vadd.f32 %v925, %v1421
        %v1423 = vpop.f32.mrb[0].mxu0
        %v1424 = vadd.f32 %v927, %v1423
        %v1425 = vand.u32 %v678, 4294901760
        %1426 = vmatprep.mubr.f32.mxu0 %v1425
        %v1427 = vand.u32 %v677, 4294901760
        %1428 = vmatmul.mubr.f32.gmra.mrb[0].mxu0 %v1427
        %v1429 = vpop.f32.mrb[0].mxu0
        %v1430 = vadd.f32 %v941, %v1429
        %v1431 = vpop.f32.mrb[0].mxu0
        %v1432 = vadd.f32 %v943, %v1431
        %v1433 = vand.u32 %v681, 4294901760
        %1434 = vmatprep.mubr.f32.mxu0 %v1433
        %v1435 = vand.u32 %v680, 4294901760
        %1436 = vmatmul.mubr.f32.gmra.mrb[0].mxu0 %v1435
        %v1437 = vpop.f32.mrb[0].mxu0
        %v1438 = vadd.f32 %v957, %v1437
        %v1439 = vpop.f32.mrb[0].mxu0
        %v1440 = vadd.f32 %v959, %v1439
        %v1441 = vand.u32 %v684, 4294901760
        %1442 = vmatprep.mubr.f32.mxu0 %v1441
        %v1443 = vand.u32 %v683, 4294901760
        %1444 = vmatmul.mubr.f32.gmra.mrb[0].mxu0 %v1443
        %v1445 = vpop.f32.mrb[0].mxu0
        %v1446 = vadd.f32 %v973, %v1445
        %v1447 = vpop.f32.mrb[0].mxu0
        %v1448 = vadd.f32 %v975, %v1447
        %v1449 = vand.u32 %v687, 4294901760
        %1450 = vmatprep.mubr.f32.mxu0 %v1449
        %v1451 = vand.u32 %v686, 4294901760
        %1452 = vmatmul.mubr.f32.gmra.mrb[0].mxu0 %v1451
        %v1453 = vpop.f32.mrb[0].mxu0
        %v1454 = vadd.f32 %v989, %v1453
        %v1455 = vpop.f32.mrb[0].mxu0
        %v1456 = vadd.f32 %v991, %v1455
        %v1457 = vand.u32 %v690, 4294901760
        %1458 = vmatprep.mubr.f32.mxu0 %v1457
        %v1459 = vand.u32 %v689, 4294901760
        %1460 = vmatmul.mubr.f32.gmra.mrb[0].mxu0 %v1459
        %v1461 = vpop.f32.mrb[0].mxu0
        %v1462 = vadd.f32 %v1005, %v1461
        %v1463 = vpop.f32.mrb[0].mxu0
        %v1464 = vadd.f32 %v1007, %v1463
        %v1465 = vand.u32 %v693, 4294901760
        %1466 = vmatprep.mubr.f32.mxu0 %v1465
        %v1467 = vand.u32 %v692, 4294901760
        %1468 = vmatmul.mubr.f32.gmra.mrb[0].mxu0 %v1467
        %v1469 = vpop.f32.mrb[0].mxu0
        %v1470 = vadd.f32 %v1021, %v1469
        %v1471 = vpop.f32.mrb[0].mxu0
        %v1472 = vadd.f32 %v1023, %v1471
        %1473 = vdwg.mxu0
        %v1474 = vand.u32 %v324, 4294901760
        %v1475 = vsub.f32 %v324, %v1474
        %1476 = vmatprep.subr.mxu0 %v1475
        %v1477 = vand.u32 %v323, 4294901760
        %v1478 = vsub.f32 %v323, %v1477
        %1479 = vmatpush1.msra.mxu0 %v1478
        %v1480 = vand.u32 %v332, 4294901760
        %v1481 = vsub.f32 %v332, %v1480
        %1482 = vmatprep.subr.mxu0 %v1481
        %v1483 = vand.u32 %v331, 4294901760
        %v1484 = vsub.f32 %v331, %v1483
        %1485 = vmatpush1.msra.mxu0 %v1484
        %v1486 = vand.u32 %v340, 4294901760
        %v1487 = vsub.f32 %v340, %v1486
        %1488 = vmatprep.subr.mxu0 %v1487
        %v1489 = vand.u32 %v339, 4294901760
        %v1490 = vsub.f32 %v339, %v1489
        %1491 = vmatpush1.msra.mxu0 %v1490
        %v1492 = vand.u32 %v348, 4294901760
        %v1493 = vsub.f32 %v348, %v1492
        %1494 = vmatprep.subr.mxu0 %v1493
        %v1495 = vand.u32 %v347, 4294901760
        %v1496 = vsub.f32 %v347, %v1495
        %1497 = vmatpush1.msra.mxu0 %v1496
        %v1498 = vand.u32 %v370, 4294901760
        %v1499 = vsub.f32 %v370, %v1498
        %1500 = vmatprep.subr.mxu0 %v1499
        %v1501 = vand.u32 %v369, 4294901760
        %v1502 = vsub.f32 %v369, %v1501
        %1503 = vmatpush1.msra.mxu0 %v1502
        %v1504 = vand.u32 %v378, 4294901760
        %v1505 = vsub.f32 %v378, %v1504
        %1506 = vmatprep.subr.mxu0 %v1505
        %v1507 = vand.u32 %v377, 4294901760
        %v1508 = vsub.f32 %v377, %v1507
        %1509 = vmatpush1.msra.mxu0 %v1508
        %v1510 = vand.u32 %v386, 4294901760
        %v1511 = vsub.f32 %v386, %v1510
        %1512 = vmatprep.subr.mxu0 %v1511
        %v1513 = vand.u32 %v385, 4294901760
        %v1514 = vsub.f32 %v385, %v1513
        %1515 = vmatpush1.msra.mxu0 %v1514
        %v1516 = vand.u32 %v394, 4294901760
        %v1517 = vsub.f32 %v394, %v1516
        %1518 = vmatprep.subr.mxu0 %v1517
        %v1519 = vand.u32 %v393, 4294901760
        %v1520 = vsub.f32 %v393, %v1519
        %1521 = vmatpush1.msra.mxu0 %v1520
        %v1522 = vand.u32 %v416, 4294901760
        %v1523 = vsub.f32 %v416, %v1522
        %1524 = vmatprep.subr.mxu0 %v1523
        %v1525 = vand.u32 %v415, 4294901760
        %v1526 = vsub.f32 %v415, %v1525
        %1527 = vmatpush1.msra.mxu0 %v1526
        %v1528 = vand.u32 %v424, 4294901760
        %v1529 = vsub.f32 %v424, %v1528
        %1530 = vmatprep.subr.mxu0 %v1529
        %v1531 = vand.u32 %v423, 4294901760
        %v1532 = vsub.f32 %v423, %v1531
        %1533 = vmatpush1.msra.mxu0 %v1532
        %v1534 = vand.u32 %v432, 4294901760
        %v1535 = vsub.f32 %v432, %v1534
        %1536 = vmatprep.subr.mxu0 %v1535
        %v1537 = vand.u32 %v431, 4294901760
        %v1538 = vsub.f32 %v431, %v1537
        %1539 = vmatpush1.msra.mxu0 %v1538
        %v1540 = vand.u32 %v440, 4294901760
        %v1541 = vsub.f32 %v440, %v1540
        %1542 = vmatprep.subr.mxu0 %v1541
        %v1543 = vand.u32 %v439, 4294901760
        %v1544 = vsub.f32 %v439, %v1543
        %1545 = vmatpush1.msra.mxu0 %v1544
        %v1546 = vand.u32 %v462, 4294901760
        %v1547 = vsub.f32 %v462, %v1546
        %1548 = vmatprep.subr.mxu0 %v1547
        %v1549 = vand.u32 %v461, 4294901760
        %v1550 = vsub.f32 %v461, %v1549
        %1551 = vmatpush1.msra.mxu0 %v1550
        %v1552 = vand.u32 %v470, 4294901760
        %v1553 = vsub.f32 %v470, %v1552
        %1554 = vmatprep.subr.mxu0 %v1553
        %v1555 = vand.u32 %v469, 4294901760
        %v1556 = vsub.f32 %v469, %v1555
        %1557 = vmatpush1.msra.mxu0 %v1556
        %v1558 = vand.u32 %v478, 4294901760
        %v1559 = vsub.f32 %v478, %v1558
        %1560 = vmatprep.subr.mxu0 %v1559
        %v1561 = vand.u32 %v477, 4294901760
        %v1562 = vsub.f32 %v477, %v1561
        %1563 = vmatpush1.msra.mxu0 %v1562
        %v1564 = vand.u32 %v486, 4294901760
        %v1565 = vsub.f32 %v486, %v1564
        %1566 = vmatprep.subr.mxu0 %v1565
        %v1567 = vand.u32 %v485, 4294901760
        %v1568 = vsub.f32 %v485, %v1567
        %1569 = vmatpush1.msra.mxu0 %v1568
        %v1570 = vand.u32 %v292, 4294901760
        %v1571 = vsub.f32 %v292, %v1570
        %1572 = vmatprep.subr.mxu0 %v1571
        %v1573 = vand.u32 %v291, 4294901760
        %v1574 = vsub.f32 %v291, %v1573
        %1575 = vmatpush1.msra.mxu0 %v1574
        %v1576 = vand.u32 %v295, 4294901760
        %v1577 = vsub.f32 %v295, %v1576
        %1578 = vmatprep.subr.mxu0 %v1577
        %v1579 = vand.u32 %v294, 4294901760
        %v1580 = vsub.f32 %v294, %v1579
        %1581 = vmatpush1.msra.mxu0 %v1580
        %v1582 = vand.u32 %v298, 4294901760
        %v1583 = vsub.f32 %v298, %v1582
        %1584 = vmatprep.subr.mxu0 %v1583
        %v1585 = vand.u32 %v297, 4294901760
        %v1586 = vsub.f32 %v297, %v1585
        %1587 = vmatpush1.msra.mxu0 %v1586
        %v1588 = vand.u32 %v301, 4294901760
        %v1589 = vsub.f32 %v301, %v1588
        %1590 = vmatprep.subr.mxu0 %v1589
        %v1591 = vand.u32 %v300, 4294901760
        %v1592 = vsub.f32 %v300, %v1591
        %1593 = vmatpush1.msra.mxu0 %v1592
        %v1594 = vand.u32 %v508, 4294901760
        %v1595 = vsub.f32 %v508, %v1594
        %1596 = vmatprep.subr.mxu0 %v1595
        %v1597 = vand.u32 %v507, 4294901760
        %v1598 = vsub.f32 %v507, %v1597
        %1599 = vmatpush1.msra.mxu0 %v1598
        %v1600 = vand.u32 %v516, 4294901760
        %v1601 = vsub.f32 %v516, %v1600
        %1602 = vmatprep.subr.mxu0 %v1601
        %v1603 = vand.u32 %v515, 4294901760
        %v1604 = vsub.f32 %v515, %v1603
        %1605 = vmatpush1.msra.mxu0 %v1604
        %v1606 = vand.u32 %v524, 4294901760
        %v1607 = vsub.f32 %v524, %v1606
        %1608 = vmatprep.subr.mxu0 %v1607
        %v1609 = vand.u32 %v523, 4294901760
        %v1610 = vsub.f32 %v523, %v1609
        %1611 = vmatpush1.msra.mxu0 %v1610
        %v1612 = vand.u32 %v532, 4294901760
        %v1613 = vsub.f32 %v532, %v1612
        %1614 = vmatprep.subr.mxu0 %v1613
        %v1615 = vand.u32 %v531, 4294901760
        %v1616 = vsub.f32 %v531, %v1615
        %1617 = vmatpush1.msra.mxu0 %v1616
        %v1618 = vand.u32 %v554, 4294901760
        %v1619 = vsub.f32 %v554, %v1618
        %1620 = vmatprep.subr.mxu0 %v1619
        %v1621 = vand.u32 %v553, 4294901760
        %v1622 = vsub.f32 %v553, %v1621
        %1623 = vmatpush1.msra.mxu0 %v1622
        %v1624 = vand.u32 %v562, 4294901760
        %v1625 = vsub.f32 %v562, %v1624
        %1626 = vmatprep.subr.mxu0 %v1625
        %v1627 = vand.u32 %v561, 4294901760
        %v1628 = vsub.f32 %v561, %v1627
        %1629 = vmatpush1.msra.mxu0 %v1628
        %v1630 = vand.u32 %v570, 4294901760
        %v1631 = vsub.f32 %v570, %v1630
        %1632 = vmatprep.subr.mxu0 %v1631
        %v1633 = vand.u32 %v569, 4294901760
        %v1634 = vsub.f32 %v569, %v1633
        %1635 = vmatpush1.msra.mxu0 %v1634
        %v1636 = vand.u32 %v578, 4294901760
        %v1637 = vsub.f32 %v578, %v1636
        %1638 = vmatprep.subr.mxu0 %v1637
        %v1639 = vand.u32 %v577, 4294901760
        %v1640 = vsub.f32 %v577, %v1639
        %1641 = vmatpush1.msra.mxu0 %v1640
        %v1642 = vand.u32 %v600, 4294901760
        %v1643 = vsub.f32 %v600, %v1642
        %1644 = vmatprep.subr.mxu0 %v1643
        %v1645 = vand.u32 %v599, 4294901760
        %v1646 = vsub.f32 %v599, %v1645
        %1647 = vmatpush1.msra.mxu0 %v1646
        %v1648 = vand.u32 %v608, 4294901760
        %v1649 = vsub.f32 %v608, %v1648
        %1650 = vmatprep.subr.mxu0 %v1649
        %v1651 = vand.u32 %v607, 4294901760
        %v1652 = vsub.f32 %v607, %v1651
        %1653 = vmatpush1.msra.mxu0 %v1652
        %v1654 = vand.u32 %v616, 4294901760
        %v1655 = vsub.f32 %v616, %v1654
        %1656 = vmatprep.subr.mxu0 %v1655
        %v1657 = vand.u32 %v615, 4294901760
        %v1658 = vsub.f32 %v615, %v1657
        %1659 = vmatpush1.msra.mxu0 %v1658
        %v1660 = vand.u32 %v624, 4294901760
        %v1661 = vsub.f32 %v624, %v1660
        %1662 = vmatprep.subr.mxu0 %v1661
        %v1663 = vand.u32 %v623, 4294901760
        %v1664 = vsub.f32 %v623, %v1663
        %1665 = vmatpush1.msra.mxu0 %v1664
        %v1666 = vand.u32 %v672, 4294901760
        %v1667 = vsub.f32 %v672, %v1666
        %1668 = vmatprep.mubr.f32.mxu0 %v1667
        %v1669 = vand.u32 %v671, 4294901760
        %v1670 = vsub.f32 %v671, %v1669
        %1671 = vmatmul.mubr.f32.gmra.mrb[0].mxu0 %v1670
        %v1672 = vpop.f32.mrb[0].mxu0
        %v1673 = vadd.f32 %v1414, %v1672
        %v1674 = vpop.f32.mrb[0].mxu0
        %v1675 = vadd.f32 %v1416, %v1674
        %v1676 = vand.u32 %v675, 4294901760
        %v1677 = vsub.f32 %v675, %v1676
        %1678 = vmatprep.mubr.f32.mxu0 %v1677
        %v1679 = vand.u32 %v674, 4294901760
        %v1680 = vsub.f32 %v674, %v1679
        %1681 = vmatmul.mubr.f32.gmra.mrb[0].mxu0 %v1680
        %v1682 = vpop.f32.mrb[0].mxu0
        %v1683 = vadd.f32 %v1422, %v1682
        %v1684 = vpop.f32.mrb[0].mxu0
        %v1685 = vadd.f32 %v1424, %v1684
        %v1686 = vand.u32 %v678, 4294901760
        %v1687 = vsub.f32 %v678, %v1686
        %1688 = vmatprep.mubr.f32.mxu0 %v1687
        %v1689 = vand.u32 %v677, 4294901760
        %v1690 = vsub.f32 %v677, %v1689
        %1691 = vmatmul.mubr.f32.gmra.mrb[0].mxu0 %v1690
        %v1692 = vpop.f32.mrb[0].mxu0
        %v1693 = vadd.f32 %v1430, %v1692
        %v1694 = vpop.f32.mrb[0].mxu0
        %v1695 = vadd.f32 %v1432, %v1694
        %v1696 = vand.u32 %v681, 4294901760
        %v1697 = vsub.f32 %v681, %v1696
        %1698 = vmatprep.mubr.f32.mxu0 %v1697
        %v1699 = vand.u32 %v680, 4294901760
        %v1700 = vsub.f32 %v680, %v1699
        %1701 = vmatmul.mubr.f32.gmra.mrb[0].mxu0 %v1700
        %v1702 = vpop.f32.mrb[0].mxu0
        %v1703 = vadd.f32 %v1438, %v1702
        %v1704 = vpop.f32.mrb[0].mxu0
        %v1705 = vadd.f32 %v1440, %v1704
        %v1706 = vand.u32 %v684, 4294901760
        %v1707 = vsub.f32 %v684, %v1706
        %1708 = vmatprep.mubr.f32.mxu0 %v1707
        %v1709 = vand.u32 %v683, 4294901760
        %v1710 = vsub.f32 %v683, %v1709
        %1711 = vmatmul.mubr.f32.gmra.mrb[0].mxu0 %v1710
        %v1712 = vpop.f32.mrb[0].mxu0
        %v1713 = vadd.f32 %v1446, %v1712
        %v1714 = vpop.f32.mrb[0].mxu0
        %v1715 = vadd.f32 %v1448, %v1714
        %v1716 = vand.u32 %v687, 4294901760
        %v1717 = vsub.f32 %v687, %v1716
        %1718 = vmatprep.mubr.f32.mxu0 %v1717
        %v1719 = vand.u32 %v686, 4294901760
        %v1720 = vsub.f32 %v686, %v1719
        %1721 = vmatmul.mubr.f32.gmra.mrb[0].mxu0 %v1720
        %v1722 = vpop.f32.mrb[0].mxu0
        %v1723 = vadd.f32 %v1454, %v1722
        %v1724 = vpop.f32.mrb[0].mxu0
        %v1725 = vadd.f32 %v1456, %v1724
        %v1726 = vand.u32 %v690, 4294901760
        %v1727 = vsub.f32 %v690, %v1726
        %1728 = vmatprep.mubr.f32.mxu0 %v1727
        %v1729 = vand.u32 %v689, 4294901760
        %v1730 = vsub.f32 %v689, %v1729
        %1731 = vmatmul.mubr.f32.gmra.mrb[0].mxu0 %v1730
        %v1732 = vpop.f32.mrb[0].mxu0
        %v1733 = vadd.f32 %v1462, %v1732
        %v1734 = vpop.f32.mrb[0].mxu0
        %v1735 = vadd.f32 %v1464, %v1734
        %v1736 = vand.u32 %v693, 4294901760
        %v1737 = vsub.f32 %v693, %v1736
        %1738 = vmatprep.mubr.f32.mxu0 %v1737
        %v1739 = vand.u32 %v692, 4294901760
        %v1740 = vsub.f32 %v692, %v1739
        %1741 = vmatmul.mubr.f32.gmra.mrb[0].mxu0 %v1740
        %v1742 = vpop.f32.mrb[0].mxu0
        %v1743 = vadd.f32 %v1470, %v1742
        %v1744 = vpop.f32.mrb[0].mxu0
        %v1745 = vadd.f32 %v1472, %v1744
        %1746 = vdwg.mxu0
        %v1747 = vand.u32 %v324, 4294901760
        %1748 = vmatprep.subr.mxu0 %v1747
        %v1749 = vand.u32 %v323, 4294901760
        %1750 = vmatpush1.msra.mxu0 %v1749
        %v1751 = vand.u32 %v332, 4294901760
        %1752 = vmatprep.subr.mxu0 %v1751
        %v1753 = vand.u32 %v331, 4294901760
        %1754 = vmatpush1.msra.mxu0 %v1753
        %v1755 = vand.u32 %v340, 4294901760
        %1756 = vmatprep.subr.mxu0 %v1755
        %v1757 = vand.u32 %v339, 4294901760
        %1758 = vmatpush1.msra.mxu0 %v1757
        %v1759 = vand.u32 %v348, 4294901760
        %1760 = vmatprep.subr.mxu0 %v1759
        %v1761 = vand.u32 %v347, 4294901760
        %1762 = vmatpush1.msra.mxu0 %v1761
        %v1763 = vand.u32 %v370, 4294901760
        %1764 = vmatprep.subr.mxu0 %v1763
        %v1765 = vand.u32 %v369, 4294901760
        %1766 = vmatpush1.msra.mxu0 %v1765
        %v1767 = vand.u32 %v378, 4294901760
        %1768 = vmatprep.subr.mxu0 %v1767
        %v1769 = vand.u32 %v377, 4294901760
        %1770 = vmatpush1.msra.mxu0 %v1769
        %v1771 = vand.u32 %v386, 4294901760
        %1772 = vmatprep.subr.mxu0 %v1771
        %v1773 = vand.u32 %v385, 4294901760
        %1774 = vmatpush1.msra.mxu0 %v1773
        %v1775 = vand.u32 %v394, 4294901760
        %1776 = vmatprep.subr.mxu0 %v1775
        %v1777 = vand.u32 %v393, 4294901760
        %1778 = vmatpush1.msra.mxu0 %v1777
        %v1779 = vand.u32 %v416, 4294901760
        %1780 = vmatprep.subr.mxu0 %v1779
        %v1781 = vand.u32 %v415, 4294901760
        %1782 = vmatpush1.msra.mxu0 %v1781
        %v1783 = vand.u32 %v424, 4294901760
        %1784 = vmatprep.subr.mxu0 %v1783
        %v1785 = vand.u32 %v423, 4294901760
        %1786 = vmatpush1.msra.mxu0 %v1785
        %v1787 = vand.u32 %v432, 4294901760
        %1788 = vmatprep.subr.mxu0 %v1787
        %v1789 = vand.u32 %v431, 4294901760
        %1790 = vmatpush1.msra.mxu0 %v1789
        %v1791 = vand.u32 %v440, 4294901760
        %1792 = vmatprep.subr.mxu0 %v1791
        %v1793 = vand.u32 %v439, 4294901760
        %1794 = vmatpush1.msra.mxu0 %v1793
        %v1795 = vand.u32 %v462, 4294901760
        %1796 = vmatprep.subr.mxu0 %v1795
        %v1797 = vand.u32 %v461, 4294901760
        %1798 = vmatpush1.msra.mxu0 %v1797
        %v1799 = vand.u32 %v470, 4294901760
        %1800 = vmatprep.subr.mxu0 %v1799
        %v1801 = vand.u32 %v469, 4294901760
        %1802 = vmatpush1.msra.mxu0 %v1801
        %v1803 = vand.u32 %v478, 4294901760
        %1804 = vmatprep.subr.mxu0 %v1803
        %v1805 = vand.u32 %v477, 4294901760
        %1806 = vmatpush1.msra.mxu0 %v1805
        %v1807 = vand.u32 %v486, 4294901760
        %1808 = vmatprep.subr.mxu0 %v1807
        %v1809 = vand.u32 %v485, 4294901760
        %1810 = vmatpush1.msra.mxu0 %v1809
        %v1811 = vand.u32 %v292, 4294901760
        %1812 = vmatprep.subr.mxu0 %v1811
        %v1813 = vand.u32 %v291, 4294901760
        %1814 = vmatpush1.msra.mxu0 %v1813
        %v1815 = vand.u32 %v295, 4294901760
        %1816 = vmatprep.subr.mxu0 %v1815
        %v1817 = vand.u32 %v294, 4294901760
        %1818 = vmatpush1.msra.mxu0 %v1817
        %v1819 = vand.u32 %v298, 4294901760
        %1820 = vmatprep.subr.mxu0 %v1819
        %v1821 = vand.u32 %v297, 4294901760
        %1822 = vmatpush1.msra.mxu0 %v1821
        %v1823 = vand.u32 %v301, 4294901760
        %1824 = vmatprep.subr.mxu0 %v1823
        %v1825 = vand.u32 %v300, 4294901760
        %1826 = vmatpush1.msra.mxu0 %v1825
        %v1827 = vand.u32 %v508, 4294901760
        %1828 = vmatprep.subr.mxu0 %v1827
        %v1829 = vand.u32 %v507, 4294901760
        %1830 = vmatpush1.msra.mxu0 %v1829
        %v1831 = vand.u32 %v516, 4294901760
        %1832 = vmatprep.subr.mxu0 %v1831
        %v1833 = vand.u32 %v515, 4294901760
        %1834 = vmatpush1.msra.mxu0 %v1833
        %v1835 = vand.u32 %v524, 4294901760
        %1836 = vmatprep.subr.mxu0 %v1835
        %v1837 = vand.u32 %v523, 4294901760
        %1838 = vmatpush1.msra.mxu0 %v1837
        %v1839 = vand.u32 %v532, 4294901760
        %1840 = vmatprep.subr.mxu0 %v1839
        %v1841 = vand.u32 %v531, 4294901760
        %1842 = vmatpush1.msra.mxu0 %v1841
        %v1843 = vand.u32 %v554, 4294901760
        %1844 = vmatprep.subr.mxu0 %v1843
        %v1845 = vand.u32 %v553, 4294901760
        %1846 = vmatpush1.msra.mxu0 %v1845
        %v1847 = vand.u32 %v562, 4294901760
        %1848 = vmatprep.subr.mxu0 %v1847
        %v1849 = vand.u32 %v561, 4294901760
        %1850 = vmatpush1.msra.mxu0 %v1849
        %v1851 = vand.u32 %v570, 4294901760
        %1852 = vmatprep.subr.mxu0 %v1851
        %v1853 = vand.u32 %v569, 4294901760
        %1854 = vmatpush1.msra.mxu0 %v1853
        %v1855 = vand.u32 %v578, 4294901760
        %1856 = vmatprep.subr.mxu0 %v1855
        %v1857 = vand.u32 %v577, 4294901760
        %1858 = vmatpush1.msra.mxu0 %v1857
        %v1859 = vand.u32 %v600, 4294901760
        %1860 = vmatprep.subr.mxu0 %v1859
        %v1861 = vand.u32 %v599, 4294901760
        %1862 = vmatpush1.msra.mxu0 %v1861
        %v1863 = vand.u32 %v608, 4294901760
        %1864 = vmatprep.subr.mxu0 %v1863
        %v1865 = vand.u32 %v607, 4294901760
        %1866 = vmatpush1.msra.mxu0 %v1865
        %v1867 = vand.u32 %v616, 4294901760
        %1868 = vmatprep.subr.mxu0 %v1867
        %v1869 = vand.u32 %v615, 4294901760
        %1870 = vmatpush1.msra.mxu0 %v1869
        %v1871 = vand.u32 %v624, 4294901760
        %1872 = vmatprep.subr.mxu0 %v1871
        %v1873 = vand.u32 %v623, 4294901760
        %1874 = vmatpush1.msra.mxu0 %v1873
        %v1875 = vand.u32 %v672, 4294901760
        %v1876 = vsub.f32 %v672, %v1875
        %v1877 = vand.u32 %v1876, 4294901760
        %1878 = vmatprep.mubr.f32.mxu0 %v1877
        %v1879 = vand.u32 %v671, 4294901760
        %v1880 = vsub.f32 %v671, %v1879
        %v1881 = vand.u32 %v1880, 4294901760
        %1882 = vmatmul.mubr.f32.gmra.mrb[0].mxu0 %v1881
        %v1883 = vpop.f32.mrb[0].mxu0
        %v1884 = vadd.f32 %v1673, %v1883
        %v1885 = vpop.f32.mrb[0].mxu0
        %v1886 = vadd.f32 %v1675, %v1885
        %v1887 = vand.u32 %v675, 4294901760
        %v1888 = vsub.f32 %v675, %v1887
        %v1889 = vand.u32 %v1888, 4294901760
        %1890 = vmatprep.mubr.f32.mxu0 %v1889
        %v1891 = vand.u32 %v674, 4294901760
        %v1892 = vsub.f32 %v674, %v1891
        %v1893 = vand.u32 %v1892, 4294901760
        %1894 = vmatmul.mubr.f32.gmra.mrb[0].mxu0 %v1893
        %v1895 = vpop.f32.mrb[0].mxu0
        %v1896 = vadd.f32 %v1683, %v1895
        %v1897 = vpop.f32.mrb[0].mxu0
        %v1898 = vadd.f32 %v1685, %v1897
        %v1899 = vand.u32 %v678, 4294901760
        %v1900 = vsub.f32 %v678, %v1899
        %v1901 = vand.u32 %v1900, 4294901760
        %1902 = vmatprep.mubr.f32.mxu0 %v1901
        %v1903 = vand.u32 %v677, 4294901760
        %v1904 = vsub.f32 %v677, %v1903
        %v1905 = vand.u32 %v1904, 4294901760
        %1906 = vmatmul.mubr.f32.gmra.mrb[0].mxu0 %v1905
        %v1907 = vpop.f32.mrb[0].mxu0
        %v1908 = vadd.f32 %v1693, %v1907
        %v1909 = vpop.f32.mrb[0].mxu0
        %v1910 = vadd.f32 %v1695, %v1909
        %v1911 = vand.u32 %v681, 4294901760
        %v1912 = vsub.f32 %v681, %v1911
        %v1913 = vand.u32 %v1912, 4294901760
        %1914 = vmatprep.mubr.f32.mxu0 %v1913
        %v1915 = vand.u32 %v680, 4294901760
        %v1916 = vsub.f32 %v680, %v1915
        %v1917 = vand.u32 %v1916, 4294901760
        %1918 = vmatmul.mubr.f32.gmra.mrb[0].mxu0 %v1917
        %v1919 = vpop.f32.mrb[0].mxu0
        %v1920 = vadd.f32 %v1703, %v1919
        %v1921 = vpop.f32.mrb[0].mxu0
        %v1922 = vadd.f32 %v1705, %v1921
        %v1923 = vand.u32 %v684, 4294901760
        %v1924 = vsub.f32 %v684, %v1923
        %v1925 = vand.u32 %v1924, 4294901760
        %1926 = vmatprep.mubr.f32.mxu0 %v1925
        %v1927 = vand.u32 %v683, 4294901760
        %v1928 = vsub.f32 %v683, %v1927
        %v1929 = vand.u32 %v1928, 4294901760
        %1930 = vmatmul.mubr.f32.gmra.mrb[0].mxu0 %v1929
        %v1931 = vpop.f32.mrb[0].mxu0
        %v1932 = vadd.f32 %v1713, %v1931
        %v1933 = vpop.f32.mrb[0].mxu0
        %v1934 = vadd.f32 %v1715, %v1933
        %v1935 = vand.u32 %v687, 4294901760
        %v1936 = vsub.f32 %v687, %v1935
        %v1937 = vand.u32 %v1936, 4294901760
        %1938 = vmatprep.mubr.f32.mxu0 %v1937
        %v1939 = vand.u32 %v686, 4294901760
        %v1940 = vsub.f32 %v686, %v1939
        %v1941 = vand.u32 %v1940, 4294901760
        %1942 = vmatmul.mubr.f32.gmra.mrb[0].mxu0 %v1941
        %v1943 = vpop.f32.mrb[0].mxu0
        %v1944 = vadd.f32 %v1723, %v1943
        %v1945 = vpop.f32.mrb[0].mxu0
        %v1946 = vadd.f32 %v1725, %v1945
        %v1947 = vand.u32 %v690, 4294901760
        %v1948 = vsub.f32 %v690, %v1947
        %v1949 = vand.u32 %v1948, 4294901760
        %1950 = vmatprep.mubr.f32.mxu0 %v1949
        %v1951 = vand.u32 %v689, 4294901760
        %v1952 = vsub.f32 %v689, %v1951
        %v1953 = vand.u32 %v1952, 4294901760
        %1954 = vmatmul.mubr.f32.gmra.mrb[0].mxu0 %v1953
        %v1955 = vpop.f32.mrb[0].mxu0
        %v1956 = vadd.f32 %v1733, %v1955
        %v1957 = vpop.f32.mrb[0].mxu0
        %v1958 = vadd.f32 %v1735, %v1957
        %v1959 = vand.u32 %v693, 4294901760
        %v1960 = vsub.f32 %v693, %v1959
        %v1961 = vand.u32 %v1960, 4294901760
        %1962 = vmatprep.mubr.f32.mxu0 %v1961
        %v1963 = vand.u32 %v692, 4294901760
        %v1964 = vsub.f32 %v692, %v1963
        %v1965 = vand.u32 %v1964, 4294901760
        %1966 = vmatmul.mubr.f32.gmra.mrb[0].mxu0 %v1965
        %v1967 = vpop.f32.mrb[0].mxu0
        %v1968 = vadd.f32 %v1743, %v1967
        %v1969 = vpop.f32.mrb[0].mxu0
        %v1970 = vadd.f32 %v1745, %v1969
        %1971 = vdwg.mxu0
        %v1972 = vand.u32 %v324, 4294901760
        %v1973 = vsub.f32 %v324, %v1972
        %v1974 = vand.u32 %v1973, 4294901760
        %1975 = vmatprep.subr.mxu0 %v1974
        %v1976 = vand.u32 %v323, 4294901760
        %v1977 = vsub.f32 %v323, %v1976
        %v1978 = vand.u32 %v1977, 4294901760
        %1979 = vmatpush1.msra.mxu0 %v1978
        %v1980 = vand.u32 %v332, 4294901760
        %v1981 = vsub.f32 %v332, %v1980
        %v1982 = vand.u32 %v1981, 4294901760
        %1983 = vmatprep.subr.mxu0 %v1982
        %v1984 = vand.u32 %v331, 4294901760
        %v1985 = vsub.f32 %v331, %v1984
        %v1986 = vand.u32 %v1985, 4294901760
        %1987 = vmatpush1.msra.mxu0 %v1986
        %v1988 = vand.u32 %v340, 4294901760
        %v1989 = vsub.f32 %v340, %v1988
        %v1990 = vand.u32 %v1989, 4294901760
        %1991 = vmatprep.subr.mxu0 %v1990
        %v1992 = vand.u32 %v339, 4294901760
        %v1993 = vsub.f32 %v339, %v1992
        %v1994 = vand.u32 %v1993, 4294901760
        %1995 = vmatpush1.msra.mxu0 %v1994
        %v1996 = vand.u32 %v348, 4294901760
        %v1997 = vsub.f32 %v348, %v1996
        %v1998 = vand.u32 %v1997, 4294901760
        %1999 = vmatprep.subr.mxu0 %v1998
        %v2000 = vand.u32 %v347, 4294901760
        %v2001 = vsub.f32 %v347, %v2000
        %v2002 = vand.u32 %v2001, 4294901760
        %2003 = vmatpush1.msra.mxu0 %v2002
        %v2004 = vand.u32 %v370, 4294901760
        %v2005 = vsub.f32 %v370, %v2004
        %v2006 = vand.u32 %v2005, 4294901760
        %2007 = vmatprep.subr.mxu0 %v2006
        %v2008 = vand.u32 %v369, 4294901760
        %v2009 = vsub.f32 %v369, %v2008
        %v2010 = vand.u32 %v2009, 4294901760
        %2011 = vmatpush1.msra.mxu0 %v2010
        %v2012 = vand.u32 %v378, 4294901760
        %v2013 = vsub.f32 %v378, %v2012
        %v2014 = vand.u32 %v2013, 4294901760
        %2015 = vmatprep.subr.mxu0 %v2014
        %v2016 = vand.u32 %v377, 4294901760
        %v2017 = vsub.f32 %v377, %v2016
        %v2018 = vand.u32 %v2017, 4294901760
        %2019 = vmatpush1.msra.mxu0 %v2018
        %v2020 = vand.u32 %v386, 4294901760
        %v2021 = vsub.f32 %v386, %v2020
        %v2022 = vand.u32 %v2021, 4294901760
        %2023 = vmatprep.subr.mxu0 %v2022
        %v2024 = vand.u32 %v385, 4294901760
        %v2025 = vsub.f32 %v385, %v2024
        %v2026 = vand.u32 %v2025, 4294901760
        %2027 = vmatpush1.msra.mxu0 %v2026
        %v2028 = vand.u32 %v394, 4294901760
        %v2029 = vsub.f32 %v394, %v2028
        %v2030 = vand.u32 %v2029, 4294901760
        %2031 = vmatprep.subr.mxu0 %v2030
        %v2032 = vand.u32 %v393, 4294901760
        %v2033 = vsub.f32 %v393, %v2032
        %v2034 = vand.u32 %v2033, 4294901760
        %2035 = vmatpush1.msra.mxu0 %v2034
        %v2036 = vand.u32 %v416, 4294901760
        %v2037 = vsub.f32 %v416, %v2036
        %v2038 = vand.u32 %v2037, 4294901760
        %2039 = vmatprep.subr.mxu0 %v2038
        %v2040 = vand.u32 %v415, 4294901760
        %v2041 = vsub.f32 %v415, %v2040
        %v2042 = vand.u32 %v2041, 4294901760
        %2043 = vmatpush1.msra.mxu0 %v2042
        %v2044 = vand.u32 %v424, 4294901760
        %v2045 = vsub.f32 %v424, %v2044
        %v2046 = vand.u32 %v2045, 4294901760
        %2047 = vmatprep.subr.mxu0 %v2046
        %v2048 = vand.u32 %v423, 4294901760
        %v2049 = vsub.f32 %v423, %v2048
        %v2050 = vand.u32 %v2049, 4294901760
        %2051 = vmatpush1.msra.mxu0 %v2050
        %v2052 = vand.u32 %v432, 4294901760
        %v2053 = vsub.f32 %v432, %v2052
        %v2054 = vand.u32 %v2053, 4294901760
        %2055 = vmatprep.subr.mxu0 %v2054
        %v2056 = vand.u32 %v431, 4294901760
        %v2057 = vsub.f32 %v431, %v2056
        %v2058 = vand.u32 %v2057, 4294901760
        %2059 = vmatpush1.msra.mxu0 %v2058
        %v2060 = vand.u32 %v440, 4294901760
        %v2061 = vsub.f32 %v440, %v2060
        %v2062 = vand.u32 %v2061, 4294901760
        %2063 = vmatprep.subr.mxu0 %v2062
        %v2064 = vand.u32 %v439, 4294901760
        %v2065 = vsub.f32 %v439, %v2064
        %v2066 = vand.u32 %v2065, 4294901760
        %2067 = vmatpush1.msra.mxu0 %v2066
        %v2068 = vand.u32 %v462, 4294901760
        %v2069 = vsub.f32 %v462, %v2068
        %v2070 = vand.u32 %v2069, 4294901760
        %2071 = vmatprep.subr.mxu0 %v2070
        %v2072 = vand.u32 %v461, 4294901760
        %v2073 = vsub.f32 %v461, %v2072
        %v2074 = vand.u32 %v2073, 4294901760
        %2075 = vmatpush1.msra.mxu0 %v2074
        %v2076 = vand.u32 %v470, 4294901760
        %v2077 = vsub.f32 %v470, %v2076
        %v2078 = vand.u32 %v2077, 4294901760
        %2079 = vmatprep.subr.mxu0 %v2078
        %v2080 = vand.u32 %v469, 4294901760
        %v2081 = vsub.f32 %v469, %v2080
        %v2082 = vand.u32 %v2081, 4294901760
        %2083 = vmatpush1.msra.mxu0 %v2082
        %v2084 = vand.u32 %v478, 4294901760
        %v2085 = vsub.f32 %v478, %v2084
        %v2086 = vand.u32 %v2085, 4294901760
        %2087 = vmatprep.subr.mxu0 %v2086
        %v2088 = vand.u32 %v477, 4294901760
        %v2089 = vsub.f32 %v477, %v2088
        %v2090 = vand.u32 %v2089, 4294901760
        %2091 = vmatpush1.msra.mxu0 %v2090
        %v2092 = vand.u32 %v486, 4294901760
        %v2093 = vsub.f32 %v486, %v2092
        %v2094 = vand.u32 %v2093, 4294901760
        %2095 = vmatprep.subr.mxu0 %v2094
        %v2096 = vand.u32 %v485, 4294901760
        %v2097 = vsub.f32 %v485, %v2096
        %v2098 = vand.u32 %v2097, 4294901760
        %2099 = vmatpush1.msra.mxu0 %v2098
        %v2100 = vand.u32 %v292, 4294901760
        %v2101 = vsub.f32 %v292, %v2100
        %v2102 = vand.u32 %v2101, 4294901760
        %2103 = vmatprep.subr.mxu0 %v2102
        %v2104 = vand.u32 %v291, 4294901760
        %v2105 = vsub.f32 %v291, %v2104
        %v2106 = vand.u32 %v2105, 4294901760
        %2107 = vmatpush1.msra.mxu0 %v2106
        %v2108 = vand.u32 %v295, 4294901760
        %v2109 = vsub.f32 %v295, %v2108
        %v2110 = vand.u32 %v2109, 4294901760
        %2111 = vmatprep.subr.mxu0 %v2110
        %v2112 = vand.u32 %v294, 4294901760
        %v2113 = vsub.f32 %v294, %v2112
        %v2114 = vand.u32 %v2113, 4294901760
        %2115 = vmatpush1.msra.mxu0 %v2114
        %v2116 = vand.u32 %v298, 4294901760
        %v2117 = vsub.f32 %v298, %v2116
        %v2118 = vand.u32 %v2117, 4294901760
        %2119 = vmatprep.subr.mxu0 %v2118
        %v2120 = vand.u32 %v297, 4294901760
        %v2121 = vsub.f32 %v297, %v2120
        %v2122 = vand.u32 %v2121, 4294901760
        %2123 = vmatpush1.msra.mxu0 %v2122
        %v2124 = vand.u32 %v301, 4294901760
        %v2125 = vsub.f32 %v301, %v2124
        %v2126 = vand.u32 %v2125, 4294901760
        %2127 = vmatprep.subr.mxu0 %v2126
        %v2128 = vand.u32 %v300, 4294901760
        %v2129 = vsub.f32 %v300, %v2128
        %v2130 = vand.u32 %v2129, 4294901760
        %2131 = vmatpush1.msra.mxu0 %v2130
        %v2132 = vand.u32 %v508, 4294901760
        %v2133 = vsub.f32 %v508, %v2132
        %v2134 = vand.u32 %v2133, 4294901760
        %2135 = vmatprep.subr.mxu0 %v2134
        %v2136 = vand.u32 %v507, 4294901760
        %v2137 = vsub.f32 %v507, %v2136
        %v2138 = vand.u32 %v2137, 4294901760
        %2139 = vmatpush1.msra.mxu0 %v2138
        %v2140 = vand.u32 %v516, 4294901760
        %v2141 = vsub.f32 %v516, %v2140
        %v2142 = vand.u32 %v2141, 4294901760
        %2143 = vmatprep.subr.mxu0 %v2142
        %v2144 = vand.u32 %v515, 4294901760
        %v2145 = vsub.f32 %v515, %v2144
        %v2146 = vand.u32 %v2145, 4294901760
        %2147 = vmatpush1.msra.mxu0 %v2146
        %v2148 = vand.u32 %v524, 4294901760
        %v2149 = vsub.f32 %v524, %v2148
        %v2150 = vand.u32 %v2149, 4294901760
        %2151 = vmatprep.subr.mxu0 %v2150
        %v2152 = vand.u32 %v523, 4294901760
        %v2153 = vsub.f32 %v523, %v2152
        %v2154 = vand.u32 %v2153, 4294901760
        %2155 = vmatpush1.msra.mxu0 %v2154
        %v2156 = vand.u32 %v532, 4294901760
        %v2157 = vsub.f32 %v532, %v2156
        %v2158 = vand.u32 %v2157, 4294901760
        %2159 = vmatprep.subr.mxu0 %v2158
        %v2160 = vand.u32 %v531, 4294901760
        %v2161 = vsub.f32 %v531, %v2160
        %v2162 = vand.u32 %v2161, 4294901760
        %2163 = vmatpush1.msra.mxu0 %v2162
        %v2164 = vand.u32 %v554, 4294901760
        %v2165 = vsub.f32 %v554, %v2164
        %v2166 = vand.u32 %v2165, 4294901760
        %2167 = vmatprep.subr.mxu0 %v2166
        %v2168 = vand.u32 %v553, 4294901760
        %v2169 = vsub.f32 %v553, %v2168
        %v2170 = vand.u32 %v2169, 4294901760
        %2171 = vmatpush1.msra.mxu0 %v2170
        %v2172 = vand.u32 %v562, 4294901760
        %v2173 = vsub.f32 %v562, %v2172
        %v2174 = vand.u32 %v2173, 4294901760
        %2175 = vmatprep.subr.mxu0 %v2174
        %v2176 = vand.u32 %v561, 4294901760
        %v2177 = vsub.f32 %v561, %v2176
        %v2178 = vand.u32 %v2177, 4294901760
        %2179 = vmatpush1.msra.mxu0 %v2178
        %v2180 = vand.u32 %v570, 4294901760
        %v2181 = vsub.f32 %v570, %v2180
        %v2182 = vand.u32 %v2181, 4294901760
        %2183 = vmatprep.subr.mxu0 %v2182
        %v2184 = vand.u32 %v569, 4294901760
        %v2185 = vsub.f32 %v569, %v2184
        %v2186 = vand.u32 %v2185, 4294901760
        %2187 = vmatpush1.msra.mxu0 %v2186
        %v2188 = vand.u32 %v578, 4294901760
        %v2189 = vsub.f32 %v578, %v2188
        %v2190 = vand.u32 %v2189, 4294901760
        %2191 = vmatprep.subr.mxu0 %v2190
        %v2192 = vand.u32 %v577, 4294901760
        %v2193 = vsub.f32 %v577, %v2192
        %v2194 = vand.u32 %v2193, 4294901760
        %2195 = vmatpush1.msra.mxu0 %v2194
        %v2196 = vand.u32 %v600, 4294901760
        %v2197 = vsub.f32 %v600, %v2196
        %v2198 = vand.u32 %v2197, 4294901760
        %2199 = vmatprep.subr.mxu0 %v2198
        %v2200 = vand.u32 %v599, 4294901760
        %v2201 = vsub.f32 %v599, %v2200
        %v2202 = vand.u32 %v2201, 4294901760
        %2203 = vmatpush1.msra.mxu0 %v2202
        %v2204 = vand.u32 %v608, 4294901760
        %v2205 = vsub.f32 %v608, %v2204
        %v2206 = vand.u32 %v2205, 4294901760
        %2207 = vmatprep.subr.mxu0 %v2206
        %v2208 = vand.u32 %v607, 4294901760
        %v2209 = vsub.f32 %v607, %v2208
        %v2210 = vand.u32 %v2209, 4294901760
        %2211 = vmatpush1.msra.mxu0 %v2210
        %v2212 = vand.u32 %v616, 4294901760
        %v2213 = vsub.f32 %v616, %v2212
        %v2214 = vand.u32 %v2213, 4294901760
        %2215 = vmatprep.subr.mxu0 %v2214
        %v2216 = vand.u32 %v615, 4294901760
        %v2217 = vsub.f32 %v615, %v2216
        %v2218 = vand.u32 %v2217, 4294901760
        %2219 = vmatpush1.msra.mxu0 %v2218
        %v2220 = vand.u32 %v624, 4294901760
        %v2221 = vsub.f32 %v624, %v2220
        %v2222 = vand.u32 %v2221, 4294901760
        %2223 = vmatprep.subr.mxu0 %v2222
        %v2224 = vand.u32 %v623, 4294901760
        %v2225 = vsub.f32 %v623, %v2224
        %v2226 = vand.u32 %v2225, 4294901760
        %2227 = vmatpush1.msra.mxu0 %v2226
        %v2228 = vand.u32 %v672, 4294901760
        %2229 = vmatprep.mubr.f32.mxu0 %v2228
        %v2230 = vand.u32 %v671, 4294901760
        %2231 = vmatmul.mubr.f32.gmra.mrb[0].mxu0 %v2230
        %v2232 = vpop.f32.mrb[0].mxu0
        %v2233 = vadd.f32 %v1884, %v2232
        %v2234 = vpop.f32.mrb[0].mxu0
        %v2235 = vadd.f32 %v1886, %v2234
        %v2236 = vand.u32 %v675, 4294901760
        %2237 = vmatprep.mubr.f32.mxu0 %v2236
        %v2238 = vand.u32 %v674, 4294901760
        %2239 = vmatmul.mubr.f32.gmra.mrb[0].mxu0 %v2238
        %v2240 = vpop.f32.mrb[0].mxu0
        %v2241 = vadd.f32 %v1896, %v2240
        %v2242 = vpop.f32.mrb[0].mxu0
        %v2243 = vadd.f32 %v1898, %v2242
        %v2244 = vand.u32 %v678, 4294901760
        %2245 = vmatprep.mubr.f32.mxu0 %v2244
        %v2246 = vand.u32 %v677, 4294901760
        %2247 = vmatmul.mubr.f32.gmra.mrb[0].mxu0 %v2246
        %v2248 = vpop.f32.mrb[0].mxu0
        %v2249 = vadd.f32 %v1908, %v2248
        %v2250 = vpop.f32.mrb[0].mxu0
        %v2251 = vadd.f32 %v1910, %v2250
        %v2252 = vand.u32 %v681, 4294901760
        %2253 = vmatprep.mubr.f32.mxu0 %v2252
        %v2254 = vand.u32 %v680, 4294901760
        %2255 = vmatmul.mubr.f32.gmra.mrb[0].mxu0 %v2254
        %v2256 = vpop.f32.mrb[0].mxu0
        %v2257 = vadd.f32 %v1920, %v2256
        %v2258 = vpop.f32.mrb[0].mxu0
        %v2259 = vadd.f32 %v1922, %v2258
        %v2260 = vand.u32 %v684, 4294901760
        %2261 = vmatprep.mubr.f32.mxu0 %v2260
        %v2262 = vand.u32 %v683, 4294901760
        %2263 = vmatmul.mubr.f32.gmra.mrb[0].mxu0 %v2262
        %v2264 = vpop.f32.mrb[0].mxu0
        %v2265 = vadd.f32 %v1932, %v2264
        %v2266 = vpop.f32.mrb[0].mxu0
        %v2267 = vadd.f32 %v1934, %v2266
        %v2268 = vand.u32 %v687, 4294901760
        %2269 = vmatprep.mubr.f32.mxu0 %v2268
        %v2270 = vand.u32 %v686, 4294901760
        %2271 = vmatmul.mubr.f32.gmra.mrb[0].mxu0 %v2270
        %v2272 = vpop.f32.mrb[0].mxu0
        %v2273 = vadd.f32 %v1944, %v2272
        %v2274 = vpop.f32.mrb[0].mxu0
        %v2275 = vadd.f32 %v1946, %v2274
        %v2276 = vand.u32 %v690, 4294901760
        %2277 = vmatprep.mubr.f32.mxu0 %v2276
        %v2278 = vand.u32 %v689, 4294901760
        %2279 = vmatmul.mubr.f32.gmra.mrb[0].mxu0 %v2278
        %v2280 = vpop.f32.mrb[0].mxu0
        %v2281 = vadd.f32 %v1956, %v2280
        %v2282 = vpop.f32.mrb[0].mxu0
        %v2283 = vadd.f32 %v1958, %v2282
        %v2284 = vand.u32 %v693, 4294901760
        %2285 = vmatprep.mubr.f32.mxu0 %v2284
        %v2286 = vand.u32 %v692, 4294901760
        %2287 = vmatmul.mubr.f32.gmra.mrb[0].mxu0 %v2286
        %v2288 = vpop.f32.mrb[0].mxu0
        %v2289 = vadd.f32 %v1968, %v2288
        %v2290 = vpop.f32.mrb[0].mxu0
        %v2291 = vadd.f32 %v1970, %v2290
        %2292 = vdwg.mxu0
        %v2293 = vand.u32 %v324, 4294901760
        %2294 = vmatprep.subr.mxu0 %v2293
        %v2295 = vand.u32 %v323, 4294901760
        %2296 = vmatpush1.msra.mxu0 %v2295
        %v2297 = vand.u32 %v332, 4294901760
        %2298 = vmatprep.subr.mxu0 %v2297
        %v2299 = vand.u32 %v331, 4294901760
        %2300 = vmatpush1.msra.mxu0 %v2299
        %v2301 = vand.u32 %v340, 4294901760
        %2302 = vmatprep.subr.mxu0 %v2301
        %v2303 = vand.u32 %v339, 4294901760
        %2304 = vmatpush1.msra.mxu0 %v2303
        %v2305 = vand.u32 %v348, 4294901760
        %2306 = vmatprep.subr.mxu0 %v2305
        %v2307 = vand.u32 %v347, 4294901760
        %2308 = vmatpush1.msra.mxu0 %v2307
        %v2309 = vand.u32 %v370, 4294901760
        %2310 = vmatprep.subr.mxu0 %v2309
        %v2311 = vand.u32 %v369, 4294901760
        %2312 = vmatpush1.msra.mxu0 %v2311
        %v2313 = vand.u32 %v378, 4294901760
        %2314 = vmatprep.subr.mxu0 %v2313
        %v2315 = vand.u32 %v377, 4294901760
        %2316 = vmatpush1.msra.mxu0 %v2315
        %v2317 = vand.u32 %v386, 4294901760
        %2318 = vmatprep.subr.mxu0 %v2317
        %v2319 = vand.u32 %v385, 4294901760
        %2320 = vmatpush1.msra.mxu0 %v2319
        %v2321 = vand.u32 %v394, 4294901760
        %2322 = vmatprep.subr.mxu0 %v2321
        %v2323 = vand.u32 %v393, 4294901760
        %2324 = vmatpush1.msra.mxu0 %v2323
        %v2325 = vand.u32 %v416, 4294901760
        %2326 = vmatprep.subr.mxu0 %v2325
        %v2327 = vand.u32 %v415, 4294901760
        %2328 = vmatpush1.msra.mxu0 %v2327
        %v2329 = vand.u32 %v424, 4294901760
        %2330 = vmatprep.subr.mxu0 %v2329
        %v2331 = vand.u32 %v423, 4294901760
        %2332 = vmatpush1.msra.mxu0 %v2331
        %v2333 = vand.u32 %v432, 4294901760
        %2334 = vmatprep.subr.mxu0 %v2333
        %v2335 = vand.u32 %v431, 4294901760
        %2336 = vmatpush1.msra.mxu0 %v2335
        %v2337 = vand.u32 %v440, 4294901760
        %2338 = vmatprep.subr.mxu0 %v2337
        %v2339 = vand.u32 %v439, 4294901760
        %2340 = vmatpush1.msra.mxu0 %v2339
        %v2341 = vand.u32 %v462, 4294901760
        %2342 = vmatprep.subr.mxu0 %v2341
        %v2343 = vand.u32 %v461, 4294901760
        %2344 = vmatpush1.msra.mxu0 %v2343
        %v2345 = vand.u32 %v470, 4294901760
        %2346 = vmatprep.subr.mxu0 %v2345
        %v2347 = vand.u32 %v469, 4294901760
        %2348 = vmatpush1.msra.mxu0 %v2347
        %v2349 = vand.u32 %v478, 4294901760
        %2350 = vmatprep.subr.mxu0 %v2349
        %v2351 = vand.u32 %v477, 4294901760
        %2352 = vmatpush1.msra.mxu0 %v2351
        %v2353 = vand.u32 %v486, 4294901760
        %2354 = vmatprep.subr.mxu0 %v2353
        %v2355 = vand.u32 %v485, 4294901760
        %2356 = vmatpush1.msra.mxu0 %v2355
        %v2357 = vand.u32 %v292, 4294901760
        %2358 = vmatprep.subr.mxu0 %v2357
        %v2359 = vand.u32 %v291, 4294901760
        %2360 = vmatpush1.msra.mxu0 %v2359
        %v2361 = vand.u32 %v295, 4294901760
        %2362 = vmatprep.subr.mxu0 %v2361
        %v2363 = vand.u32 %v294, 4294901760
        %2364 = vmatpush1.msra.mxu0 %v2363
        %v2365 = vand.u32 %v298, 4294901760
        %2366 = vmatprep.subr.mxu0 %v2365
        %v2367 = vand.u32 %v297, 4294901760
        %2368 = vmatpush1.msra.mxu0 %v2367
        %v2369 = vand.u32 %v301, 4294901760
        %2370 = vmatprep.subr.mxu0 %v2369
        %v2371 = vand.u32 %v300, 4294901760
        %2372 = vmatpush1.msra.mxu0 %v2371
        %v2373 = vand.u32 %v508, 4294901760
        %2374 = vmatprep.subr.mxu0 %v2373
        %v2375 = vand.u32 %v507, 4294901760
        %2376 = vmatpush1.msra.mxu0 %v2375
        %v2377 = vand.u32 %v516, 4294901760
        %2378 = vmatprep.subr.mxu0 %v2377
        %v2379 = vand.u32 %v515, 4294901760
        %2380 = vmatpush1.msra.mxu0 %v2379
        %v2381 = vand.u32 %v524, 4294901760
        %2382 = vmatprep.subr.mxu0 %v2381
        %v2383 = vand.u32 %v523, 4294901760
        %2384 = vmatpush1.msra.mxu0 %v2383
        %v2385 = vand.u32 %v532, 4294901760
        %2386 = vmatprep.subr.mxu0 %v2385
        %v2387 = vand.u32 %v531, 4294901760
        %2388 = vmatpush1.msra.mxu0 %v2387
        %v2389 = vand.u32 %v554, 4294901760
        %2390 = vmatprep.subr.mxu0 %v2389
        %v2391 = vand.u32 %v553, 4294901760
        %2392 = vmatpush1.msra.mxu0 %v2391
        %v2393 = vand.u32 %v562, 4294901760
        %2394 = vmatprep.subr.mxu0 %v2393
        %v2395 = vand.u32 %v561, 4294901760
        %2396 = vmatpush1.msra.mxu0 %v2395
        %v2397 = vand.u32 %v570, 4294901760
        %2398 = vmatprep.subr.mxu0 %v2397
        %v2399 = vand.u32 %v569, 4294901760
        %2400 = vmatpush1.msra.mxu0 %v2399
        %v2401 = vand.u32 %v578, 4294901760
        %2402 = vmatprep.subr.mxu0 %v2401
        %v2403 = vand.u32 %v577, 4294901760
        %2404 = vmatpush1.msra.mxu0 %v2403
        %v2405 = vand.u32 %v600, 4294901760
        %2406 = vmatprep.subr.mxu0 %v2405
        %v2407 = vand.u32 %v599, 4294901760
        %2408 = vmatpush1.msra.mxu0 %v2407
        %v2409 = vand.u32 %v608, 4294901760
        %2410 = vmatprep.subr.mxu0 %v2409
        %v2411 = vand.u32 %v607, 4294901760
        %2412 = vmatpush1.msra.mxu0 %v2411
        %v2413 = vand.u32 %v616, 4294901760
        %2414 = vmatprep.subr.mxu0 %v2413
        %v2415 = vand.u32 %v615, 4294901760
        %2416 = vmatpush1.msra.mxu0 %v2415
        %v2417 = vand.u32 %v624, 4294901760
        %2418 = vmatprep.subr.mxu0 %v2417
        %v2419 = vand.u32 %v623, 4294901760
        %2420 = vmatpush1.msra.mxu0 %v2419
        %v2421 = vand.u32 %v672, 4294901760
        %2422 = vmatprep.mubr.f32.mxu0 %v2421
        %v2423 = vand.u32 %v671, 4294901760
        %2424 = vmatmul.mubr.f32.gmra.mrb[0].mxu0 %v2423
        %v2425 = vpop.f32.mrb[0].mxu0
        %v2426 = vadd.f32 %v2233, %v2425
        %v2427 = vpop.f32.mrb[0].mxu0
        %v2428 = vadd.f32 %v2235, %v2427
        %v2429 = vand.u32 %v675, 4294901760
        %2430 = vmatprep.mubr.f32.mxu0 %v2429
        %v2431 = vand.u32 %v674, 4294901760
        %2432 = vmatmul.mubr.f32.gmra.mrb[0].mxu0 %v2431
        %v2433 = vpop.f32.mrb[0].mxu0
        %v2434 = vadd.f32 %v2241, %v2433
        %v2435 = vpop.f32.mrb[0].mxu0
        %v2436 = vadd.f32 %v2243, %v2435
        %v2437 = vand.u32 %v678, 4294901760
        %2438 = vmatprep.mubr.f32.mxu0 %v2437
        %v2439 = vand.u32 %v677, 4294901760
        %2440 = vmatmul.mubr.f32.gmra.mrb[0].mxu0 %v2439
        %v2441 = vpop.f32.mrb[0].mxu0
        %v2442 = vadd.f32 %v2249, %v2441
        %v2443 = vpop.f32.mrb[0].mxu0
        %v2444 = vadd.f32 %v2251, %v2443
        %v2445 = vand.u32 %v681, 4294901760
        %2446 = vmatprep.mubr.f32.mxu0 %v2445
        %v2447 = vand.u32 %v680, 4294901760
        %2448 = vmatmul.mubr.f32.gmra.mrb[0].mxu0 %v2447
        %v2449 = vpop.f32.mrb[0].mxu0
        %v2450 = vadd.f32 %v2257, %v2449
        %v2451 = vpop.f32.mrb[0].mxu0
        %v2452 = vadd.f32 %v2259, %v2451
        %v2453 = vand.u32 %v684, 4294901760
        %2454 = vmatprep.mubr.f32.mxu0 %v2453
        %v2455 = vand.u32 %v683, 4294901760
        %2456 = vmatmul.mubr.f32.gmra.mrb[0].mxu0 %v2455
        %v2457 = vpop.f32.mrb[0].mxu0
        %v2458 = vadd.f32 %v2265, %v2457
        %v2459 = vpop.f32.mrb[0].mxu0
        %v2460 = vadd.f32 %v2267, %v2459
        %v2461 = vand.u32 %v687, 4294901760
        %2462 = vmatprep.mubr.f32.mxu0 %v2461
        %v2463 = vand.u32 %v686, 4294901760
        %2464 = vmatmul.mubr.f32.gmra.mrb[0].mxu0 %v2463
        %v2465 = vpop.f32.mrb[0].mxu0
        %v2466 = vadd.f32 %v2273, %v2465
        %v2467 = vpop.f32.mrb[0].mxu0
        %v2468 = vadd.f32 %v2275, %v2467
        %v2469 = vand.u32 %v690, 4294901760
        %2470 = vmatprep.mubr.f32.mxu0 %v2469
        %v2471 = vand.u32 %v689, 4294901760
        %2472 = vmatmul.mubr.f32.gmra.mrb[0].mxu0 %v2471
        %v2473 = vpop.f32.mrb[0].mxu0
        %v2474 = vadd.f32 %v2281, %v2473
        %v2475 = vpop.f32.mrb[0].mxu0
        %v2476 = vadd.f32 %v2283, %v2475
        %v2477 = vand.u32 %v693, 4294901760
        %2478 = vmatprep.mubr.f32.mxu0 %v2477
        %v2479 = vand.u32 %v692, 4294901760
        %2480 = vmatmul.mubr.f32.gmra.mrb[0].mxu0 %v2479
        %v2481 = vpop.f32.mrb[0].mxu0
        %v2482 = vadd.f32 %v2289, %v2481
        %v2483 = vpop.f32.mrb[0].mxu0
        %v2484 = vadd.f32 %v2291, %v2483
        %2485 = vdwg.mxu0
        %v2486 = vand.u32 %v646, 4294901760
        %2487 = vmatprep.subr.mxu0 %v2486
        %v2488 = vand.u32 %v645, 4294901760
        %2489 = vmatpush1.msra.mxu0 %v2488
        %v2490 = vand.u32 %v654, 4294901760
        %2491 = vmatprep.subr.mxu0 %v2490
        %v2492 = vand.u32 %v653, 4294901760
        %2493 = vmatpush1.msra.mxu0 %v2492
        %v2494 = vand.u32 %v662, 4294901760
        %2495 = vmatprep.subr.mxu0 %v2494
        %v2496 = vand.u32 %v661, 4294901760
        %2497 = vmatpush1.msra.mxu0 %v2496
        %v2498 = vand.u32 %v670, 4294901760
        %2499 = vmatprep.subr.mxu0 %v2498
        %v2500 = vand.u32 %v669, 4294901760
        %2501 = vmatpush1.msra.mxu0 %v2500
        %2502 = vmatprep.subr.mxu0 0.0
        %2503 = vmatpush1.msra.mxu0 0.0
        %2504 = vmatprep.subr.mxu0 0.0
        %2505 = vmatpush1.msra.mxu0 0.0
        %2506 = vmatprep.subr.mxu0 0.0
        %2507 = vmatpush1.msra.mxu0 0.0
        %2508 = vmatprep.subr.mxu0 0.0
        %2509 = vmatpush1.msra.mxu0 0.0
        %2510 = vmatprep.subr.mxu0 0.0
        %2511 = vmatpush1.msra.mxu0 0.0
        %2512 = vmatprep.subr.mxu0 0.0
        %2513 = vmatpush1.msra.mxu0 0.0
        %2514 = vmatprep.subr.mxu0 0.0
        %2515 = vmatpush1.msra.mxu0 0.0
        %2516 = vmatprep.subr.mxu0 0.0
        %2517 = vmatpush1.msra.mxu0 0.0
        %2518 = vmatprep.subr.mxu0 0.0
        %2519 = vmatpush1.msra.mxu0 0.0
        %2520 = vmatprep.subr.mxu0 0.0
        %2521 = vmatpush1.msra.mxu0 0.0
        %2522 = vmatprep.subr.mxu0 0.0
        %2523 = vmatpush1.msra.mxu0 0.0
        %2524 = vmatprep.subr.mxu0 0.0
        %2525 = vmatpush1.msra.mxu0 0.0
        %2526 = vmatprep.subr.mxu0 0.0
        %2527 = vmatpush1.msra.mxu0 0.0
        %2528 = vmatprep.subr.mxu0 0.0
        %2529 = vmatpush1.msra.mxu0 0.0
        %2530 = vmatprep.subr.mxu0 0.0
        %2531 = vmatpush1.msra.mxu0 0.0
        %2532 = vmatprep.subr.mxu0 0.0
        %2533 = vmatpush1.msra.mxu0 0.0
        %2534 = vmatprep.subr.mxu0 0.0
        %2535 = vmatpush1.msra.mxu0 0.0
        %2536 = vmatprep.subr.mxu0 0.0
        %2537 = vmatpush1.msra.mxu0 0.0
        %2538 = vmatprep.subr.mxu0 0.0
        %2539 = vmatpush1.msra.mxu0 0.0
        %2540 = vmatprep.subr.mxu0 0.0
        %2541 = vmatpush1.msra.mxu0 0.0
        %2542 = vmatprep.subr.mxu0 0.0
        %2543 = vmatpush1.msra.mxu0 0.0
        %2544 = vmatprep.subr.mxu0 0.0
        %2545 = vmatpush1.msra.mxu0 0.0
        %2546 = vmatprep.subr.mxu0 0.0
        %2547 = vmatpush1.msra.mxu0 0.0
        %2548 = vmatprep.subr.mxu0 0.0
        %2549 = vmatpush1.msra.mxu0 0.0
        %2550 = vmatprep.subr.mxu0 0.0
        %2551 = vmatpush1.msra.mxu0 0.0
        %2552 = vmatprep.subr.mxu0 0.0
        %2553 = vmatpush1.msra.mxu0 0.0
        %2554 = vmatprep.subr.mxu0 0.0
        %2555 = vmatpush1.msra.mxu0 0.0
        %2556 = vmatprep.subr.mxu0 0.0
        %2557 = vmatpush1.msra.mxu0 0.0
        %2558 = vmatprep.mubr.f32.mxu0 0.0
        %v2559 = vand.u32 %v745, 4294901760
        %v2560 = vsub.f32 %v745, %v2559
        %v2561 = vand.u32 %v2560, 4294901760
        %v2562 = vsub.f32 %v2560, %v2561
        %v2563 = vand.u32 %v2562, 4294901760
        %2564 = vmatmul.mubr.f32.gmra.mrb[0].mxu0 %v2563
        %v2565 = vpop.f32.mrb[0].mxu0
        %v2566 = vadd.f32 %v2426, %v2565
        %v2567 = vpop.f32.mrb[0].mxu0
        %v2568 = vadd.f32 %v2428, %v2567
        %2569 = vmatprep.mubr.f32.mxu0 0.0
        %v2570 = vand.u32 %v748, 4294901760
        %v2571 = vsub.f32 %v748, %v2570
        %v2572 = vand.u32 %v2571, 4294901760
        %v2573 = vsub.f32 %v2571, %v2572
        %v2574 = vand.u32 %v2573, 4294901760
        %2575 = vmatmul.mubr.f32.gmra.mrb[0].mxu0 %v2574
        %v2576 = vpop.f32.mrb[0].mxu0
        %v2577 = vadd.f32 %v2434, %v2576
        %v2578 = vpop.f32.mrb[0].mxu0
        %v2579 = vadd.f32 %v2436, %v2578
        %2580 = vmatprep.mubr.f32.mxu0 0.0
        %v2581 = vand.u32 %v751, 4294901760
        %v2582 = vsub.f32 %v751, %v2581
        %v2583 = vand.u32 %v2582, 4294901760
        %v2584 = vsub.f32 %v2582, %v2583
        %v2585 = vand.u32 %v2584, 4294901760
        %2586 = vmatmul.mubr.f32.gmra.mrb[0].mxu0 %v2585
        %v2587 = vpop.f32.mrb[0].mxu0
        %v2588 = vadd.f32 %v2442, %v2587
        %v2589 = vpop.f32.mrb[0].mxu0
        %v2590 = vadd.f32 %v2444, %v2589
        %2591 = vmatprep.mubr.f32.mxu0 0.0
        %v2592 = vand.u32 %v754, 4294901760
        %v2593 = vsub.f32 %v754, %v2592
        %v2594 = vand.u32 %v2593, 4294901760
        %v2595 = vsub.f32 %v2593, %v2594
        %v2596 = vand.u32 %v2595, 4294901760
        %2597 = vmatmul.mubr.f32.gmra.mrb[0].mxu0 %v2596
        %v2598 = vpop.f32.mrb[0].mxu0
        %v2599 = vadd.f32 %v2450, %v2598
        %v2600 = vpop.f32.mrb[0].mxu0
        %v2601 = vadd.f32 %v2452, %v2600
        %2602 = vmatprep.mubr.f32.mxu0 0.0
        %v2603 = vand.u32 %v757, 4294901760
        %v2604 = vsub.f32 %v757, %v2603
        %v2605 = vand.u32 %v2604, 4294901760
        %v2606 = vsub.f32 %v2604, %v2605
        %v2607 = vand.u32 %v2606, 4294901760
        %2608 = vmatmul.mubr.f32.gmra.mrb[0].mxu0 %v2607
        %v2609 = vpop.f32.mrb[0].mxu0
        %v2610 = vadd.f32 %v2458, %v2609
        %v2611 = vpop.f32.mrb[0].mxu0
        %v2612 = vadd.f32 %v2460, %v2611
        %2613 = vmatprep.mubr.f32.mxu0 0.0
        %v2614 = vand.u32 %v760, 4294901760
        %v2615 = vsub.f32 %v760, %v2614
        %v2616 = vand.u32 %v2615, 4294901760
        %v2617 = vsub.f32 %v2615, %v2616
        %v2618 = vand.u32 %v2617, 4294901760
        %2619 = vmatmul.mubr.f32.gmra.mrb[0].mxu0 %v2618
        %v2620 = vpop.f32.mrb[0].mxu0
        %v2621 = vadd.f32 %v2466, %v2620
        %v2622 = vpop.f32.mrb[0].mxu0
        %v2623 = vadd.f32 %v2468, %v2622
        %2624 = vmatprep.mubr.f32.mxu0 0.0
        %v2625 = vand.u32 %v763, 4294901760
        %v2626 = vsub.f32 %v763, %v2625
        %v2627 = vand.u32 %v2626, 4294901760
        %v2628 = vsub.f32 %v2626, %v2627
        %v2629 = vand.u32 %v2628, 4294901760
        %2630 = vmatmul.mubr.f32.gmra.mrb[0].mxu0 %v2629
        %v2631 = vpop.f32.mrb[0].mxu0
        %v2632 = vadd.f32 %v2474, %v2631
        %v2633 = vpop.f32.mrb[0].mxu0
        %v2634 = vadd.f32 %v2476, %v2633
        %2635 = vmatprep.mubr.f32.mxu0 0.0
        %v2636 = vand.u32 %v766, 4294901760
        %v2637 = vsub.f32 %v766, %v2636
        %v2638 = vand.u32 %v2637, 4294901760
        %v2639 = vsub.f32 %v2637, %v2638
        %v2640 = vand.u32 %v2639, 4294901760
        %2641 = vmatmul.mubr.f32.gmra.mrb[0].mxu0 %v2640
        %v2642 = vpop.f32.mrb[0].mxu0
        %v2643 = vadd.f32 %v2482, %v2642
        %v2644 = vpop.f32.mrb[0].mxu0
        %v2645 = vadd.f32 %v2484, %v2644
        %2646 = vdwg.mxu0
        %v2647 = vand.u32 %v646, 4294901760
        %v2648 = vsub.f32 %v646, %v2647
        %v2649 = vand.u32 %v2648, 4294901760
        %v2650 = vsub.f32 %v2648, %v2649
        %v2651 = vand.u32 %v2650, 4294901760
        %2652 = vmatprep.subr.mxu0 %v2651
        %v2653 = vand.u32 %v645, 4294901760
        %v2654 = vsub.f32 %v645, %v2653
        %v2655 = vand.u32 %v2654, 4294901760
        %v2656 = vsub.f32 %v2654, %v2655
        %v2657 = vand.u32 %v2656, 4294901760
        %2658 = vmatpush1.msra.mxu0 %v2657
        %v2659 = vand.u32 %v654, 4294901760
        %v2660 = vsub.f32 %v654, %v2659
        %v2661 = vand.u32 %v2660, 4294901760
        %v2662 = vsub.f32 %v2660, %v2661
        %v2663 = vand.u32 %v2662, 4294901760
        %2664 = vmatprep.subr.mxu0 %v2663
        %v2665 = vand.u32 %v653, 4294901760
        %v2666 = vsub.f32 %v653, %v2665
        %v2667 = vand.u32 %v2666, 4294901760
        %v2668 = vsub.f32 %v2666, %v2667
        %v2669 = vand.u32 %v2668, 4294901760
        %2670 = vmatpush1.msra.mxu0 %v2669
        %v2671 = vand.u32 %v662, 4294901760
        %v2672 = vsub.f32 %v662, %v2671
        %v2673 = vand.u32 %v2672, 4294901760
        %v2674 = vsub.f32 %v2672, %v2673
        %v2675 = vand.u32 %v2674, 4294901760
        %2676 = vmatprep.subr.mxu0 %v2675
        %v2677 = vand.u32 %v661, 4294901760
        %v2678 = vsub.f32 %v661, %v2677
        %v2679 = vand.u32 %v2678, 4294901760
        %v2680 = vsub.f32 %v2678, %v2679
        %v2681 = vand.u32 %v2680, 4294901760
        %2682 = vmatpush1.msra.mxu0 %v2681
        %v2683 = vand.u32 %v670, 4294901760
        %v2684 = vsub.f32 %v670, %v2683
        %v2685 = vand.u32 %v2684, 4294901760
        %v2686 = vsub.f32 %v2684, %v2685
        %v2687 = vand.u32 %v2686, 4294901760
        %2688 = vmatprep.subr.mxu0 %v2687
        %v2689 = vand.u32 %v669, 4294901760
        %v2690 = vsub.f32 %v669, %v2689
        %v2691 = vand.u32 %v2690, 4294901760
        %v2692 = vsub.f32 %v2690, %v2691
        %v2693 = vand.u32 %v2692, 4294901760
        %2694 = vmatpush1.msra.mxu0 %v2693
        %2695 = vmatprep.subr.mxu0 0.0
        %2696 = vmatpush1.msra.mxu0 0.0
        %2697 = vmatprep.subr.mxu0 0.0
        %2698 = vmatpush1.msra.mxu0 0.0
        %2699 = vmatprep.subr.mxu0 0.0
        %2700 = vmatpush1.msra.mxu0 0.0
        %2701 = vmatprep.subr.mxu0 0.0
        %2702 = vmatpush1.msra.mxu0 0.0
        %2703 = vmatprep.subr.mxu0 0.0
        %2704 = vmatpush1.msra.mxu0 0.0
        %2705 = vmatprep.subr.mxu0 0.0
        %2706 = vmatpush1.msra.mxu0 0.0
        %2707 = vmatprep.subr.mxu0 0.0
        %2708 = vmatpush1.msra.mxu0 0.0
        %2709 = vmatprep.subr.mxu0 0.0
        %2710 = vmatpush1.msra.mxu0 0.0
        %2711 = vmatprep.subr.mxu0 0.0
        %2712 = vmatpush1.msra.mxu0 0.0
        %2713 = vmatprep.subr.mxu0 0.0
        %2714 = vmatpush1.msra.mxu0 0.0
        %2715 = vmatprep.subr.mxu0 0.0
        %2716 = vmatpush1.msra.mxu0 0.0
        %2717 = vmatprep.subr.mxu0 0.0
        %2718 = vmatpush1.msra.mxu0 0.0
        %2719 = vmatprep.subr.mxu0 0.0
        %2720 = vmatpush1.msra.mxu0 0.0
        %2721 = vmatprep.subr.mxu0 0.0
        %2722 = vmatpush1.msra.mxu0 0.0
        %2723 = vmatprep.subr.mxu0 0.0
        %2724 = vmatpush1.msra.mxu0 0.0
        %2725 = vmatprep.subr.mxu0 0.0
        %2726 = vmatpush1.msra.mxu0 0.0
        %2727 = vmatprep.subr.mxu0 0.0
        %2728 = vmatpush1.msra.mxu0 0.0
        %2729 = vmatprep.subr.mxu0 0.0
        %2730 = vmatpush1.msra.mxu0 0.0
        %2731 = vmatprep.subr.mxu0 0.0
        %2732 = vmatpush1.msra.mxu0 0.0
        %2733 = vmatprep.subr.mxu0 0.0
        %2734 = vmatpush1.msra.mxu0 0.0
        %2735 = vmatprep.subr.mxu0 0.0
        %2736 = vmatpush1.msra.mxu0 0.0
        %2737 = vmatprep.subr.mxu0 0.0
        %2738 = vmatpush1.msra.mxu0 0.0
        %2739 = vmatprep.subr.mxu0 0.0
        %2740 = vmatpush1.msra.mxu0 0.0
        %2741 = vmatprep.subr.mxu0 0.0
        %2742 = vmatpush1.msra.mxu0 0.0
        %2743 = vmatprep.subr.mxu0 0.0
        %2744 = vmatpush1.msra.mxu0 0.0
        %2745 = vmatprep.subr.mxu0 0.0
        %2746 = vmatpush1.msra.mxu0 0.0
        %2747 = vmatprep.subr.mxu0 0.0
        %2748 = vmatpush1.msra.mxu0 0.0
        %2749 = vmatprep.subr.mxu0 0.0
        %2750 = vmatpush1.msra.mxu0 0.0
        %2751 = vmatprep.mubr.f32.mxu0 0.0
        %v2752 = vand.u32 %v745, 4294901760
        %2753 = vmatmul.mubr.f32.gmra.mrb[0].mxu0 %v2752
        %v2754 = vpop.f32.mrb[0].mxu0
        %v2755 = vadd.f32 %v2566, %v2754
        %v2756 = vpop.f32.mrb[0].mxu0
        %v2757 = vadd.f32 %v2568, %v2756
        %2758 = vmatprep.mubr.f32.mxu0 0.0
        %v2759 = vand.u32 %v748, 4294901760
        %2760 = vmatmul.mubr.f32.gmra.mrb[0].mxu0 %v2759
        %v2761 = vpop.f32.mrb[0].mxu0
        %v2762 = vadd.f32 %v2577, %v2761
        %v2763 = vpop.f32.mrb[0].mxu0
        %v2764 = vadd.f32 %v2579, %v2763
        %2765 = vmatprep.mubr.f32.mxu0 0.0
        %v2766 = vand.u32 %v751, 4294901760
        %2767 = vmatmul.mubr.f32.gmra.mrb[0].mxu0 %v2766
        %v2768 = vpop.f32.mrb[0].mxu0
        %v2769 = vadd.f32 %v2588, %v2768
        %v2770 = vpop.f32.mrb[0].mxu0
        %v2771 = vadd.f32 %v2590, %v2770
        %2772 = vmatprep.mubr.f32.mxu0 0.0
        %v2773 = vand.u32 %v754, 4294901760
        %2774 = vmatmul.mubr.f32.gmra.mrb[0].mxu0 %v2773
        %v2775 = vpop.f32.mrb[0].mxu0
        %v2776 = vadd.f32 %v2599, %v2775
        %v2777 = vpop.f32.mrb[0].mxu0
        %v2778 = vadd.f32 %v2601, %v2777
        %2779 = vmatprep.mubr.f32.mxu0 0.0
        %v2780 = vand.u32 %v757, 4294901760
        %2781 = vmatmul.mubr.f32.gmra.mrb[0].mxu0 %v2780
        %v2782 = vpop.f32.mrb[0].mxu0
        %v2783 = vadd.f32 %v2610, %v2782
        %v2784 = vpop.f32.mrb[0].mxu0
        %v2785 = vadd.f32 %v2612, %v2784
        %2786 = vmatprep.mubr.f32.mxu0 0.0
        %v2787 = vand.u32 %v760, 4294901760
        %2788 = vmatmul.mubr.f32.gmra.mrb[0].mxu0 %v2787
        %v2789 = vpop.f32.mrb[0].mxu0
        %v2790 = vadd.f32 %v2621, %v2789
        %v2791 = vpop.f32.mrb[0].mxu0
        %v2792 = vadd.f32 %v2623, %v2791
        %2793 = vmatprep.mubr.f32.mxu0 0.0
        %v2794 = vand.u32 %v763, 4294901760
        %2795 = vmatmul.mubr.f32.gmra.mrb[0].mxu0 %v2794
        %v2796 = vpop.f32.mrb[0].mxu0
        %v2797 = vadd.f32 %v2632, %v2796
        %v2798 = vpop.f32.mrb[0].mxu0
        %v2799 = vadd.f32 %v2634, %v2798
        %2800 = vmatprep.mubr.f32.mxu0 0.0
        %v2801 = vand.u32 %v766, 4294901760
        %2802 = vmatmul.mubr.f32.gmra.mrb[0].mxu0 %v2801
        %v2803 = vpop.f32.mrb[0].mxu0
        %v2804 = vadd.f32 %v2643, %v2803
        %v2805 = vpop.f32.mrb[0].mxu0
        %v2806 = vadd.f32 %v2645, %v2805
        %2807 = vdwg.mxu0
        %v2808 = vand.u32 %v646, 4294901760
        %v2809 = vsub.f32 %v646, %v2808
        %2810 = vmatprep.subr.mxu0 %v2809
        %v2811 = vand.u32 %v645, 4294901760
        %v2812 = vsub.f32 %v645, %v2811
        %2813 = vmatpush1.msra.mxu0 %v2812
        %v2814 = vand.u32 %v654, 4294901760
        %v2815 = vsub.f32 %v654, %v2814
        %2816 = vmatprep.subr.mxu0 %v2815
        %v2817 = vand.u32 %v653, 4294901760
        %v2818 = vsub.f32 %v653, %v2817
        %2819 = vmatpush1.msra.mxu0 %v2818
        %v2820 = vand.u32 %v662, 4294901760
        %v2821 = vsub.f32 %v662, %v2820
        %2822 = vmatprep.subr.mxu0 %v2821
        %v2823 = vand.u32 %v661, 4294901760
        %v2824 = vsub.f32 %v661, %v2823
        %2825 = vmatpush1.msra.mxu0 %v2824
        %v2826 = vand.u32 %v670, 4294901760
        %v2827 = vsub.f32 %v670, %v2826
        %2828 = vmatprep.subr.mxu0 %v2827
        %v2829 = vand.u32 %v669, 4294901760
        %v2830 = vsub.f32 %v669, %v2829
        %2831 = vmatpush1.msra.mxu0 %v2830
        %2832 = vmatprep.subr.mxu0 0.0
        %2833 = vmatpush1.msra.mxu0 0.0
        %2834 = vmatprep.subr.mxu0 0.0
        %2835 = vmatpush1.msra.mxu0 0.0
        %2836 = vmatprep.subr.mxu0 0.0
        %2837 = vmatpush1.msra.mxu0 0.0
        %2838 = vmatprep.subr.mxu0 0.0
        %2839 = vmatpush1.msra.mxu0 0.0
        %2840 = vmatprep.subr.mxu0 0.0
        %2841 = vmatpush1.msra.mxu0 0.0
        %2842 = vmatprep.subr.mxu0 0.0
        %2843 = vmatpush1.msra.mxu0 0.0
        %2844 = vmatprep.subr.mxu0 0.0
        %2845 = vmatpush1.msra.mxu0 0.0
        %2846 = vmatprep.subr.mxu0 0.0
        %2847 = vmatpush1.msra.mxu0 0.0
        %2848 = vmatprep.subr.mxu0 0.0
        %2849 = vmatpush1.msra.mxu0 0.0
        %2850 = vmatprep.subr.mxu0 0.0
        %2851 = vmatpush1.msra.mxu0 0.0
        %2852 = vmatprep.subr.mxu0 0.0
        %2853 = vmatpush1.msra.mxu0 0.0
        %2854 = vmatprep.subr.mxu0 0.0
        %2855 = vmatpush1.msra.mxu0 0.0
        %2856 = vmatprep.subr.mxu0 0.0
        %2857 = vmatpush1.msra.mxu0 0.0
        %2858 = vmatprep.subr.mxu0 0.0
        %2859 = vmatpush1.msra.mxu0 0.0
        %2860 = vmatprep.subr.mxu0 0.0
        %2861 = vmatpush1.msra.mxu0 0.0
        %2862 = vmatprep.subr.mxu0 0.0
        %2863 = vmatpush1.msra.mxu0 0.0
        %2864 = vmatprep.subr.mxu0 0.0
        %2865 = vmatpush1.msra.mxu0 0.0
        %2866 = vmatprep.subr.mxu0 0.0
        %2867 = vmatpush1.msra.mxu0 0.0
        %2868 = vmatprep.subr.mxu0 0.0
        %2869 = vmatpush1.msra.mxu0 0.0
        %2870 = vmatprep.subr.mxu0 0.0
        %2871 = vmatpush1.msra.mxu0 0.0
        %2872 = vmatprep.subr.mxu0 0.0
        %2873 = vmatpush1.msra.mxu0 0.0
        %2874 = vmatprep.subr.mxu0 0.0
        %2875 = vmatpush1.msra.mxu0 0.0
        %2876 = vmatprep.subr.mxu0 0.0
        %2877 = vmatpush1.msra.mxu0 0.0
        %2878 = vmatprep.subr.mxu0 0.0
        %2879 = vmatpush1.msra.mxu0 0.0
        %2880 = vmatprep.subr.mxu0 0.0
        %2881 = vmatpush1.msra.mxu0 0.0
        %2882 = vmatprep.subr.mxu0 0.0
        %2883 = vmatpush1.msra.mxu0 0.0
        %2884 = vmatprep.subr.mxu0 0.0
        %2885 = vmatpush1.msra.mxu0 0.0
        %2886 = vmatprep.subr.mxu0 0.0
        %2887 = vmatpush1.msra.mxu0 0.0
        %2888 = vmatprep.mubr.f32.mxu0 0.0
        %v2889 = vand.u32 %v745, 4294901760
        %v2890 = vsub.f32 %v745, %v2889
        %2891 = vmatmul.mubr.f32.gmra.mrb[0].mxu0 %v2890
        %v2892 = vpop.f32.mrb[0].mxu0
        %v2893 = vadd.f32 %v2755, %v2892
        %v2894 = vpop.f32.mrb[0].mxu0
        %v2895 = vadd.f32 %v2757, %v2894
        %2896 = vmatprep.mubr.f32.mxu0 0.0
        %v2897 = vand.u32 %v748, 4294901760
        %v2898 = vsub.f32 %v748, %v2897
        %2899 = vmatmul.mubr.f32.gmra.mrb[0].mxu0 %v2898
        %v2900 = vpop.f32.mrb[0].mxu0
        %v2901 = vadd.f32 %v2762, %v2900
        %v2902 = vpop.f32.mrb[0].mxu0
        %v2903 = vadd.f32 %v2764, %v2902
        %2904 = vmatprep.mubr.f32.mxu0 0.0
        %v2905 = vand.u32 %v751, 4294901760
        %v2906 = vsub.f32 %v751, %v2905
        %2907 = vmatmul.mubr.f32.gmra.mrb[0].mxu0 %v2906
        %v2908 = vpop.f32.mrb[0].mxu0
        %v2909 = vadd.f32 %v2769, %v2908
        %v2910 = vpop.f32.mrb[0].mxu0
        %v2911 = vadd.f32 %v2771, %v2910
        %2912 = vmatprep.mubr.f32.mxu0 0.0
        %v2913 = vand.u32 %v754, 4294901760
        %v2914 = vsub.f32 %v754, %v2913
        %2915 = vmatmul.mubr.f32.gmra.mrb[0].mxu0 %v2914
        %v2916 = vpop.f32.mrb[0].mxu0
        %v2917 = vadd.f32 %v2776, %v2916
        %v2918 = vpop.f32.mrb[0].mxu0
        %v2919 = vadd.f32 %v2778, %v2918
        %2920 = vmatprep.mubr.f32.mxu0 0.0
        %v2921 = vand.u32 %v757, 4294901760
        %v2922 = vsub.f32 %v757, %v2921
        %2923 = vmatmul.mubr.f32.gmra.mrb[0].mxu0 %v2922
        %v2924 = vpop.f32.mrb[0].mxu0
        %v2925 = vadd.f32 %v2783, %v2924
        %v2926 = vpop.f32.mrb[0].mxu0
        %v2927 = vadd.f32 %v2785, %v2926
        %2928 = vmatprep.mubr.f32.mxu0 0.0
        %v2929 = vand.u32 %v760, 4294901760
        %v2930 = vsub.f32 %v760, %v2929
        %2931 = vmatmul.mubr.f32.gmra.mrb[0].mxu0 %v2930
        %v2932 = vpop.f32.mrb[0].mxu0
        %v2933 = vadd.f32 %v2790, %v2932
        %v2934 = vpop.f32.mrb[0].mxu0
        %v2935 = vadd.f32 %v2792, %v2934
        %2936 = vmatprep.mubr.f32.mxu0 0.0
        %v2937 = vand.u32 %v763, 4294901760
        %v2938 = vsub.f32 %v763, %v2937
        %2939 = vmatmul.mubr.f32.gmra.mrb[0].mxu0 %v2938
        %v2940 = vpop.f32.mrb[0].mxu0
        %v2941 = vadd.f32 %v2797, %v2940
        %v2942 = vpop.f32.mrb[0].mxu0
        %v2943 = vadd.f32 %v2799, %v2942
        %2944 = vmatprep.mubr.f32.mxu0 0.0
        %v2945 = vand.u32 %v766, 4294901760
        %v2946 = vsub.f32 %v766, %v2945
        %2947 = vmatmul.mubr.f32.gmra.mrb[0].mxu0 %v2946
        %v2948 = vpop.f32.mrb[0].mxu0
        %v2949 = vadd.f32 %v2804, %v2948
        %v2950 = vpop.f32.mrb[0].mxu0
        %v2951 = vadd.f32 %v2806, %v2950
        %2952 = vdwg.mxu0
        %v2953 = vand.u32 %v646, 4294901760
        %2954 = vmatprep.subr.mxu0 %v2953
        %v2955 = vand.u32 %v645, 4294901760
        %2956 = vmatpush1.msra.mxu0 %v2955
        %v2957 = vand.u32 %v654, 4294901760
        %2958 = vmatprep.subr.mxu0 %v2957
        %v2959 = vand.u32 %v653, 4294901760
        %2960 = vmatpush1.msra.mxu0 %v2959
        %v2961 = vand.u32 %v662, 4294901760
        %2962 = vmatprep.subr.mxu0 %v2961
        %v2963 = vand.u32 %v661, 4294901760
        %2964 = vmatpush1.msra.mxu0 %v2963
        %v2965 = vand.u32 %v670, 4294901760
        %2966 = vmatprep.subr.mxu0 %v2965
        %v2967 = vand.u32 %v669, 4294901760
        %2968 = vmatpush1.msra.mxu0 %v2967
        %2969 = vmatprep.subr.mxu0 0.0
        %2970 = vmatpush1.msra.mxu0 0.0
        %2971 = vmatprep.subr.mxu0 0.0
        %2972 = vmatpush1.msra.mxu0 0.0
        %2973 = vmatprep.subr.mxu0 0.0
        %2974 = vmatpush1.msra.mxu0 0.0
        %2975 = vmatprep.subr.mxu0 0.0
        %2976 = vmatpush1.msra.mxu0 0.0
        %2977 = vmatprep.subr.mxu0 0.0
        %2978 = vmatpush1.msra.mxu0 0.0
        %2979 = vmatprep.subr.mxu0 0.0
        %2980 = vmatpush1.msra.mxu0 0.0
        %2981 = vmatprep.subr.mxu0 0.0
        %2982 = vmatpush1.msra.mxu0 0.0
        %2983 = vmatprep.subr.mxu0 0.0
        %2984 = vmatpush1.msra.mxu0 0.0
        %2985 = vmatprep.subr.mxu0 0.0
        %2986 = vmatpush1.msra.mxu0 0.0
        %2987 = vmatprep.subr.mxu0 0.0
        %2988 = vmatpush1.msra.mxu0 0.0
        %2989 = vmatprep.subr.mxu0 0.0
        %2990 = vmatpush1.msra.mxu0 0.0
        %2991 = vmatprep.subr.mxu0 0.0
        %2992 = vmatpush1.msra.mxu0 0.0
        %2993 = vmatprep.subr.mxu0 0.0
        %2994 = vmatpush1.msra.mxu0 0.0
        %2995 = vmatprep.subr.mxu0 0.0
        %2996 = vmatpush1.msra.mxu0 0.0
        %2997 = vmatprep.subr.mxu0 0.0
        %2998 = vmatpush1.msra.mxu0 0.0
        %2999 = vmatprep.subr.mxu0 0.0
        %3000 = vmatpush1.msra.mxu0 0.0
        %3001 = vmatprep.subr.mxu0 0.0
        %3002 = vmatpush1.msra.mxu0 0.0
        %3003 = vmatprep.subr.mxu0 0.0
        %3004 = vmatpush1.msra.mxu0 0.0
        %3005 = vmatprep.subr.mxu0 0.0
        %3006 = vmatpush1.msra.mxu0 0.0
        %3007 = vmatprep.subr.mxu0 0.0
        %3008 = vmatpush1.msra.mxu0 0.0
        %3009 = vmatprep.subr.mxu0 0.0
        %3010 = vmatpush1.msra.mxu0 0.0
        %3011 = vmatprep.subr.mxu0 0.0
        %3012 = vmatpush1.msra.mxu0 0.0
        %3013 = vmatprep.subr.mxu0 0.0
        %3014 = vmatpush1.msra.mxu0 0.0
        %3015 = vmatprep.subr.mxu0 0.0
        %3016 = vmatpush1.msra.mxu0 0.0
        %3017 = vmatprep.subr.mxu0 0.0
        %3018 = vmatpush1.msra.mxu0 0.0
        %3019 = vmatprep.subr.mxu0 0.0
        %3020 = vmatpush1.msra.mxu0 0.0
        %3021 = vmatprep.subr.mxu0 0.0
        %3022 = vmatpush1.msra.mxu0 0.0
        %3023 = vmatprep.subr.mxu0 0.0
        %3024 = vmatpush1.msra.mxu0 0.0
        %3025 = vmatprep.mubr.f32.mxu0 0.0
        %v3026 = vand.u32 %v745, 4294901760
        %v3027 = vsub.f32 %v745, %v3026
        %v3028 = vand.u32 %v3027, 4294901760
        %3029 = vmatmul.mubr.f32.gmra.mrb[0].mxu0 %v3028
        %v3030 = vpop.f32.mrb[0].mxu0
        %v3031 = vadd.f32 %v2893, %v3030
        %v3032 = vpop.f32.mrb[0].mxu0
        %v3033 = vadd.f32 %v2895, %v3032
        %3034 = vmatprep.mubr.f32.mxu0 0.0
        %v3035 = vand.u32 %v748, 4294901760
        %v3036 = vsub.f32 %v748, %v3035
        %v3037 = vand.u32 %v3036, 4294901760
        %3038 = vmatmul.mubr.f32.gmra.mrb[0].mxu0 %v3037
        %v3039 = vpop.f32.mrb[0].mxu0
        %v3040 = vadd.f32 %v2901, %v3039
        %v3041 = vpop.f32.mrb[0].mxu0
        %v3042 = vadd.f32 %v2903, %v3041
        %3043 = vmatprep.mubr.f32.mxu0 0.0
        %v3044 = vand.u32 %v751, 4294901760
        %v3045 = vsub.f32 %v751, %v3044
        %v3046 = vand.u32 %v3045, 4294901760
        %3047 = vmatmul.mubr.f32.gmra.mrb[0].mxu0 %v3046
        %v3048 = vpop.f32.mrb[0].mxu0
        %v3049 = vadd.f32 %v2909, %v3048
        %v3050 = vpop.f32.mrb[0].mxu0
        %v3051 = vadd.f32 %v2911, %v3050
        %3052 = vmatprep.mubr.f32.mxu0 0.0
        %v3053 = vand.u32 %v754, 4294901760
        %v3054 = vsub.f32 %v754, %v3053
        %v3055 = vand.u32 %v3054, 4294901760
        %3056 = vmatmul.mubr.f32.gmra.mrb[0].mxu0 %v3055
        %v3057 = vpop.f32.mrb[0].mxu0
        %v3058 = vadd.f32 %v2917, %v3057
        %v3059 = vpop.f32.mrb[0].mxu0
        %v3060 = vadd.f32 %v2919, %v3059
        %3061 = vmatprep.mubr.f32.mxu0 0.0
        %v3062 = vand.u32 %v757, 4294901760
        %v3063 = vsub.f32 %v757, %v3062
        %v3064 = vand.u32 %v3063, 4294901760
        %3065 = vmatmul.mubr.f32.gmra.mrb[0].mxu0 %v3064
        %v3066 = vpop.f32.mrb[0].mxu0
        %v3067 = vadd.f32 %v2925, %v3066
        %v3068 = vpop.f32.mrb[0].mxu0
        %v3069 = vadd.f32 %v2927, %v3068
        %3070 = vmatprep.mubr.f32.mxu0 0.0
        %v3071 = vand.u32 %v760, 4294901760
        %v3072 = vsub.f32 %v760, %v3071
        %v3073 = vand.u32 %v3072, 4294901760
        %3074 = vmatmul.mubr.f32.gmra.mrb[0].mxu0 %v3073
        %v3075 = vpop.f32.mrb[0].mxu0
        %v3076 = vadd.f32 %v2933, %v3075
        %v3077 = vpop.f32.mrb[0].mxu0
        %v3078 = vadd.f32 %v2935, %v3077
        %3079 = vmatprep.mubr.f32.mxu0 0.0
        %v3080 = vand.u32 %v763, 4294901760
        %v3081 = vsub.f32 %v763, %v3080
        %v3082 = vand.u32 %v3081, 4294901760
        %3083 = vmatmul.mubr.f32.gmra.mrb[0].mxu0 %v3082
        %v3084 = vpop.f32.mrb[0].mxu0
        %v3085 = vadd.f32 %v2941, %v3084
        %v3086 = vpop.f32.mrb[0].mxu0
        %v3087 = vadd.f32 %v2943, %v3086
        %3088 = vmatprep.mubr.f32.mxu0 0.0
        %v3089 = vand.u32 %v766, 4294901760
        %v3090 = vsub.f32 %v766, %v3089
        %v3091 = vand.u32 %v3090, 4294901760
        %3092 = vmatmul.mubr.f32.gmra.mrb[0].mxu0 %v3091
        %v3093 = vpop.f32.mrb[0].mxu0
        %v3094 = vadd.f32 %v2949, %v3093
        %v3095 = vpop.f32.mrb[0].mxu0
        %v3096 = vadd.f32 %v2951, %v3095
        %3097 = vdwg.mxu0
        %v3098 = vand.u32 %v646, 4294901760
        %v3099 = vsub.f32 %v646, %v3098
        %v3100 = vand.u32 %v3099, 4294901760
        %3101 = vmatprep.subr.mxu0 %v3100
        %v3102 = vand.u32 %v645, 4294901760
        %v3103 = vsub.f32 %v645, %v3102
        %v3104 = vand.u32 %v3103, 4294901760
        %3105 = vmatpush1.msra.mxu0 %v3104
        %v3106 = vand.u32 %v654, 4294901760
        %v3107 = vsub.f32 %v654, %v3106
        %v3108 = vand.u32 %v3107, 4294901760
        %3109 = vmatprep.subr.mxu0 %v3108
        %v3110 = vand.u32 %v653, 4294901760
        %v3111 = vsub.f32 %v653, %v3110
        %v3112 = vand.u32 %v3111, 4294901760
        %3113 = vmatpush1.msra.mxu0 %v3112
        %v3114 = vand.u32 %v662, 4294901760
        %v3115 = vsub.f32 %v662, %v3114
        %v3116 = vand.u32 %v3115, 4294901760
        %3117 = vmatprep.subr.mxu0 %v3116
        %v3118 = vand.u32 %v661, 4294901760
        %v3119 = vsub.f32 %v661, %v3118
        %v3120 = vand.u32 %v3119, 4294901760
        %3121 = vmatpush1.msra.mxu0 %v3120
        %v3122 = vand.u32 %v670, 4294901760
        %v3123 = vsub.f32 %v670, %v3122
        %v3124 = vand.u32 %v3123, 4294901760
        %3125 = vmatprep.subr.mxu0 %v3124
        %v3126 = vand.u32 %v669, 4294901760
        %v3127 = vsub.f32 %v669, %v3126
        %v3128 = vand.u32 %v3127, 4294901760
        %3129 = vmatpush1.msra.mxu0 %v3128
        %3130 = vmatprep.subr.mxu0 0.0
        %3131 = vmatpush1.msra.mxu0 0.0
        %3132 = vmatprep.subr.mxu0 0.0
        %3133 = vmatpush1.msra.mxu0 0.0
        %3134 = vmatprep.subr.mxu0 0.0
        %3135 = vmatpush1.msra.mxu0 0.0
        %3136 = vmatprep.subr.mxu0 0.0
        %3137 = vmatpush1.msra.mxu0 0.0
        %3138 = vmatprep.subr.mxu0 0.0
        %3139 = vmatpush1.msra.mxu0 0.0
        %3140 = vmatprep.subr.mxu0 0.0
        %3141 = vmatpush1.msra.mxu0 0.0
        %3142 = vmatprep.subr.mxu0 0.0
        %3143 = vmatpush1.msra.mxu0 0.0
        %3144 = vmatprep.subr.mxu0 0.0
        %3145 = vmatpush1.msra.mxu0 0.0
        %3146 = vmatprep.subr.mxu0 0.0
        %3147 = vmatpush1.msra.mxu0 0.0
        %3148 = vmatprep.subr.mxu0 0.0
        %3149 = vmatpush1.msra.mxu0 0.0
        %3150 = vmatprep.subr.mxu0 0.0
        %3151 = vmatpush1.msra.mxu0 0.0
        %3152 = vmatprep.subr.mxu0 0.0
        %3153 = vmatpush1.msra.mxu0 0.0
        %3154 = vmatprep.subr.mxu0 0.0
        %3155 = vmatpush1.msra.mxu0 0.0
        %3156 = vmatprep.subr.mxu0 0.0
        %3157 = vmatpush1.msra.mxu0 0.0
        %3158 = vmatprep.subr.mxu0 0.0
        %3159 = vmatpush1.msra.mxu0 0.0
        %3160 = vmatprep.subr.mxu0 0.0
        %3161 = vmatpush1.msra.mxu0 0.0
        %3162 = vmatprep.subr.mxu0 0.0
        %3163 = vmatpush1.msra.mxu0 0.0
        %3164 = vmatprep.subr.mxu0 0.0
        %3165 = vmatpush1.msra.mxu0 0.0
        %3166 = vmatprep.subr.mxu0 0.0
        %3167 = vmatpush1.msra.mxu0 0.0
        %3168 = vmatprep.subr.mxu0 0.0
        %3169 = vmatpush1.msra.mxu0 0.0
        %3170 = vmatprep.subr.mxu0 0.0
        %3171 = vmatpush1.msra.mxu0 0.0
        %3172 = vmatprep.subr.mxu0 0.0
        %3173 = vmatpush1.msra.mxu0 0.0
        %3174 = vmatprep.subr.mxu0 0.0
        %3175 = vmatpush1.msra.mxu0 0.0
        %3176 = vmatprep.subr.mxu0 0.0
        %3177 = vmatpush1.msra.mxu0 0.0
        %3178 = vmatprep.subr.mxu0 0.0
        %3179 = vmatpush1.msra.mxu0 0.0
        %3180 = vmatprep.subr.mxu0 0.0
        %3181 = vmatpush1.msra.mxu0 0.0
        %3182 = vmatprep.subr.mxu0 0.0
        %3183 = vmatpush1.msra.mxu0 0.0
        %3184 = vmatprep.subr.mxu0 0.0
        %3185 = vmatpush1.msra.mxu0 0.0
        %3186 = vmatprep.mubr.f32.mxu0 0.0
        %v3187 = vand.u32 %v745, 4294901760
        %3188 = vmatmul.mubr.f32.gmra.mrb[0].mxu0 %v3187
        %v3189 = vpop.f32.mrb[0].mxu0
        %v3190 = vadd.f32 %v3031, %v3189
        %v3191 = vpop.f32.mrb[0].mxu0
        %v3192 = vadd.f32 %v3033, %v3191
        %3193 = vmatprep.mubr.f32.mxu0 0.0
        %v3194 = vand.u32 %v748, 4294901760
        %3195 = vmatmul.mubr.f32.gmra.mrb[0].mxu0 %v3194
        %v3196 = vpop.f32.mrb[0].mxu0
        %v3197 = vadd.f32 %v3040, %v3196
        %v3198 = vpop.f32.mrb[0].mxu0
        %v3199 = vadd.f32 %v3042, %v3198
        %3200 = vmatprep.mubr.f32.mxu0 0.0
        %v3201 = vand.u32 %v751, 4294901760
        %3202 = vmatmul.mubr.f32.gmra.mrb[0].mxu0 %v3201
        %v3203 = vpop.f32.mrb[0].mxu0
        %v3204 = vadd.f32 %v3049, %v3203
        %v3205 = vpop.f32.mrb[0].mxu0
        %v3206 = vadd.f32 %v3051, %v3205
        %3207 = vmatprep.mubr.f32.mxu0 0.0
        %v3208 = vand.u32 %v754, 4294901760
        %3209 = vmatmul.mubr.f32.gmra.mrb[0].mxu0 %v3208
        %v3210 = vpop.f32.mrb[0].mxu0
        %v3211 = vadd.f32 %v3058, %v3210
        %v3212 = vpop.f32.mrb[0].mxu0
        %v3213 = vadd.f32 %v3060, %v3212
        %3214 = vmatprep.mubr.f32.mxu0 0.0
        %v3215 = vand.u32 %v757, 4294901760
        %3216 = vmatmul.mubr.f32.gmra.mrb[0].mxu0 %v3215
        %v3217 = vpop.f32.mrb[0].mxu0
        %v3218 = vadd.f32 %v3067, %v3217
        %v3219 = vpop.f32.mrb[0].mxu0
        %v3220 = vadd.f32 %v3069, %v3219
        %3221 = vmatprep.mubr.f32.mxu0 0.0
        %v3222 = vand.u32 %v760, 4294901760
        %3223 = vmatmul.mubr.f32.gmra.mrb[0].mxu0 %v3222
        %v3224 = vpop.f32.mrb[0].mxu0
        %v3225 = vadd.f32 %v3076, %v3224
        %v3226 = vpop.f32.mrb[0].mxu0
        %v3227 = vadd.f32 %v3078, %v3226
        %3228 = vmatprep.mubr.f32.mxu0 0.0
        %v3229 = vand.u32 %v763, 4294901760
        %3230 = vmatmul.mubr.f32.gmra.mrb[0].mxu0 %v3229
        %v3231 = vpop.f32.mrb[0].mxu0
        %v3232 = vadd.f32 %v3085, %v3231
        %v3233 = vpop.f32.mrb[0].mxu0
        %v3234 = vadd.f32 %v3087, %v3233
        %3235 = vmatprep.mubr.f32.mxu0 0.0
        %v3236 = vand.u32 %v766, 4294901760
        %3237 = vmatmul.mubr.f32.gmra.mrb[0].mxu0 %v3236
        %v3238 = vpop.f32.mrb[0].mxu0
        %v3239 = vadd.f32 %v3094, %v3238
        %v3240 = vpop.f32.mrb[0].mxu0
        %v3241 = vadd.f32 %v3096, %v3240
        %3242 = vdwg.mxu0
        %v3243 = vand.u32 %v646, 4294901760
        %3244 = vmatprep.subr.mxu0 %v3243
        %v3245 = vand.u32 %v645, 4294901760
        %3246 = vmatpush1.msra.mxu0 %v3245
        %v3247 = vand.u32 %v654, 4294901760
        %3248 = vmatprep.subr.mxu0 %v3247
        %v3249 = vand.u32 %v653, 4294901760
        %3250 = vmatpush1.msra.mxu0 %v3249
        %v3251 = vand.u32 %v662, 4294901760
        %3252 = vmatprep.subr.mxu0 %v3251
        %v3253 = vand.u32 %v661, 4294901760
        %3254 = vmatpush1.msra.mxu0 %v3253
        %v3255 = vand.u32 %v670, 4294901760
        %3256 = vmatprep.subr.mxu0 %v3255
        %v3257 = vand.u32 %v669, 4294901760
        %3258 = vmatpush1.msra.mxu0 %v3257
        %3259 = vmatprep.subr.mxu0 0.0
        %3260 = vmatpush1.msra.mxu0 0.0
        %3261 = vmatprep.subr.mxu0 0.0
        %3262 = vmatpush1.msra.mxu0 0.0
        %3263 = vmatprep.subr.mxu0 0.0
        %3264 = vmatpush1.msra.mxu0 0.0
        %3265 = vmatprep.subr.mxu0 0.0
        %3266 = vmatpush1.msra.mxu0 0.0
        %3267 = vmatprep.subr.mxu0 0.0
        %3268 = vmatpush1.msra.mxu0 0.0
        %3269 = vmatprep.subr.mxu0 0.0
        %3270 = vmatpush1.msra.mxu0 0.0
        %3271 = vmatprep.subr.mxu0 0.0
        %3272 = vmatpush1.msra.mxu0 0.0
        %3273 = vmatprep.subr.mxu0 0.0
        %3274 = vmatpush1.msra.mxu0 0.0
        %3275 = vmatprep.subr.mxu0 0.0
        %3276 = vmatpush1.msra.mxu0 0.0
        %3277 = vmatprep.subr.mxu0 0.0
        %3278 = vmatpush1.msra.mxu0 0.0
        %3279 = vmatprep.subr.mxu0 0.0
        %3280 = vmatpush1.msra.mxu0 0.0
        %3281 = vmatprep.subr.mxu0 0.0
        %3282 = vmatpush1.msra.mxu0 0.0
        %3283 = vmatprep.subr.mxu0 0.0
        %3284 = vmatpush1.msra.mxu0 0.0
        %3285 = vmatprep.subr.mxu0 0.0
        %3286 = vmatpush1.msra.mxu0 0.0
        %3287 = vmatprep.subr.mxu0 0.0
        %3288 = vmatpush1.msra.mxu0 0.0
        %3289 = vmatprep.subr.mxu0 0.0
        %3290 = vmatpush1.msra.mxu0 0.0
        %3291 = vmatprep.subr.mxu0 0.0
        %3292 = vmatpush1.msra.mxu0 0.0
        %3293 = vmatprep.subr.mxu0 0.0
        %3294 = vmatpush1.msra.mxu0 0.0
        %3295 = vmatprep.subr.mxu0 0.0
        %3296 = vmatpush1.msra.mxu0 0.0
        %3297 = vmatprep.subr.mxu0 0.0
        %3298 = vmatpush1.msra.mxu0 0.0
        %3299 = vmatprep.subr.mxu0 0.0
        %3300 = vmatpush1.msra.mxu0 0.0
        %3301 = vmatprep.subr.mxu0 0.0
        %3302 = vmatpush1.msra.mxu0 0.0
        %3303 = vmatprep.subr.mxu0 0.0
        %3304 = vmatpush1.msra.mxu0 0.0
        %3305 = vmatprep.subr.mxu0 0.0
        %3306 = vmatpush1.msra.mxu0 0.0
        %3307 = vmatprep.subr.mxu0 0.0
        %3308 = vmatpush1.msra.mxu0 0.0
        %3309 = vmatprep.subr.mxu0 0.0
        %3310 = vmatpush1.msra.mxu0 0.0
        %3311 = vmatprep.subr.mxu0 0.0
        %3312 = vmatpush1.msra.mxu0 0.0
        %3313 = vmatprep.subr.mxu0 0.0
        %3314 = vmatpush1.msra.mxu0 0.0
        %3315 = vmatprep.mubr.f32.mxu0 0.0
        %v3316 = vand.u32 %v745, 4294901760
        %3317 = vmatmul.mubr.f32.gmra.mrb[0].mxu0 %v3316
        %v3318 = vpop.f32.mrb[0].mxu0
        %v3319 = vadd.f32 %v3190, %v3318
        %v3320 = vpop.f32.mrb[0].mxu0
        %v3321 = vadd.f32 %v3192, %v3320
        %3322 = vmatprep.mubr.f32.mxu0 0.0
        %v3323 = vand.u32 %v748, 4294901760
        %3324 = vmatmul.mubr.f32.gmra.mrb[0].mxu0 %v3323
        %v3325 = vpop.f32.mrb[0].mxu0
        %v3326 = vadd.f32 %v3197, %v3325
        %v3327 = vpop.f32.mrb[0].mxu0
        %v3328 = vadd.f32 %v3199, %v3327
        %3329 = vmatprep.mubr.f32.mxu0 0.0
        %v3330 = vand.u32 %v751, 4294901760
        %3331 = vmatmul.mubr.f32.gmra.mrb[0].mxu0 %v3330
        %v3332 = vpop.f32.mrb[0].mxu0
        %v3333 = vadd.f32 %v3204, %v3332
        %v3334 = vpop.f32.mrb[0].mxu0
        %v3335 = vadd.f32 %v3206, %v3334
        %3336 = vmatprep.mubr.f32.mxu0 0.0
        %v3337 = vand.u32 %v754, 4294901760
        %3338 = vmatmul.mubr.f32.gmra.mrb[0].mxu0 %v3337
        %v3339 = vpop.f32.mrb[0].mxu0
        %v3340 = vadd.f32 %v3211, %v3339
        %v3341 = vpop.f32.mrb[0].mxu0
        %v3342 = vadd.f32 %v3213, %v3341
        %3343 = vmatprep.mubr.f32.mxu0 0.0
        %v3344 = vand.u32 %v757, 4294901760
        %3345 = vmatmul.mubr.f32.gmra.mrb[0].mxu0 %v3344
        %v3346 = vpop.f32.mrb[0].mxu0
        %v3347 = vadd.f32 %v3218, %v3346
        %v3348 = vpop.f32.mrb[0].mxu0
        %v3349 = vadd.f32 %v3220, %v3348
        %3350 = vmatprep.mubr.f32.mxu0 0.0
        %v3351 = vand.u32 %v760, 4294901760
        %3352 = vmatmul.mubr.f32.gmra.mrb[0].mxu0 %v3351
        %v3353 = vpop.f32.mrb[0].mxu0
        %v3354 = vadd.f32 %v3225, %v3353
        %v3355 = vpop.f32.mrb[0].mxu0
        %v3356 = vadd.f32 %v3227, %v3355
        %3357 = vmatprep.mubr.f32.mxu0 0.0
        %v3358 = vand.u32 %v763, 4294901760
        %3359 = vmatmul.mubr.f32.gmra.mrb[0].mxu0 %v3358
        %v3360 = vpop.f32.mrb[0].mxu0
        %v3361 = vadd.f32 %v3232, %v3360
        %v3362 = vpop.f32.mrb[0].mxu0
        %v3363 = vadd.f32 %v3234, %v3362
        %3364 = vmatprep.mubr.f32.mxu0 0.0
        %v3365 = vand.u32 %v766, 4294901760
        %3366 = vmatmul.mubr.f32.gmra.mrb[0].mxu0 %v3365
        %v3367 = vpop.f32.mrb[0].mxu0
        %v3368 = vadd.f32 %v3239, %v3367
        %v3369 = vpop.f32.mrb[0].mxu0
        %v3370 = vadd.f32 %v3241, %v3369
        %3371 = vdwg.mxu0
        %v3372 = vld [vmem:[#allocation2] sm:$0xff]
        %v3373 = vld [vmem:[#allocation2 + $0x8] sm:$0xff]
        %v3374 = vld [vmem:[#allocation2 + $0x10] sm:$0xff]
        %v3375 = vld [vmem:[#allocation2 + $0x18] sm:$0xff]
        %v3376 = vld [vmem:[#allocation3] sm:$0xff]
        %v3377 = vld [vmem:[#allocation3 + $0x8] sm:$0xff]
        %v3378 = vld [vmem:[#allocation3 + $0x10] sm:$0xff]
        %v3379 = vld [vmem:[#allocation3 + $0x18] sm:$0xff]
        %v3380 = vld [vmem:[%s4] sm:$0xff]
        %v3381 = vld [vmem:[%s4 + $0x8] sm:$0xff]
        %v3382 = vadd.f32 %v3376, %v3319
        %v3383 = vadd.f32 %v3377, %v3321
        %v3384 = vadd.f32 %v3378, %v3326
        %v3385 = vadd.f32 %v3379, %v3328
        %v3386 = vmul.f32 %v3372, 0.9
        %v3387 = vmul.f32 %v3373, 0.9
        %v3388 = vmul.f32 %v3374, 0.9
        %v3389 = vmul.f32 %v3375, 0.9
        %v3390 = vadd.f32 %v3382, 0.0
        %v3391 = vadd.f32 %v3383, 0.0
        %v3392 = vadd.f32 %v3384, 0.0
        %v3393 = vadd.f32 %v3385, 0.0
        %v3394 = vmul.f32 %v3390, 0.1
        %v3395 = vmul.f32 %v3391, 0.1
        %v3396 = vmul.f32 %v3392, 0.1
        %v3397 = vmul.f32 %v3393, 0.1
        %v3398 = vadd.f32 %v3386, %v3394
        %v3399 = vadd.f32 %v3387, %v3395
        %v3400 = vadd.f32 %v3388, %v3396
        %v3401 = vadd.f32 %v3389, %v3397
        %v3402 = vmul.f32 %v3382, 0.8
        %v3403 = vmul.f32 %v3383, 0.8
        %v3404 = vmul.f32 %v3384, 0.8
        %v3405 = vmul.f32 %v3385, 0.8
        %3407 = vset.pattern.permute.xlu0 0
        %3408 = vperm.xlu0 %3407, %v3380
        %v3409 = vpop.permute.xlu0 %3408
        %3412 = vset.pattern.permute.xlu0 0
        %3413 = vperm.xlu0 %3412, %v3381
        %v3414 = vpop.permute.xlu0 %3413
        %v3416 = vadd.f32 %v3398, %v3409
        %v3417 = vadd.f32 %v3399, %v3409
        %v3418 = vadd.f32 %v3400, %v3414
        %v3419 = vadd.f32 %v3401, %v3414
        %3420 = vst [vmem:[%s276] sm:$0xff] %v3416
        %3421 = vst [vmem:[%s276 + $0x8] sm:$0xff] %v3417
        %3422 = vst [vmem:[%s276 + $0x10] sm:$0xff] %v3418
        %3423 = vst [vmem:[%s276 + $0x18] sm:$0xff] %v3419
        %v3424 = vadd.f32 %v3402, %v3333
        %v3425 = vadd.f32 %v3403, %v3335
        %v3426 = vadd.f32 %v3404, %v3340
        %v3427 = vadd.f32 %v3405, %v3342
        %v3428 = vmul.f32 %v3398, 0.9
        %v3429 = vmul.f32 %v3399, 0.9
        %v3430 = vmul.f32 %v3400, 0.9
        %v3431 = vmul.f32 %v3401, 0.9
        %v3432 = vadd.f32 %v3424, 0.0
        %v3433 = vadd.f32 %v3425, 0.0
        %v3434 = vadd.f32 %v3426, 0.0
        %v3435 = vadd.f32 %v3427, 0.0
        %v3436 = vmul.f32 %v3432, 0.1
        %v3437 = vmul.f32 %v3433, 0.1
        %v3438 = vmul.f32 %v3434, 0.1
        %v3439 = vmul.f32 %v3435, 0.1
        %v3440 = vadd.f32 %v3428, %v3436
        %v3441 = vadd.f32 %v3429, %v3437
        %v3442 = vadd.f32 %v3430, %v3438
        %v3443 = vadd.f32 %v3431, %v3439
        %v3444 = vmul.f32 %v3424, 0.8
        %v3445 = vmul.f32 %v3425, 0.8
        %v3446 = vmul.f32 %v3426, 0.8
        %v3447 = vmul.f32 %v3427, 0.8
        %v3448 = vadd.f32 %v3440, %v3409
        %v3449 = vadd.f32 %v3441, %v3409
        %v3450 = vadd.f32 %v3442, %v3414
        %v3451 = vadd.f32 %v3443, %v3414
        %s3452 = scalar_lea.vmem %s276, 32 [#allocation9]
        %3453 = vst [vmem:[%s3452] sm:$0xff] %v3448
        %3454 = vst [vmem:[%s3452 + $0x8] sm:$0xff] %v3449
        %3455 = vst [vmem:[%s3452 + $0x10] sm:$0xff] %v3450
        %3456 = vst [vmem:[%s3452 + $0x18] sm:$0xff] %v3451
        %v3457 = vadd.f32 %v3444, %v3347
        %v3458 = vadd.f32 %v3445, %v3349
        %v3459 = vadd.f32 %v3446, %v3354
        %v3460 = vadd.f32 %v3447, %v3356
        %v3461 = vmul.f32 %v3440, 0.9
        %v3462 = vmul.f32 %v3441, 0.9
        %v3463 = vmul.f32 %v3442, 0.9
        %v3464 = vmul.f32 %v3443, 0.9
        %v3465 = vadd.f32 %v3457, 0.0
        %v3466 = vadd.f32 %v3458, 0.0
        %v3467 = vadd.f32 %v3459, 0.0
        %v3468 = vadd.f32 %v3460, 0.0
        %v3469 = vmul.f32 %v3465, 0.1
        %v3470 = vmul.f32 %v3466, 0.1
        %v3471 = vmul.f32 %v3467, 0.1
        %v3472 = vmul.f32 %v3468, 0.1
        %v3473 = vadd.f32 %v3461, %v3469
        %v3474 = vadd.f32 %v3462, %v3470
        %v3475 = vadd.f32 %v3463, %v3471
        %v3476 = vadd.f32 %v3464, %v3472
        %v3477 = vmul.f32 %v3457, 0.8
        %v3478 = vmul.f32 %v3458, 0.8
        %v3479 = vmul.f32 %v3459, 0.8
        %v3480 = vmul.f32 %v3460, 0.8
        %v3481 = vadd.f32 %v3473, %v3409
        %v3482 = vadd.f32 %v3474, %v3409
        %v3483 = vadd.f32 %v3475, %v3414
        %v3484 = vadd.f32 %v3476, %v3414
        %s3485 = scalar_lea.vmem %s276, 64 [#allocation9]
        %3486 = vst [vmem:[%s3485] sm:$0xff] %v3481
        %3487 = vst [vmem:[%s3485 + $0x8] sm:$0xff] %v3482
        %3488 = vst [vmem:[%s3485 + $0x10] sm:$0xff] %v3483
        %3489 = vst [vmem:[%s3485 + $0x18] sm:$0xff] %v3484
        %v3490 = vadd.f32 %v3477, %v3361
        %v3491 = vadd.f32 %v3478, %v3363
        %v3492 = vadd.f32 %v3479, %v3368
        %v3493 = vadd.f32 %v3480, %v3370
        %v3494 = vmul.f32 %v3473, 0.9
        %v3495 = vmul.f32 %v3474, 0.9
        %v3496 = vmul.f32 %v3475, 0.9
        %v3497 = vmul.f32 %v3476, 0.9
        %v3498 = vadd.f32 %v3490, 0.0
        %v3499 = vadd.f32 %v3491, 0.0
        %v3500 = vadd.f32 %v3492, 0.0
        %v3501 = vadd.f32 %v3493, 0.0
        %v3502 = vmul.f32 %v3498, 0.1
        %v3503 = vmul.f32 %v3499, 0.1
        %v3504 = vmul.f32 %v3500, 0.1
        %v3505 = vmul.f32 %v3501, 0.1
        %v3506 = vadd.f32 %v3494, %v3502
        %v3507 = vadd.f32 %v3495, %v3503
        %v3508 = vadd.f32 %v3496, %v3504
        %v3509 = vadd.f32 %v3497, %v3505
        %v3510 = vmul.f32 %v3490, 0.8
        %v3511 = vmul.f32 %v3491, 0.8
        %v3512 = vmul.f32 %v3492, 0.8
        %v3513 = vmul.f32 %v3493, 0.8
        %v3514 = vadd.f32 %v3506, %v3409
        %v3515 = vadd.f32 %v3507, %v3409
        %v3516 = vadd.f32 %v3508, %v3414
        %v3517 = vadd.f32 %v3509, %v3414
        %s3518 = scalar_lea.vmem %s276, 96 [#allocation9]
        %3519 = vst [vmem:[%s3518] sm:$0xff] %v3514
        %3520 = vst [vmem:[%s3518 + $0x8] sm:$0xff] %v3515
        %3521 = vst [vmem:[%s3518 + $0x10] sm:$0xff] %v3516
        %3522 = vst [vmem:[%s3518 + $0x18] sm:$0xff] %v3517
        %3523 = vst [vmem:[#allocation2] sm:$0xff] %v3506
        %3524 = vst [vmem:[#allocation2 + $0x8] sm:$0xff] %v3507
        %3525 = vst [vmem:[#allocation2 + $0x10] sm:$0xff] %v3508
        %3526 = vst [vmem:[#allocation2 + $0x18] sm:$0xff] %v3509
        %3527 = vst [vmem:[#allocation3] sm:$0xff] %v3510
        %3528 = vst [vmem:[#allocation3 + $0x8] sm:$0xff] %v3511
        %3529 = vst [vmem:[#allocation3 + $0x10] sm:$0xff] %v3512
        %3530 = vst [vmem:[#allocation3 + $0x18] sm:$0xff] %v3513
        %s3531 = sand.u32 %s157, 1
        %s3532 = scalar_lea.sflag [#allocation6], %s3531
        %s3533 = sand.u32 %s157, 1
        %s3534 = smul.addr %s3533, 128
        %s3535 = scalar_lea.vmem [#allocation9], %s3534
        // Predicated region
        $region53: #{tpu_custom_call.1} parent=39 // pred_check
          %p3536 = pneg %p167
        $region54: #{tpu_custom_call.1} parent=39 // pred_check_branch
          %3538 = sbr.rel (%p3536) target = $region56
        $region55: #{tpu_custom_call.1} parent=39 // pred_region
          #allocation11 [shape = 'u32[6]{0}', space=smem, size = 0x18, scoped, tag = 'DMA stride descriptor']
          %s3539 = smul.u32 4, %s28
          %s3541 = ssub.s32 2048, 2048
          %3542 = vsyncadd %s3532, %s3541
          %s3543 = smul.addr %s27, 4
          %s3544 = smul.addr %s3539, 8
          %s3545 = sadd.s32 %s3543, %s3544
          %s3546 = smul.addr %s3545, 128
          %s3547 = scalar_lea.hbm %s5, %s3546
          %s3549 = sshll.u32 1, 14
          %s3550 = sxor.u32 4294967295, %s3549
          %s3553 = sshll.u32 7, 18
          %s3554 = sxor.u32 4294967295, %s3553
          %s3555 = sand.u32 0, %s3554
          %s3557 = sor.u32 %s3555, 0
          %s3559 = sshll.u32 3, 24
          %s3560 = sxor.u32 4294967295, %s3559
          %s3561 = sand.u32 %s3557, %s3560
          %s3563 = sor.u32 %s3561, 0
          %s3564 = sshll.u32 %s3535, 4
          %s3565 = int_to_ptr.vmem [resolvable:$true] %s3564
          %3571 = sst [smem:[#allocation11]] 512
          %s3572 = scalar_lea.smem [#allocation11], 1
          %3573 = sst [smem:[%s3572]] 1024
          %s3574 = scalar_lea.smem [#allocation11], 2
          %3575 = sst [smem:[%s3574]] 2
          %s3576 = scalar_lea.smem [#allocation11], 3
          %3577 = sst [smem:[%s3576]] 256
          %s3578 = scalar_lea.smem [#allocation11], 4
          %3579 = sst [smem:[%s3578]] 256
          %s3580 = scalar_lea.smem [#allocation11], 5
          %3581 = sst [smem:[%s3580]] 16
          %3583 = dma.general %s3565, 2048, %s3547, %s3532, [#allocation10], [#allocation11], %s3563, 0
        $region56: #{tpu_custom_call.1} parent=39 // pred_fallthru
          _
      $region40: #{tpu_custom_call.1} parent=5 // pred_fallthru
        _
      %p3584 = scmp.le.s32.totalorder 2, %s18
      // Predicated region
      $region57: #{tpu_custom_call.1} parent=5 // pred_check
        %p3585 = pneg %p3584
      $region58: #{tpu_custom_call.1} parent=5 // pred_check_branch
        %3587 = sbr.rel (%p3585) target = $region60
      $region59: #{tpu_custom_call.1} parent=5 // pred_region
        %s3588 = ssub.s32 %s18, 2
        // Predicated region
        $region61: #{tpu_custom_call.1} parent=59 // pred_check
          %p3589 = pneg %p173
        $region62: #{tpu_custom_call.1} parent=59 // pred_check_branch
          %3591 = sbr.rel (%p3589) target = $region64
        $region63: #{tpu_custom_call.1} parent=59 // pred_region
          %s3592 = sand.u32 %s158, 1
          %s3593 = scalar_lea.sflag [#allocation6], %s3592
          %s3594 = sand.u32 %s158, 1
          %s3595 = smul.addr %s3594, 128
          %s3596 = scalar_lea.vmem [#allocation9], %s3595
          %3597 = dma.done %s3593, 2048
        $region64: #{tpu_custom_call.1} parent=59 // pred_fallthru
          _
      $region60: #{tpu_custom_call.1} parent=5 // pred_fallthru
        _
    $region6: #{tpu_custom_call.1} parent=1 // loop_footer
      %s22 = sadd.s32 1, %s18
    $region7: #{tpu_custom_call.1} parent=1 // loop_footer_branch
      %17 = sbr.rel target = $region3
    $region8: #{tpu_custom_call.1} parent=1 // loop_exit
      _
    %3598 = vsyncpa [#allocation5], 1
    %s3599 = scalar_lea.sflag [#allocation5], 1
    %3600 = vsyncpa %s3599, 1
    %3601 = vsyncpa [#allocation8], 1
    %3602 = vsyncpa [#allocation6], 1
    %s3603 = scalar_lea.sflag [#allocation6], 1
    %3604 = vsyncpa %s3603, 1

</llo_original>
